<compile_context>
chip_gen: v7x
topology: tpu7x:2x2x1
jax: 0.10.0
libtpu: 0.0.40
codegen_flags: <defaults>
</compile_context>

<pallas_src>
import functools

import jax
import jax.numpy as jnp
from jax.experimental import pallas as pl
from jax.experimental.pallas import tpu as pltpu

EPS = 1e-6


def _pick_tile(dim, candidates):
    """Largest candidate that evenly divides dim, else the full dim."""
    for c in candidates:
        if dim % c == 0:
            return c
    return dim


# -------------------- fused LN + matmul + bias (+ReLU) (+residual) --------------------
def _mm_kernel(*refs, ln, relu, residual):
    x_ref, w_ref, b_ref = refs[0], refs[1], refs[2]
    idx = 3
    if ln:
        a_ref, g_ref = refs[idx], refs[idx + 1]
        idx += 2
    if residual:
        r_ref = refs[idx]
        idx += 1
    o_ref = refs[idx]
    acc_ref = refs[idx + 1]
    if ln:
        xn_ref = refs[idx + 2]          # bf16 cache of the LN'd x tile (valid for this i)

    @pl.when(pl.program_id(2) == 0)
    def _():
        acc_ref[...] = jnp.zeros_like(acc_ref)

    if ln:
        # LN needs the whole feature dim, so tk == K and program_id(2) == 0 always.
        # Normalize only once per row block (first N tile), cache bf16 result in VMEM.
        @pl.when(pl.program_id(1) == 0)
        def _():
            x = x_ref[...].astype(jnp.float32)
            d = x.shape[-1]
            mean = jnp.mean(x, axis=-1, keepdims=True)
            # torch.std default is unbiased (ddof=1); eps added to std, not variance.
            var = jnp.sum((x - mean) ** 2, axis=-1, keepdims=True) / (d - 1)
            inv = pl.reciprocal(jnp.sqrt(var) + EPS, approx=True)
            xn = (a_ref[...].astype(jnp.float32) * (x - mean) * inv
                  + g_ref[...].astype(jnp.float32))
            xn_ref[...] = xn.astype(jnp.bfloat16)
        xb = xn_ref[...]
    else:
        xb = x_ref[...].astype(jnp.bfloat16)

    acc_ref[...] += jnp.dot(xb, w_ref[...], preferred_element_type=jnp.float32)

    @pl.when(pl.program_id(2) == pl.num_programs(2) - 1)
    def _():
        y = acc_ref[...] + b_ref[...].astype(jnp.float32)
        if relu:
            y = jnp.maximum(y, 0.0)
        if residual:
            y = y + r_ref[...].astype(jnp.float32)
        o_ref[...] = y.astype(o_ref.dtype)


def fused_matmul(x2, w, b, *, ln=None, residual=None, relu=False):
    """y = [residual +] [relu] ( LN?(x2) @ w + b ), tiled over (M, N, K)."""
    M, K = x2.shape
    N = w.shape[1]
    if ln is not None:
        tm = _pick_tile(M, (256, 128, 64, 32, 16, 8))   # cap tm: whole-K x tile (v5e VMEM)
        tk = K                                          # LN row statistic needs full K
    else:
        tm = _pick_tile(M, (512, 256, 128, 64, 32, 16, 8))
        tk = _pick_tile(K, (512, 256, 128))
    tn = _pick_tile(N, (512, 256, 128))

    in_specs = [
        pl.BlockSpec((tm, tk), lambda i, j, k: (i, k)),
        pl.BlockSpec((tk, tn), lambda i, j, k: (k, j)),
        pl.BlockSpec((1, tn), lambda i, j, k: (0, j)),
    ]
    # Weights are pre-cast to bf16 at init; astype is a no-op then (kept as a safe fallback).
    args = [x2, w if w.dtype == jnp.bfloat16 else w.astype(jnp.bfloat16), b.reshape(1, N)]
    if ln is not None:
        alpha, beta = ln
        in_specs += [pl.BlockSpec((1, tk), lambda i, j, k: (0, k)),
                     pl.BlockSpec((1, tk), lambda i, j, k: (0, k))]
        args += [alpha.reshape(1, K), beta.reshape(1, K)]
    if residual is not None:
        in_specs.append(pl.BlockSpec((tm, tn), lambda i, j, k: (i, j)))
        args.append(residual)

    scratch = [pltpu.VMEM((tm, tn), jnp.float32)]
    if ln is not None:
        scratch.append(pltpu.VMEM((tm, tk), jnp.bfloat16))

    # With LN fused the N axis must stay "arbitrary": the bf16 LN cache is written at j==0
    # and reused for j>0, so a megacore split over j would skip the initialisation.
    dims = ("parallel", "arbitrary", "arbitrary") if ln is not None \
        else ("parallel", "parallel", "arbitrary")

    return pl.pallas_call(
        functools.partial(_mm_kernel, ln=ln is not None, relu=relu,
                          residual=residual is not None),
        out_shape=jax.ShapeDtypeStruct((M, N), x2.dtype),
        grid=(M // tm, N // tn, K // tk),
        in_specs=in_specs,
        out_specs=pl.BlockSpec((tm, tn), lambda i, j, k: (i, j)),
        scratch_shapes=scratch,
        compiler_params=pltpu.CompilerParams(dimension_semantics=dims),
    )(*args)


# ------------------------------- attention kernels ------------------------------------
def _mha_into_scratch(qs, kb, vb, keep, attn_scr, n_heads, dk):
    """Per-head softmax(Q K^T) V written into a lane-dense bf16 (tq, D) VMEM scratch.

    qs: (tq, D) bf16 (already scaled by 1/sqrt(dk)); kb/vb: (Sk, D) bf16;
    keep: (tq, Sk) bool (True = attend).
    """
    for h in range(n_heads):
        lo = h * dk
        s = jax.lax.dot_general(qs[:, lo:lo + dk], kb[:, lo:lo + dk],
                                (((1,), (1,)), ((), ())),
                                preferred_element_type=jnp.float32)
        s = jnp.where(keep, s, jnp.float32(-1e9))
        s = s - jnp.max(s, axis=-1, keepdims=True)
        p = jnp.exp(s)
        p = p * pl.reciprocal(jnp.sum(p, axis=-1, keepdims=True), approx=True)
        attn_scr[:, lo:lo + dk] = jnp.dot(
            p.astype(jnp.bfloat16), vb[:, lo:lo + dk],
            preferred_element_type=jnp.float32).astype(jnp.bfloat16)


def _wo_epilogue(attn_scr, wo_ref, bo_ref, res, o_ref):
    """o = attn @ Wo + bo + residual, single full-K matmul on the MXU."""
    y = (jnp.dot(attn_scr[...], wo_ref[...], preferred_element_type=jnp.float32)
         + bo_ref[...].astype(jnp.float32) + res.astype(jnp.float32))
    o_ref[0] = y.astype(o_ref.dtype)


def _self_attn_kernel(qkv_ref, m_ref, wo_ref, bo_ref, res_ref, o_ref, attn_scr,
                      *, d_model, n_heads, scale, tq, n_q_tiles):
    dk = d_model // n_heads
    slab = qkv_ref[0]                                   # (S, 3D) fused Q|K|V
    if n_q_tiles == 1:
        q_rows = slab
    else:
        row0 = pl.multiple_of(pl.program_id(1) * tq, tq)
        q_rows = qkv_ref[0, pl.ds(row0, tq), :]         # (tq, 3D)
    keep = m_ref[0].astype(jnp.int32) != 0              # (tq, S), 1 = attend
    qs = (q_rows[:, :d_model].astype(jnp.float32) * scale).astype(jnp.bfloat16)
    kb = slab[:, d_model:2 * d_model].astype(jnp.bfloat16)
    vb = slab[:, 2 * d_model:].astype(jnp.bfloat16)
    _mha_into_scratch(qs, kb, vb, keep, attn_scr, n_heads, dk)
    _wo_epilogue(attn_scr, wo_ref, bo_ref, res_ref[0], o_ref)


def _cross_attn_kernel(q_ref, kv_ref, m_ref, wo_ref, bo_ref, res_ref, o_ref, attn_scr,
                       *, d_model, n_heads, scale):
    dk = d_model // n_heads
    kv = kv_ref[0]                                      # (Sk, 2D) fused K|V
    keep = m_ref[0].astype(jnp.int32) != 0              # (tq, Sk)
    qs = (q_ref[0].astype(jnp.float32) * scale).astype(jnp.bfloat16)
    kb = kv[:, :d_model].astype(jnp.bfloat16)
    vb = kv[:, d_model:].astype(jnp.bfloat16)
    _mha_into_scratch(qs, kb, vb, keep, attn_scr, n_heads, dk)
    _wo_epilogue(attn_scr, wo_ref, bo_ref, res_ref[0], o_ref)


def self_attention(qkv, mask, wo, bo, residual, *, d_model, n_heads):
    """residual + Wo @ MHA(qkv, mask) + bo, grid over (batch, Sq tiles)."""
    B, S, _ = qkv.shape
    dk = d_model // n_heads
    scale = 1.0 / float(dk) ** 0.5
    tq = _pick_tile(S, (256, 128, 64, 32))              # falls back to full S
    nq = S // tq
    return pl.pallas_call(
        functools.partial(_self_attn_kernel, d_model=d_model, n_heads=n_heads,
                          scale=scale, tq=tq, n_q_tiles=nq),
        out_shape=jax.ShapeDtypeStruct((B, S, d_model), residual.dtype),
        grid=(B, nq),
        in_specs=[
            pl.BlockSpec((1, S, 3 * d_model), lambda b, qi: (b, 0, 0)),   # K/V need full S
            pl.BlockSpec((1, tq, S), lambda b, qi: (b, qi, 0)),           # int8 mask rows
            pl.BlockSpec((d_model, d_model), lambda b, qi: (0, 0)),       # Wo (bf16)
            pl.BlockSpec((1, d_model), lambda b, qi: (0, 0)),             # bo
            pl.BlockSpec((1, tq, d_model), lambda b, qi: (b, qi, 0)),     # residual rows
        ],
        out_specs=pl.BlockSpec((1, tq, d_model), lambda b, qi: (b, qi, 0)),
        scratch_shapes=[pltpu.VMEM((tq, d_model), jnp.bfloat16)],
        compiler_params=pltpu.CompilerParams(
            dimension_semantics=("parallel", "parallel")),
    )(qkv, mask, wo, bo.reshape(1, d_model), residual)


def cross_attention(q, kv, mask, wo, bo, residual, *, d_model, n_heads):
    """residual + Wo @ MHA(q, kv, mask) + bo, grid over (batch, Sq tiles)."""
    B, Sq, _ = q.shape
    Sk = kv.shape[1]
    dk = d_model // n_heads
    scale = 1.0 / float(dk) ** 0.5
    tq = _pick_tile(Sq, (256, 128, 64, 32))
    return pl.pallas_call(
        functools.partial(_cross_attn_kernel, d_model=d_model, n_heads=n_heads, scale=scale),
        out_shape=jax.ShapeDtypeStruct((B, Sq, d_model), residual.dtype),
        grid=(B, Sq // tq),
        in_specs=[
            pl.BlockSpec((1, tq, d_model), lambda b, qi: (b, qi, 0)),
            pl.BlockSpec((1, Sk, 2 * d_model), lambda b, qi: (b, 0, 0)),
            pl.BlockSpec((1, tq, Sk), lambda b, qi: (b, qi, 0)),
            pl.BlockSpec((d_model, d_model), lambda b, qi: (0, 0)),
            pl.BlockSpec((1, d_model), lambda b, qi: (0, 0)),
            pl.BlockSpec((1, tq, d_model), lambda b, qi: (b, qi, 0)),
        ],
        out_specs=pl.BlockSpec((1, tq, d_model), lambda b, qi: (b, qi, 0)),
        scratch_shapes=[pltpu.VMEM((tq, d_model), jnp.bfloat16)],
        compiler_params=pltpu.CompilerParams(
            dimension_semantics=("parallel", "parallel")),
    )(q, kv, mask, wo, bo.reshape(1, d_model), residual)


# ------------------------------- LayerNormalization ----------------------------------
def _ln_kernel(x_ref, a_ref, b_ref, o_ref):
    x = x_ref[...].astype(jnp.float32)
    d = x.shape[-1]
    mean = jnp.mean(x, axis=-1, keepdims=True)
    var = jnp.sum((x - mean) ** 2, axis=-1, keepdims=True) / (d - 1)
    inv = pl.reciprocal(jnp.sqrt(var) + EPS, approx=True)
    o_ref[...] = (a_ref[...] * (x - mean) * inv + b_ref[...]).astype(o_ref.dtype)


def layer_norm(x, alpha, bias):
    B, S, D = x.shape
    M = B * S
    tm = _pick_tile(M, (256, 128, 64, 32, 16, 8))
    out = pl.pallas_call(
        _ln_kernel,
        out_shape=jax.ShapeDtypeStruct((M, D), x.dtype),
        grid=(M // tm,),
        in_specs=[pl.BlockSpec((tm, D), lambda i: (i, 0)),
                  pl.BlockSpec((1, D), lambda i: (0, 0)),
                  pl.BlockSpec((1, D), lambda i: (0, 0))],
        out_specs=pl.BlockSpec((tm, D), lambda i: (i, 0)),
        compiler_params=pltpu.CompilerParams(dimension_semantics=("parallel",)),
    )(x.reshape(M, D), alpha.reshape(1, D), bias.reshape(1, D))
    return out.reshape(B, S, D)


# ----------------------------------- Decoder block ------------------------------------
def decoder_block(x, enc_out, src_mask, tgt_mask, p, n_heads):
    B, S, D = x.shape
    Se = enc_out.shape[1]
    x2 = x.reshape(B * S, D)
    enc2 = enc_out.reshape(B * Se, D)

    # ---- self-attention sublayer: x = x + Wo(attn(QKV(LN(x)))) + bo (Wo fused in-kernel)
    qkv = fused_matmul(x2, p["self_wqkv"], p["self_bqkv"],
                       ln=(p["rc0_alpha"], p["rc0_bias"]))
    x = self_attention(qkv.reshape(B, S, 3 * D), tgt_mask, p["self_wo"], p["self_bo"], x,
                       d_model=D, n_heads=n_heads)

    # ---- cross-attention sublayer: x = x + Wo(attn(Q(LN(x)), KV(enc))) + bo
    q = fused_matmul(x.reshape(B * S, D), p["cross_wq"], p["cross_bq"],
                     ln=(p["rc1_alpha"], p["rc1_bias"]))
    kv = fused_matmul(enc2, p["cross_wkv"], p["cross_bkv"])
    x = cross_attention(q.reshape(B, S, D), kv.reshape(B, Se, 2 * D), src_mask,
                        p["cross_wo"], p["cross_bo"], x, d_model=D, n_heads=n_heads)

    # ---- feed-forward sublayer: x = x + W2(relu(W1(LN(x)))) ----
    x2 = x.reshape(B * S, D)
    h = fused_matmul(x2, p["ff_w1"], p["ff_b1"],
                     ln=(p["rc2_alpha"], p["rc2_bias"]), relu=True)
    x2 = fused_matmul(h, p["ff_w2"], p["ff_b2"], residual=x2)

    return x2.reshape(B, S, D)


def decoder_forward(params, x, encoder_output, src_mask, target_mask, *, n_heads):
    # int8 masks: 4x less mask HBM/VMEM traffic than int32 (1 = attend).
    src_mask = src_mask.astype(jnp.int8)
    target_mask = target_mask.astype(jnp.int8)
    for lp in params["layers"]:
        x = decoder_block(x, encoder_output, src_mask, target_mask, lp, n_heads)
    return layer_norm(x, params["norm_alpha"], params["norm_bias"])


# ------------------------------------ Param init ---------------------------------------
def _init_params(key, n_layers, d_model, d_ff):
    def dense(k, fan_in, fan_out):
        return jax.random.normal(k, (fan_in, fan_out), jnp.float32) * (fan_in ** -0.5)

    bf16 = jnp.bfloat16  # weights pre-cast once; no per-call f32->bf16 convert under jit
    layers = []
    for l in range(n_layers):
        ks = jax.random.split(jax.random.fold_in(key, l), 10)
        layers.append(dict(
            # fused Q|K|V projection weights (D, 3D)
            self_wqkv=jnp.concatenate([dense(ks[0], d_model, d_model),
                                       dense(ks[1], d_model, d_model),
                                       dense(ks[2], d_model, d_model)], axis=1).astype(bf16),
            self_bqkv=jnp.zeros((3 * d_model,), jnp.float32),
            self_wo=dense(ks[3], d_model, d_model).astype(bf16),
            self_bo=jnp.zeros((d_model,), jnp.float32),
            cross_wq=dense(ks[4], d_model, d_model).astype(bf16),
            cross_bq=jnp.zeros((d_model,), jnp.float32),
            # fused K|V projection weights (D, 2D) applied to encoder_output
            cross_wkv=jnp.concatenate([dense(ks[5], d_model, d_model),
                                       dense(ks[6], d_model, d_model)], axis=1).astype(bf16),
            cross_bkv=jnp.zeros((2 * d_model,), jnp.float32),
            cross_wo=dense(ks[7], d_model, d_model).astype(bf16),
            cross_bo=jnp.zeros((d_model,), jnp.float32),
            ff_w1=dense(ks[8], d_model, d_ff).astype(bf16),
            ff_b1=jnp.zeros((d_ff,), jnp.float32),
            ff_w2=dense(ks[9], d_ff, d_model).astype(bf16),
            ff_b2=jnp.zeros((d_model,), jnp.float32),
            rc0_alpha=jnp.ones((d_model,), jnp.float32),
            rc0_bias=jnp.zeros((d_model,), jnp.float32),
            rc1_alpha=jnp.ones((d_model,), jnp.float32),
            rc1_bias=jnp.zeros((d_model,), jnp.float32),
            rc2_alpha=jnp.ones((d_model,), jnp.float32),
            rc2_bias=jnp.zeros((d_model,), jnp.float32),
        ))
    return dict(layers=layers,
                norm_alpha=jnp.ones((d_model,), jnp.float32),
                norm_bias=jnp.zeros((d_model,), jnp.float32))


if __name__ == "__main__":
    B, S, D, H, DFF, L = 2, 8, 32, 4, 64, 2
    key = jax.random.PRNGKey(0)
    k_x, k_enc, k_p = jax.random.split(key, 3)

    x = jax.random.normal(k_x, (B, S, D), jnp.float32)
    encoder_output = jax.random.normal(k_enc, (B, S, D), jnp.float32)
    # target mask: causal (B, S, S); src mask: all-visible (B, S, S); 1 = attend.
    target_mask = jnp.broadcast_to(jnp.tril(jnp.ones((S, S), jnp.int32)), (B, S, S))
    src_mask = jnp.ones((B, S, S), jnp.int32)

    params = _init_params(k_p, L, D, DFF)

    fwd = jax.jit(functools.partial(decoder_forward, n_heads=H))
    out = fwd(params, x, encoder_output, src_mask, target_mask)
    jax.block_until_ready(out)
    assert out.shape == (B, S, D)
    print("KERNEL_OK")
</pallas_src>

<mosaic_0001>
module attributes {stable_mosaic.version = 11 : i64} {
  func.func @_mm_kernel(%arg0: i32, %arg1: i32, %arg2: i32, %arg3: memref<16x32xf32, #tpu.memory_space<vmem>>, %arg4: memref<32x32xbf16, #tpu.memory_space<vmem>>, %arg5: memref<1x32xf32, #tpu.memory_space<vmem>>, %arg6: memref<1x32xf32, #tpu.memory_space<vmem>>, %arg7: memref<1x32xf32, #tpu.memory_space<vmem>>, %arg8: memref<16x32xf32, #tpu.memory_space<vmem>>, %arg9: memref<16x32xf32, #tpu.memory_space<vmem>>, %arg10: memref<16x32xbf16, #tpu.memory_space<vmem>>) attributes {dimension_semantics = [#tpu.dimension_semantics<parallel>, #tpu.dimension_semantics<arbitrary>, #tpu.dimension_semantics<arbitrary>], iteration_bounds = array<i64: 1, 1, 1>, scalar_prefetch = 0 : i64, scratch_operands = 2 : i64, tpu.core_type = #tpu.core_type<tc>, window_params = [{transform_indices = @transform_0, window_bounds = array<i64: 16, 32>}, {transform_indices = @transform_1, window_bounds = array<i64: 32, 32>}, {transform_indices = @transform_2, window_bounds = array<i64: 1, 32>}, {transform_indices = @transform_3, window_bounds = array<i64: 1, 32>}, {transform_indices = @transform_4, window_bounds = array<i64: 1, 32>}, {transform_indices = @transform_5, window_bounds = array<i64: 16, 32>}]} {
    %c0_i32 = arith.constant 0 : i32
    %0 = arith.cmpi eq, %arg2, %c0_i32 : i32
    %1 = arith.extui %0 : i1 to i32
    %c0_i32_0 = arith.constant 0 : i32
    %2 = arith.cmpi ne, %1, %c0_i32_0 : i32
    scf.if %2 {
      %cst_12 = arith.constant 0.000000e+00 : f32
      %15 = vector.broadcast %cst_12 : f32 to vector<16x32xf32>
      %c0_13 = arith.constant 0 : index
      %c0_14 = arith.constant 0 : index
      %16 = vector.load %arg9[%c0_13, %c0_14] : memref<16x32xf32, #tpu.memory_space<vmem>>, vector<16x32xf32>
      tpu.vector_store %arg9[%c0_13, %c0_14], %15 {strides = array<i32>} : memref<16x32xf32, #tpu.memory_space<vmem>>, vector<16x32xf32>,
    } else {
    }
    %c0_i32_1 = arith.constant 0 : i32
    %3 = arith.cmpi eq, %arg1, %c0_i32_1 : i32
    %4 = arith.extui %3 : i1 to i32
    %c0_i32_2 = arith.constant 0 : i32
    %5 = arith.cmpi ne, %4, %c0_i32_2 : i32
    scf.if %5 {
      %c0_12 = arith.constant 0 : index
      %c0_13 = arith.constant 0 : index
      %15 = vector.load %arg3[%c0_12, %c0_13] : memref<16x32xf32, #tpu.memory_space<vmem>>, vector<16x32xf32>
      %cst_14 = arith.constant dense<0.000000e+00> : vector<16xf32>
      %16 = vector.multi_reduction <add>, %15, %cst_14 [1] : vector<16x32xf32> to vector<16xf32>
      %17 = vector.shape_cast %16 : vector<16xf32> to vector<16x1xf32>
      %cst_15 = arith.constant 3.200000e+01 : f32
      %18 = vector.broadcast %cst_15 : f32 to vector<16x1xf32>
      %19 = arith.divf %17, %18 : vector<16x1xf32>
      %20 = vector.broadcast %19 : vector<16x1xf32> to vector<16x32xf32>
      %21 = arith.subf %15, %20 : vector<16x32xf32>
      %22 = arith.mulf %21, %21 : vector<16x32xf32>
      %cst_16 = arith.constant dense<0.000000e+00> : vector<16xf32>
      %23 = vector.multi_reduction <add>, %22, %cst_16 [1] : vector<16x32xf32> to vector<16xf32>
      %24 = vector.shape_cast %23 : vector<16xf32> to vector<16x1xf32>
      %cst_17 = arith.constant 3.100000e+01 : f32
      %25 = vector.broadcast %cst_17 : f32 to vector<16x1xf32>
      %26 = arith.divf %24, %25 : vector<16x1xf32>
      %27 = math.sqrt %26 : vector<16x1xf32>
      %cst_18 = arith.constant 9.99999997E-7 : f32
      %28 = vector.broadcast %cst_18 : f32 to vector<16x1xf32>
      %29 = arith.addf %27, %28 : vector<16x1xf32>
      %30 = tpu.reciprocal %29 {approx = true} : vector<16x1xf32> -> vector<16x1xf32>
      %c0_19 = arith.constant 0 : index
      %c0_20 = arith.constant 0 : index
      %31 = vector.load %arg6[%c0_19, %c0_20] : memref<1x32xf32, #tpu.memory_space<vmem>>, vector<1x32xf32>
      %32 = vector.broadcast %19 : vector<16x1xf32> to vector<16x32xf32>
      %33 = arith.subf %15, %32 : vector<16x32xf32>
      %34 = vector.broadcast %31 : vector<1x32xf32> to vector<16x32xf32>
      %35 = arith.mulf %34, %33 : vector<16x32xf32>
      %36 = vector.broadcast %30 : vector<16x1xf32> to vector<16x32xf32>
      %37 = arith.mulf %35, %36 : vector<16x32xf32>
      %c0_21 = arith.constant 0 : index
      %c0_22 = arith.constant 0 : index
      %38 = vector.load %arg7[%c0_21, %c0_22] : memref<1x32xf32, #tpu.memory_space<vmem>>, vector<1x32xf32>
      %39 = vector.broadcast %38 : vector<1x32xf32> to vector<16x32xf32>
      %40 = arith.addf %37, %39 : vector<16x32xf32>
      %41 = arith.truncf %40 : vector<16x32xf32> to vector<16x32xbf16>
      %c0_23 = arith.constant 0 : index
      %c0_24 = arith.constant 0 : index
      %42 = vector.load %arg10[%c0_23, %c0_24] : memref<16x32xbf16, #tpu.memory_space<vmem>>, vector<16x32xbf16>
      tpu.vector_store %arg10[%c0_23, %c0_24], %41 {strides = array<i32>} : memref<16x32xbf16, #tpu.memory_space<vmem>>, vector<16x32xbf16>,
    } else {
    }
    %c0 = arith.constant 0 : index
    %c0_3 = arith.constant 0 : index
    %6 = vector.load %arg10[%c0, %c0_3] : memref<16x32xbf16, #tpu.memory_space<vmem>>, vector<16x32xbf16>
    %c0_4 = arith.constant 0 : index
    %c0_5 = arith.constant 0 : index
    %7 = vector.load %arg9[%c0_4, %c0_5] : memref<16x32xf32, #tpu.memory_space<vmem>>, vector<16x32xf32>
    %c0_6 = arith.constant 0 : index
    %c0_7 = arith.constant 0 : index
    %8 = vector.load %arg4[%c0_6, %c0_7] : memref<32x32xbf16, #tpu.memory_space<vmem>>, vector<32x32xbf16>
    %cst = arith.constant dense<0.000000e+00> : vector<16x32xf32>
    %9 = tpu.matmul %6, %8, %cst {dimension_numbers = #tpu.dot_dimension_numbers<[1], [0], [0], [1], [0, 0, 1, 1], [], []>} : vector<16x32xbf16>, vector<32x32xbf16>, vector<16x32xf32> -> vector<16x32xf32>
    %10 = arith.addf %7, %9 : vector<16x32xf32>
    %c0_8 = arith.constant 0 : index
    %c0_9 = arith.constant 0 : index
    %11 = vector.load %arg9[%c0_8, %c0_9] : memref<16x32xf32, #tpu.memory_space<vmem>>, vector<16x32xf32>
    tpu.vector_store %arg9[%c0_8, %c0_9], %10 {strides = array<i32>} : memref<16x32xf32, #tpu.memory_space<vmem>>, vector<16x32xf32>,
    %c0_i32_10 = arith.constant 0 : i32
    %12 = arith.cmpi eq, %arg2, %c0_i32_10 : i32
    %13 = arith.extui %12 : i1 to i32
    %c0_i32_11 = arith.constant 0 : i32
    %14 = arith.cmpi ne, %13, %c0_i32_11 : i32
    scf.if %14 {
      %c0_12 = arith.constant 0 : index
      %c0_13 = arith.constant 0 : index
      %15 = vector.load %arg9[%c0_12, %c0_13] : memref<16x32xf32, #tpu.memory_space<vmem>>, vector<16x32xf32>
      %c0_14 = arith.constant 0 : index
      %c0_15 = arith.constant 0 : index
      %16 = vector.load %arg5[%c0_14, %c0_15] : memref<1x32xf32, #tpu.memory_space<vmem>>, vector<1x32xf32>
      %17 = vector.broadcast %16 : vector<1x32xf32> to vector<16x32xf32>
      %18 = arith.addf %15, %17 : vector<16x32xf32>
      %c0_16 = arith.constant 0 : index
      %c0_17 = arith.constant 0 : index
      %19 = vector.load %arg8[%c0_16, %c0_17] : memref<16x32xf32, #tpu.memory_space<vmem>>, vector<16x32xf32>
      tpu.vector_store %arg8[%c0_16, %c0_17], %18 {strides = array<i32>} : memref<16x32xf32, #tpu.memory_space<vmem>>, vector<16x32xf32>,
    } else {
    }
    return
  }
  func.func @transform_0(%arg0: i32, %arg1: i32, %arg2: i32) -> (i32, i32) {
    %c0_i32 = arith.constant 0 : i32
    return %arg0, %arg2 : i32, i32
  }
  func.func @transform_1(%arg0: i32, %arg1: i32, %arg2: i32) -> (i32, i32) {
    %c0_i32 = arith.constant 0 : i32
    return %arg2, %arg1 : i32, i32
  }
  func.func @transform_2(%arg0: i32, %arg1: i32, %arg2: i32) -> (i32, i32) {
    %c0_i32 = arith.constant 0 : i32
    %c0_i32_0 = arith.constant 0 : i32
    return %c0_i32, %arg1 : i32, i32
  }
  func.func @transform_3(%arg0: i32, %arg1: i32, %arg2: i32) -> (i32, i32) {
    %c0_i32 = arith.constant 0 : i32
    %c0_i32_0 = arith.constant 0 : i32
    return %c0_i32, %arg2 : i32, i32
  }
  func.func @transform_4(%arg0: i32, %arg1: i32, %arg2: i32) -> (i32, i32) {
    %c0_i32 = arith.constant 0 : i32
    %c0_i32_0 = arith.constant 0 : i32
    return %c0_i32, %arg2 : i32, i32
  }
  func.func @transform_5(%arg0: i32, %arg1: i32, %arg2: i32) -> (i32, i32) {
    %c0_i32 = arith.constant 0 : i32
    return %arg0, %arg1 : i32, i32
  }
}

module attributes {stable_mosaic.version = 11 : i64} {
  func.func @_mm_kernel(%arg0: i32, %arg1: i32, %arg2: i32, %arg3: memref<16x32xf32, #tpu.memory_space<vmem>>, %arg4: memref<32x96xbf16, #tpu.memory_space<vmem>>, %arg5: memref<1x96xf32, #tpu.memory_space<vmem>>, %arg6: memref<1x32xf32, #tpu.memory_space<vmem>>, %arg7: memref<1x32xf32, #tpu.memory_space<vmem>>, %arg8: memref<16x96xf32, #tpu.memory_space<vmem>>, %arg9: memref<16x96xf32, #tpu.memory_space<vmem>>, %arg10: memref<16x32xbf16, #tpu.memory_space<vmem>>) attributes {dimension_semantics = [#tpu.dimension_semantics<parallel>, #tpu.dimension_semantics<arbitrary>, #tpu.dimension_semantics<arbitrary>], iteration_bounds = array<i64: 1, 1, 1>, scalar_prefetch = 0 : i64, scratch_operands = 2 : i64, tpu.core_type = #tpu.core_type<tc>, window_params = [{transform_indices = @transform_0, window_bounds = array<i64: 16, 32>}, {transform_indices = @transform_1, window_bounds = array<i64: 32, 96>}, {transform_indices = @transform_2, window_bounds = array<i64: 1, 96>}, {transform_indices = @transform_3, window_bounds = array<i64: 1, 32>}, {transform_indices = @transform_4, window_bounds = array<i64: 1, 32>}, {transform_indices = @transform_5, window_bounds = array<i64: 16, 96>}]} {
    %c0_i32 = arith.constant 0 : i32
    %0 = arith.cmpi eq, %arg2, %c0_i32 : i32
    %1 = arith.extui %0 : i1 to i32
    %c0_i32_0 = arith.constant 0 : i32
    %2 = arith.cmpi ne, %1, %c0_i32_0 : i32
    scf.if %2 {
      %cst_12 = arith.constant 0.000000e+00 : f32
      %15 = vector.broadcast %cst_12 : f32 to vector<16x96xf32>
      %c0_13 = arith.constant 0 : index
      %c0_14 = arith.constant 0 : index
      %16 = vector.load %arg9[%c0_13, %c0_14] : memref<16x96xf32, #tpu.memory_space<vmem>>, vector<16x96xf32>
      tpu.vector_store %arg9[%c0_13, %c0_14], %15 {strides = array<i32>} : memref<16x96xf32, #tpu.memory_space<vmem>>, vector<16x96xf32>,
    } else {
    }
    %c0_i32_1 = arith.constant 0 : i32
    %3 = arith.cmpi eq, %arg1, %c0_i32_1 : i32
    %4 = arith.extui %3 : i1 to i32
    %c0_i32_2 = arith.constant 0 : i32
    %5 = arith.cmpi ne, %4, %c0_i32_2 : i32
    scf.if %5 {
      %c0_12 = arith.constant 0 : index
      %c0_13 = arith.constant 0 : index
      %15 = vector.load %arg3[%c0_12, %c0_13] : memref<16x32xf32, #tpu.memory_space<vmem>>, vector<16x32xf32>
      %cst_14 = arith.constant dense<0.000000e+00> : vector<16xf32>
      %16 = vector.multi_reduction <add>, %15, %cst_14 [1] : vector<16x32xf32> to vector<16xf32>
      %17 = vector.shape_cast %16 : vector<16xf32> to vector<16x1xf32>
      %cst_15 = arith.constant 3.200000e+01 : f32
      %18 = vector.broadcast %cst_15 : f32 to vector<16x1xf32>
      %19 = arith.divf %17, %18 : vector<16x1xf32>
      %20 = vector.broadcast %19 : vector<16x1xf32> to vector<16x32xf32>
      %21 = arith.subf %15, %20 : vector<16x32xf32>
      %22 = arith.mulf %21, %21 : vector<16x32xf32>
      %cst_16 = arith.constant dense<0.000000e+00> : vector<16xf32>
      %23 = vector.multi_reduction <add>, %22, %cst_16 [1] : vector<16x32xf32> to vector<16xf32>
      %24 = vector.shape_cast %23 : vector<16xf32> to vector<16x1xf32>
      %cst_17 = arith.constant 3.100000e+01 : f32
      %25 = vector.broadcast %cst_17 : f32 to vector<16x1xf32>
      %26 = arith.divf %24, %25 : vector<16x1xf32>
      %27 = math.sqrt %26 : vector<16x1xf32>
      %cst_18 = arith.constant 9.99999997E-7 : f32
      %28 = vector.broadcast %cst_18 : f32 to vector<16x1xf32>
      %29 = arith.addf %27, %28 : vector<16x1xf32>
      %30 = tpu.reciprocal %29 {approx = true} : vector<16x1xf32> -> vector<16x1xf32>
      %c0_19 = arith.constant 0 : index
      %c0_20 = arith.constant 0 : index
      %31 = vector.load %arg6[%c0_19, %c0_20] : memref<1x32xf32, #tpu.memory_space<vmem>>, vector<1x32xf32>
      %32 = vector.broadcast %19 : vector<16x1xf32> to vector<16x32xf32>
      %33 = arith.subf %15, %32 : vector<16x32xf32>
      %34 = vector.broadcast %31 : vector<1x32xf32> to vector<16x32xf32>
      %35 = arith.mulf %34, %33 : vector<16x32xf32>
      %36 = vector.broadcast %30 : vector<16x1xf32> to vector<16x32xf32>
      %37 = arith.mulf %35, %36 : vector<16x32xf32>
      %c0_21 = arith.constant 0 : index
      %c0_22 = arith.constant 0 : index
      %38 = vector.load %arg7[%c0_21, %c0_22] : memref<1x32xf32, #tpu.memory_space<vmem>>, vector<1x32xf32>
      %39 = vector.broadcast %38 : vector<1x32xf32> to vector<16x32xf32>
      %40 = arith.addf %37, %39 : vector<16x32xf32>
      %41 = arith.truncf %40 : vector<16x32xf32> to vector<16x32xbf16>
      %c0_23 = arith.constant 0 : index
      %c0_24 = arith.constant 0 : index
      %42 = vector.load %arg10[%c0_23, %c0_24] : memref<16x32xbf16, #tpu.memory_space<vmem>>, vector<16x32xbf16>
      tpu.vector_store %arg10[%c0_23, %c0_24], %41 {strides = array<i32>} : memref<16x32xbf16, #tpu.memory_space<vmem>>, vector<16x32xbf16>,
    } else {
    }
    %c0 = arith.constant 0 : index
    %c0_3 = arith.constant 0 : index
    %6 = vector.load %arg10[%c0, %c0_3] : memref<16x32xbf16, #tpu.memory_space<vmem>>, vector<16x32xbf16>
    %c0_4 = arith.constant 0 : index
    %c0_5 = arith.constant 0 : index
    %7 = vector.load %arg9[%c0_4, %c0_5] : memref<16x96xf32, #tpu.memory_space<vmem>>, vector<16x96xf32>
    %c0_6 = arith.constant 0 : index
    %c0_7 = arith.constant 0 : index
    %8 = vector.load %arg4[%c0_6, %c0_7] : memref<32x96xbf16, #tpu.memory_space<vmem>>, vector<32x96xbf16>
    %cst = arith.constant dense<0.000000e+00> : vector<16x96xf32>
    %9 = tpu.matmul %6, %8, %cst {dimension_numbers = #tpu.dot_dimension_numbers<[1], [0], [0], [1], [0, 0, 1, 1], [], []>} : vector<16x32xbf16>, vector<32x96xbf16>, vector<16x96xf32> -> vector<16x96xf32>
    %10 = arith.addf %7, %9 : vector<16x96xf32>
    %c0_8 = arith.constant 0 : index
    %c0_9 = arith.constant 0 : index
    %11 = vector.load %arg9[%c0_8, %c0_9] : memref<16x96xf32, #tpu.memory_space<vmem>>, vector<16x96xf32>
    tpu.vector_store %arg9[%c0_8, %c0_9], %10 {strides = array<i32>} : memref<16x96xf32, #tpu.memory_space<vmem>>, vector<16x96xf32>,
    %c0_i32_10 = arith.constant 0 : i32
    %12 = arith.cmpi eq, %arg2, %c0_i32_10 : i32
    %13 = arith.extui %12 : i1 to i32
    %c0_i32_11 = arith.constant 0 : i32
    %14 = arith.cmpi ne, %13, %c0_i32_11 : i32
    scf.if %14 {
      %c0_12 = arith.constant 0 : index
      %c0_13 = arith.constant 0 : index
      %15 = vector.load %arg9[%c0_12, %c0_13] : memref<16x96xf32, #tpu.memory_space<vmem>>, vector<16x96xf32>
      %c0_14 = arith.constant 0 : index
      %c0_15 = arith.constant 0 : index
      %16 = vector.load %arg5[%c0_14, %c0_15] : memref<1x96xf32, #tpu.memory_space<vmem>>, vector<1x96xf32>
      %17 = vector.broadcast %16 : vector<1x96xf32> to vector<16x96xf32>
      %18 = arith.addf %15, %17 : vector<16x96xf32>
      %c0_16 = arith.constant 0 : index
      %c0_17 = arith.constant 0 : index
      %19 = vector.load %arg8[%c0_16, %c0_17] : memref<16x96xf32, #tpu.memory_space<vmem>>, vector<16x96xf32>
      tpu.vector_store %arg8[%c0_16, %c0_17], %18 {strides = array<i32>} : memref<16x96xf32, #tpu.memory_space<vmem>>, vector<16x96xf32>,
    } else {
    }
    return
  }
  func.func @transform_0(%arg0: i32, %arg1: i32, %arg2: i32) -> (i32, i32) {
    %c0_i32 = arith.constant 0 : i32
    return %arg0, %arg2 : i32, i32
  }
  func.func @transform_1(%arg0: i32, %arg1: i32, %arg2: i32) -> (i32, i32) {
    %c0_i32 = arith.constant 0 : i32
    return %arg2, %arg1 : i32, i32
  }
  func.func @transform_2(%arg0: i32, %arg1: i32, %arg2: i32) -> (i32, i32) {
    %c0_i32 = arith.constant 0 : i32
    %c0_i32_0 = arith.constant 0 : i32
    return %c0_i32, %arg1 : i32, i32
  }
  func.func @transform_3(%arg0: i32, %arg1: i32, %arg2: i32) -> (i32, i32) {
    %c0_i32 = arith.constant 0 : i32
    %c0_i32_0 = arith.constant 0 : i32
    return %c0_i32, %arg2 : i32, i32
  }
  func.func @transform_4(%arg0: i32, %arg1: i32, %arg2: i32) -> (i32, i32) {
    %c0_i32 = arith.constant 0 : i32
    %c0_i32_0 = arith.constant 0 : i32
    return %c0_i32, %arg2 : i32, i32
  }
  func.func @transform_5(%arg0: i32, %arg1: i32, %arg2: i32) -> (i32, i32) {
    %c0_i32 = arith.constant 0 : i32
    return %arg0, %arg1 : i32, i32
  }
}

module attributes {stable_mosaic.version = 11 : i64} {
  func.func @_self_attn_kernel(%arg0: i32, %arg1: i32, %arg2: memref<1x8x96xf32, #tpu.memory_space<vmem>>, %arg3: memref<1x8x8xi8, #tpu.memory_space<vmem>>, %arg4: memref<32x32xbf16, #tpu.memory_space<vmem>>, %arg5: memref<1x32xf32, #tpu.memory_space<vmem>>, %arg6: memref<1x8x32xf32, #tpu.memory_space<vmem>>, %arg7: memref<1x8x32xf32, #tpu.memory_space<vmem>>, %arg8: memref<8x32xbf16, #tpu.memory_space<vmem>>) attributes {dimension_semantics = [#tpu.dimension_semantics<parallel>, #tpu.dimension_semantics<parallel>], iteration_bounds = array<i64: 2, 1>, scalar_prefetch = 0 : i64, scratch_operands = 1 : i64, tpu.core_type = #tpu.core_type<tc>, window_params = [{transform_indices = @transform_0, window_bounds = array<i64: 1, 8, 96>}, {transform_indices = @transform_1, window_bounds = array<i64: 1, 8, 8>}, {pipeline_mode = #tpu.pipeline_mode<synchronous>, transform_indices = @transform_2, window_bounds = array<i64: 32, 32>}, {pipeline_mode = #tpu.pipeline_mode<synchronous>, transform_indices = @transform_3, window_bounds = array<i64: 1, 32>}, {transform_indices = @transform_4, window_bounds = array<i64: 1, 8, 32>}, {transform_indices = @transform_5, window_bounds = array<i64: 1, 8, 32>}]} {
    %c0 = arith.constant 0 : index
    %c0_0 = arith.constant 0 : index
    %c0_1 = arith.constant 0 : index
    %0 = vector.load %arg2[%c0, %c0_0, %c0_1] : memref<1x8x96xf32, #tpu.memory_space<vmem>>, vector<1x8x96xf32>
    %1 = vector.shape_cast %0 : vector<1x8x96xf32> to vector<8x96xf32>
    %c0_2 = arith.constant 0 : index
    %c0_3 = arith.constant 0 : index
    %c0_4 = arith.constant 0 : index
    %2 = vector.load %arg3[%c0_2, %c0_3, %c0_4] : memref<1x8x8xi8, #tpu.memory_space<vmem>>, vector<1x8x8xi8>
    %3 = vector.shape_cast %2 : vector<1x8x8xi8> to vector<8x8xi8>
    %4 = arith.extsi %3 : vector<8x8xi8> to vector<8x8xi32>
    %c0_i32 = arith.constant 0 : i32
    %5 = vector.broadcast %c0_i32 : i32 to vector<8x8xi32>
    %6 = arith.cmpi ne, %4, %5 : vector<8x8xi32>
    %7 = vector.extract_strided_slice %1 {offsets = [0, 0], sizes = [8, 32], strides = [1, 1]} : vector<8x96xf32> to vector<8x32xf32>
    %cst = arith.constant 0.353553385 : f32
    %8 = vector.broadcast %cst : f32 to vector<8x32xf32>
    %9 = arith.mulf %7, %8 : vector<8x32xf32>
    %10 = arith.truncf %9 : vector<8x32xf32> to vector<8x32xbf16>
    %11 = vector.extract_strided_slice %1 {offsets = [0, 32], sizes = [8, 32], strides = [1, 1]} : vector<8x96xf32> to vector<8x32xf32>
    %12 = arith.truncf %11 : vector<8x32xf32> to vector<8x32xbf16>
    %13 = vector.extract_strided_slice %1 {offsets = [0, 64], sizes = [8, 32], strides = [1, 1]} : vector<8x96xf32> to vector<8x32xf32>
    %14 = arith.truncf %13 : vector<8x32xf32> to vector<8x32xbf16>
    %15 = vector.extract_strided_slice %10 {offsets = [0, 0], sizes = [8, 8], strides = [1, 1]} : vector<8x32xbf16> to vector<8x8xbf16>
    %16 = vector.extract_strided_slice %12 {offsets = [0, 0], sizes = [8, 8], strides = [1, 1]} : vector<8x32xbf16> to vector<8x8xbf16>
    %cst_5 = arith.constant dense<0.000000e+00> : vector<8x8xf32>
    %17 = tpu.matmul %15, %16, %cst_5 {dimension_numbers = #tpu.dot_dimension_numbers<[1], [1], [0], [0], [0, 0, 1, 0], [], []>} : vector<8x8xbf16>, vector<8x8xbf16>, vector<8x8xf32> -> vector<8x8xf32>
    %cst_6 = arith.constant -1.000000e+09 : f32
    %18 = vector.broadcast %cst_6 : f32 to vector<8x8xf32>
    %19 = arith.select %6, %17, %18 : vector<8x8xi1>, vector<8x8xf32>
    %cst_7 = arith.constant dense<0xFF800000> : vector<8xf32>
    %20 = vector.multi_reduction <maximumf>, %19, %cst_7 [1] : vector<8x8xf32> to vector<8xf32>
    %21 = vector.shape_cast %20 : vector<8xf32> to vector<8x1xf32>
    %22 = vector.broadcast %21 : vector<8x1xf32> to vector<8x8xf32>
    %23 = arith.subf %19, %22 : vector<8x8xf32>
    %24 = math.exp %23 : vector<8x8xf32>
    %cst_8 = arith.constant dense<0.000000e+00> : vector<8xf32>
    %25 = vector.multi_reduction <add>, %24, %cst_8 [1] : vector<8x8xf32> to vector<8xf32>
    %26 = vector.shape_cast %25 : vector<8xf32> to vector<8x1xf32>
    %27 = tpu.reciprocal %26 {approx = true} : vector<8x1xf32> -> vector<8x1xf32>
    %28 = vector.broadcast %27 : vector<8x1xf32> to vector<8x8xf32>
    %29 = arith.mulf %24, %28 : vector<8x8xf32>
    %30 = arith.truncf %29 : vector<8x8xf32> to vector<8x8xbf16>
    %31 = vector.extract_strided_slice %14 {offsets = [0, 0], sizes = [8, 8], strides = [1, 1]} : vector<8x32xbf16> to vector<8x8xbf16>
    %cst_9 = arith.constant dense<0.000000e+00> : vector<8x8xf32>
    %32 = tpu.matmul %30, %31, %cst_9 {dimension_numbers = #tpu.dot_dimension_numbers<[1], [0], [0], [1], [0, 0, 1, 1], [], []>} : vector<8x8xbf16>, vector<8x8xbf16>, vector<8x8xf32> -> vector<8x8xf32>
    %33 = arith.truncf %32 : vector<8x8xf32> to vector<8x8xbf16>
    %c0_10 = arith.constant 0 : index
    %c0_11 = arith.constant 0 : index
    %34 = vector.load %arg8[%c0_10, %c0_11] : memref<8x32xbf16, #tpu.memory_space<vmem>>, vector<8x8xbf16>
    tpu.vector_store %arg8[%c0_10, %c0_11], %33 {strides = array<i32>} : memref<8x32xbf16, #tpu.memory_space<vmem>>, vector<8x8xbf16>,
    %35 = vector.extract_strided_slice %10 {offsets = [0, 8], sizes = [8, 8], strides = [1, 1]} : vector<8x32xbf16> to vector<8x8xbf16>
    %36 = vector.extract_strided_slice %12 {offsets = [0, 8], sizes = [8, 8], strides = [1, 1]} : vector<8x32xbf16> to vector<8x8xbf16>
    %cst_12 = arith.constant dense<0.000000e+00> : vector<8x8xf32>
    %37 = tpu.matmul %35, %36, %cst_12 {dimension_numbers = #tpu.dot_dimension_numbers<[1], [1], [0], [0], [0, 0, 1, 0], [], []>} : vector<8x8xbf16>, vector<8x8xbf16>, vector<8x8xf32> -> vector<8x8xf32>
    %cst_13 = arith.constant -1.000000e+09 : f32
    %38 = vector.broadcast %cst_13 : f32 to vector<8x8xf32>
    %39 = arith.select %6, %37, %38 : vector<8x8xi1>, vector<8x8xf32>
    %cst_14 = arith.constant dense<0xFF800000> : vector<8xf32>
    %40 = vector.multi_reduction <maximumf>, %39, %cst_14 [1] : vector<8x8xf32> to vector<8xf32>
    %41 = vector.shape_cast %40 : vector<8xf32> to vector<8x1xf32>
    %42 = vector.broadcast %41 : vector<8x1xf32> to vector<8x8xf32>
    %43 = arith.subf %39, %42 : vector<8x8xf32>
    %44 = math.exp %43 : vector<8x8xf32>
    %cst_15 = arith.constant dense<0.000000e+00> : vector<8xf32>
    %45 = vector.multi_reduction <add>, %44, %cst_15 [1] : vector<8x8xf32> to vector<8xf32>
    %46 = vector.shape_cast %45 : vector<8xf32> to vector<8x1xf32>
    %47 = tpu.reciprocal %46 {approx = true} : vector<8x1xf32> -> vector<8x1xf32>
    %48 = vector.broadcast %47 : vector<8x1xf32> to vector<8x8xf32>
    %49 = arith.mulf %44, %48 : vector<8x8xf32>
    %50 = arith.truncf %49 : vector<8x8xf32> to vector<8x8xbf16>
    %51 = vector.extract_strided_slice %14 {offsets = [0, 8], sizes = [8, 8], strides = [1, 1]} : vector<8x32xbf16> to vector<8x8xbf16>
    %cst_16 = arith.constant dense<0.000000e+00> : vector<8x8xf32>
    %52 = tpu.matmul %50, %51, %cst_16 {dimension_numbers = #tpu.dot_dimension_numbers<[1], [0], [0], [1], [0, 0, 1, 1], [], []>} : vector<8x8xbf16>, vector<8x8xbf16>, vector<8x8xf32> -> vector<8x8xf32>
    %53 = arith.truncf %52 : vector<8x8xf32> to vector<8x8xbf16>
    %c0_17 = arith.constant 0 : index
    %c8 = arith.constant 8 : index
    %54 = vector.load %arg8[%c0_17, %c8] : memref<8x32xbf16, #tpu.memory_space<vmem>>, vector<8x8xbf16>
    tpu.vector_store %arg8[%c0_17, %c8], %53 {strides = array<i32>} : memref<8x32xbf16, #tpu.memory_space<vmem>>, vector<8x8xbf16>,
    %55 = vector.extract_strided_slice %10 {offsets = [0, 16], sizes = [8, 8], strides = [1, 1]} : vector<8x32xbf16> to vector<8x8xbf16>
    %56 = vector.extract_strided_slice %12 {offsets = [0, 16], sizes = [8, 8], strides = [1, 1]} : vector<8x32xbf16> to vector<8x8xbf16>
    %cst_18 = arith.constant dense<0.000000e+00> : vector<8x8xf32>
    %57 = tpu.matmul %55, %56, %cst_18 {dimension_numbers = #tpu.dot_dimension_numbers<[1], [1], [0], [0], [0, 0, 1, 0], [], []>} : vector<8x8xbf16>, vector<8x8xbf16>, vector<8x8xf32> -> vector<8x8xf32>
    %cst_19 = arith.constant -1.000000e+09 : f32
    %58 = vector.broadcast %cst_19 : f32 to vector<8x8xf32>
    %59 = arith.select %6, %57, %58 : vector<8x8xi1>, vector<8x8xf32>
    %cst_20 = arith.constant dense<0xFF800000> : vector<8xf32>
    %60 = vector.multi_reduction <maximumf>, %59, %cst_20 [1] : vector<8x8xf32> to vector<8xf32>
    %61 = vector.shape_cast %60 : vector<8xf32> to vector<8x1xf32>
    %62 = vector.broadcast %61 : vector<8x1xf32> to vector<8x8xf32>
    %63 = arith.subf %59, %62 : vector<8x8xf32>
    %64 = math.exp %63 : vector<8x8xf32>
    %cst_21 = arith.constant dense<0.000000e+00> : vector<8xf32>
    %65 = vector.multi_reduction <add>, %64, %cst_21 [1] : vector<8x8xf32> to vector<8xf32>
    %66 = vector.shape_cast %65 : vector<8xf32> to vector<8x1xf32>
    %67 = tpu.reciprocal %66 {approx = true} : vector<8x1xf32> -> vector<8x1xf32>
    %68 = vector.broadcast %67 : vector<8x1xf32> to vector<8x8xf32>
    %69 = arith.mulf %64, %68 : vector<8x8xf32>
    %70 = arith.truncf %69 : vector<8x8xf32> to vector<8x8xbf16>
    %71 = vector.extract_strided_slice %14 {offsets = [0, 16], sizes = [8, 8], strides = [1, 1]} : vector<8x32xbf16> to vector<8x8xbf16>
    %cst_22 = arith.constant dense<0.000000e+00> : vector<8x8xf32>
    %72 = tpu.matmul %70, %71, %cst_22 {dimension_numbers = #tpu.dot_dimension_numbers<[1], [0], [0], [1], [0, 0, 1, 1], [], []>} : vector<8x8xbf16>, vector<8x8xbf16>, vector<8x8xf32> -> vector<8x8xf32>
    %73 = arith.truncf %72 : vector<8x8xf32> to vector<8x8xbf16>
    %c0_23 = arith.constant 0 : index
    %c16 = arith.constant 16 : index
    %74 = vector.load %arg8[%c0_23, %c16] : memref<8x32xbf16, #tpu.memory_space<vmem>>, vector<8x8xbf16>
    tpu.vector_store %arg8[%c0_23, %c16], %73 {strides = array<i32>} : memref<8x32xbf16, #tpu.memory_space<vmem>>, vector<8x8xbf16>,
    %75 = vector.extract_strided_slice %10 {offsets = [0, 24], sizes = [8, 8], strides = [1, 1]} : vector<8x32xbf16> to vector<8x8xbf16>
    %76 = vector.extract_strided_slice %12 {offsets = [0, 24], sizes = [8, 8], strides = [1, 1]} : vector<8x32xbf16> to vector<8x8xbf16>
    %cst_24 = arith.constant dense<0.000000e+00> : vector<8x8xf32>
    %77 = tpu.matmul %75, %76, %cst_24 {dimension_numbers = #tpu.dot_dimension_numbers<[1], [1], [0], [0], [0, 0, 1, 0], [], []>} : vector<8x8xbf16>, vector<8x8xbf16>, vector<8x8xf32> -> vector<8x8xf32>
    %cst_25 = arith.constant -1.000000e+09 : f32
    %78 = vector.broadcast %cst_25 : f32 to vector<8x8xf32>
    %79 = arith.select %6, %77, %78 : vector<8x8xi1>, vector<8x8xf32>
    %cst_26 = arith.constant dense<0xFF800000> : vector<8xf32>
    %80 = vector.multi_reduction <maximumf>, %79, %cst_26 [1] : vector<8x8xf32> to vector<8xf32>
    %81 = vector.shape_cast %80 : vector<8xf32> to vector<8x1xf32>
    %82 = vector.broadcast %81 : vector<8x1xf32> to vector<8x8xf32>
    %83 = arith.subf %79, %82 : vector<8x8xf32>
    %84 = math.exp %83 : vector<8x8xf32>
    %cst_27 = arith.constant dense<0.000000e+00> : vector<8xf32>
    %85 = vector.multi_reduction <add>, %84, %cst_27 [1] : vector<8x8xf32> to vector<8xf32>
    %86 = vector.shape_cast %85 : vector<8xf32> to vector<8x1xf32>
    %87 = tpu.reciprocal %86 {approx = true} : vector<8x1xf32> -> vector<8x1xf32>
    %88 = vector.broadcast %87 : vector<8x1xf32> to vector<8x8xf32>
    %89 = arith.mulf %84, %88 : vector<8x8xf32>
    %90 = arith.truncf %89 : vector<8x8xf32> to vector<8x8xbf16>
    %91 = vector.extract_strided_slice %14 {offsets = [0, 24], sizes = [8, 8], strides = [1, 1]} : vector<8x32xbf16> to vector<8x8xbf16>
    %cst_28 = arith.constant dense<0.000000e+00> : vector<8x8xf32>
    %92 = tpu.matmul %90, %91, %cst_28 {dimension_numbers = #tpu.dot_dimension_numbers<[1], [0], [0], [1], [0, 0, 1, 1], [], []>} : vector<8x8xbf16>, vector<8x8xbf16>, vector<8x8xf32> -> vector<8x8xf32>
    %93 = arith.truncf %92 : vector<8x8xf32> to vector<8x8xbf16>
    %c0_29 = arith.constant 0 : index
    %c24 = arith.constant 24 : index
    %94 = vector.load %arg8[%c0_29, %c24] : memref<8x32xbf16, #tpu.memory_space<vmem>>, vector<8x8xbf16>
    tpu.vector_store %arg8[%c0_29, %c24], %93 {strides = array<i32>} : memref<8x32xbf16, #tpu.memory_space<vmem>>, vector<8x8xbf16>,
    %c0_30 = arith.constant 0 : index
    %c0_31 = arith.constant 0 : index
    %c0_32 = arith.constant 0 : index
    %95 = vector.load %arg6[%c0_30, %c0_31, %c0_32] : memref<1x8x32xf32, #tpu.memory_space<vmem>>, vector<1x8x32xf32>
    %96 = vector.shape_cast %95 : vector<1x8x32xf32> to vector<8x32xf32>
    %c0_33 = arith.constant 0 : index
    %c0_34 = arith.constant 0 : index
    %97 = vector.load %arg8[%c0_33, %c0_34] : memref<8x32xbf16, #tpu.memory_space<vmem>>, vector<8x32xbf16>
    %c0_35 = arith.constant 0 : index
    %c0_36 = arith.constant 0 : index
    %98 = vector.load %arg4[%c0_35, %c0_36] : memref<32x32xbf16, #tpu.memory_space<vmem>>, vector<32x32xbf16>
    %cst_37 = arith.constant dense<0.000000e+00> : vector<8x32xf32>
    %99 = tpu.matmul %97, %98, %cst_37 {dimension_numbers = #tpu.dot_dimension_numbers<[1], [0], [0], [1], [0, 0, 1, 1], [], []>} : vector<8x32xbf16>, vector<32x32xbf16>, vector<8x32xf32> -> vector<8x32xf32>
    %c0_38 = arith.constant 0 : index
    %c0_39 = arith.constant 0 : index
    %100 = vector.load %arg5[%c0_38, %c0_39] : memref<1x32xf32, #tpu.memory_space<vmem>>, vector<1x32xf32>
    %101 = vector.broadcast %100 : vector<1x32xf32> to vector<8x32xf32>
    %102 = arith.addf %99, %101 : vector<8x32xf32>
    %103 = arith.addf %102, %96 : vector<8x32xf32>
    %c0_40 = arith.constant 0 : index
    %c0_41 = arith.constant 0 : index
    %c0_42 = arith.constant 0 : index
    %104 = vector.load %arg7[%c0_40, %c0_41, %c0_42] : memref<1x8x32xf32, #tpu.memory_space<vmem>>, vector<1x8x32xf32>
    %105 = vector.shape_cast %104 : vector<1x8x32xf32> to vector<8x32xf32>
    %106 = vector.shape_cast %103 : vector<8x32xf32> to vector<1x8x32xf32>
    tpu.vector_store %arg7[%c0_40, %c0_41, %c0_42], %106 {strides = array<i32>} : memref<1x8x32xf32, #tpu.memory_space<vmem>>, vector<1x8x32xf32>,
    return
  }
  func.func @transform_0(%arg0: i32, %arg1: i32) -> (i32, i32, i32) {
    %c0_i32 = arith.constant 0 : i32
    %c0_i32_0 = arith.constant 0 : i32
    %c0_i32_1 = arith.constant 0 : i32
    return %arg0, %c0_i32, %c0_i32_0 : i32, i32, i32
  }
  func.func @transform_1(%arg0: i32, %arg1: i32) -> (i32, i32, i32) {
    %c0_i32 = arith.constant 0 : i32
    %c0_i32_0 = arith.constant 0 : i32
    return %arg0, %arg1, %c0_i32 : i32, i32, i32
  }
  func.func @transform_2(%arg0: i32, %arg1: i32) -> (i32, i32) {
    %c0_i32 = arith.constant 0 : i32
    %c0_i32_0 = arith.constant 0 : i32
    %c0_i32_1 = arith.constant 0 : i32
    return %c0_i32, %c0_i32_0 : i32, i32
  }
  func.func @transform_3(%arg0: i32, %arg1: i32) -> (i32, i32) {
    %c0_i32 = arith.constant 0 : i32
    %c0_i32_0 = arith.constant 0 : i32
    %c0_i32_1 = arith.constant 0 : i32
    return %c0_i32, %c0_i32_0 : i32, i32
  }
  func.func @transform_4(%arg0: i32, %arg1: i32) -> (i32, i32, i32) {
    %c0_i32 = arith.constant 0 : i32
    %c0_i32_0 = arith.constant 0 : i32
    return %arg0, %arg1, %c0_i32 : i32, i32, i32
  }
  func.func @transform_5(%arg0: i32, %arg1: i32) -> (i32, i32, i32) {
    %c0_i32 = arith.constant 0 : i32
    %c0_i32_0 = arith.constant 0 : i32
    return %arg0, %arg1, %c0_i32 : i32, i32, i32
  }
}

module attributes {stable_mosaic.version = 11 : i64} {
  func.func @_mm_kernel(%arg0: i32, %arg1: i32, %arg2: i32, %arg3: memref<16x32xf32, #tpu.memory_space<vmem>>, %arg4: memref<32x64xbf16, #tpu.memory_space<vmem>>, %arg5: memref<1x64xf32, #tpu.memory_space<vmem>>, %arg6: memref<16x64xf32, #tpu.memory_space<vmem>>, %arg7: memref<16x64xf32, #tpu.memory_space<vmem>>) attributes {dimension_semantics = [#tpu.dimension_semantics<parallel>, #tpu.dimension_semantics<parallel>, #tpu.dimension_semantics<arbitrary>], iteration_bounds = array<i64: 1, 1, 1>, scalar_prefetch = 0 : i64, scratch_operands = 1 : i64, tpu.core_type = #tpu.core_type<tc>, window_params = [{transform_indices = @transform_0, window_bounds = array<i64: 16, 32>}, {transform_indices = @transform_1, window_bounds = array<i64: 32, 64>}, {transform_indices = @transform_2, window_bounds = array<i64: 1, 64>}, {transform_indices = @transform_3, window_bounds = array<i64: 16, 64>}]} {
    %c0_i32 = arith.constant 0 : i32
    %0 = arith.cmpi eq, %arg2, %c0_i32 : i32
    %1 = arith.extui %0 : i1 to i32
    %c0_i32_0 = arith.constant 0 : i32
    %2 = arith.cmpi ne, %1, %c0_i32_0 : i32
    scf.if %2 {
      %cst_10 = arith.constant 0.000000e+00 : f32
      %13 = vector.broadcast %cst_10 : f32 to vector<16x64xf32>
      %c0_11 = arith.constant 0 : index
      %c0_12 = arith.constant 0 : index
      %14 = vector.load %arg7[%c0_11, %c0_12] : memref<16x64xf32, #tpu.memory_space<vmem>>, vector<16x64xf32>
      tpu.vector_store %arg7[%c0_11, %c0_12], %13 {strides = array<i32>} : memref<16x64xf32, #tpu.memory_space<vmem>>, vector<16x64xf32>,
    } else {
    }
    %c0 = arith.constant 0 : index
    %c0_1 = arith.constant 0 : index
    %3 = vector.load %arg3[%c0, %c0_1] : memref<16x32xf32, #tpu.memory_space<vmem>>, vector<16x32xf32>
    %4 = arith.truncf %3 : vector<16x32xf32> to vector<16x32xbf16>
    %c0_2 = arith.constant 0 : index
    %c0_3 = arith.constant 0 : index
    %5 = vector.load %arg7[%c0_2, %c0_3] : memref<16x64xf32, #tpu.memory_space<vmem>>, vector<16x64xf32>
    %c0_4 = arith.constant 0 : index
    %c0_5 = arith.constant 0 : index
    %6 = vector.load %arg4[%c0_4, %c0_5] : memref<32x64xbf16, #tpu.memory_space<vmem>>, vector<32x64xbf16>
    %cst = arith.constant dense<0.000000e+00> : vector<16x64xf32>
    %7 = tpu.matmul %4, %6, %cst {dimension_numbers = #tpu.dot_dimension_numbers<[1], [0], [0], [1], [0, 0, 1, 1], [], []>} : vector<16x32xbf16>, vector<32x64xbf16>, vector<16x64xf32> -> vector<16x64xf32>
    %8 = arith.addf %5, %7 : vector<16x64xf32>
    %c0_6 = arith.constant 0 : index
    %c0_7 = arith.constant 0 : index
    %9 = vector.load %arg7[%c0_6, %c0_7] : memref<16x64xf32, #tpu.memory_space<vmem>>, vector<16x64xf32>
    tpu.vector_store %arg7[%c0_6, %c0_7], %8 {strides = array<i32>} : memref<16x64xf32, #tpu.memory_space<vmem>>, vector<16x64xf32>,
    %c0_i32_8 = arith.constant 0 : i32
    %10 = arith.cmpi eq, %arg2, %c0_i32_8 : i32
    %11 = arith.extui %10 : i1 to i32
    %c0_i32_9 = arith.constant 0 : i32
    %12 = arith.cmpi ne, %11, %c0_i32_9 : i32
    scf.if %12 {
      %c0_10 = arith.constant 0 : index
      %c0_11 = arith.constant 0 : index
      %13 = vector.load %arg7[%c0_10, %c0_11] : memref<16x64xf32, #tpu.memory_space<vmem>>, vector<16x64xf32>
      %c0_12 = arith.constant 0 : index
      %c0_13 = arith.constant 0 : index
      %14 = vector.load %arg5[%c0_12, %c0_13] : memref<1x64xf32, #tpu.memory_space<vmem>>, vector<1x64xf32>
      %15 = vector.broadcast %14 : vector<1x64xf32> to vector<16x64xf32>
      %16 = arith.addf %13, %15 : vector<16x64xf32>
      %c0_14 = arith.constant 0 : index
      %c0_15 = arith.constant 0 : index
      %17 = vector.load %arg6[%c0_14, %c0_15] : memref<16x64xf32, #tpu.memory_space<vmem>>, vector<16x64xf32>
      tpu.vector_store %arg6[%c0_14, %c0_15], %16 {strides = array<i32>} : memref<16x64xf32, #tpu.memory_space<vmem>>, vector<16x64xf32>,
    } else {
    }
    return
  }
  func.func @transform_0(%arg0: i32, %arg1: i32, %arg2: i32) -> (i32, i32) {
    %c0_i32 = arith.constant 0 : i32
    return %arg0, %arg2 : i32, i32
  }
  func.func @transform_1(%arg0: i32, %arg1: i32, %arg2: i32) -> (i32, i32) {
    %c0_i32 = arith.constant 0 : i32
    return %arg2, %arg1 : i32, i32
  }
  func.func @transform_2(%arg0: i32, %arg1: i32, %arg2: i32) -> (i32, i32) {
    %c0_i32 = arith.constant 0 : i32
    %c0_i32_0 = arith.constant 0 : i32
    return %c0_i32, %arg1 : i32, i32
  }
  func.func @transform_3(%arg0: i32, %arg1: i32, %arg2: i32) -> (i32, i32) {
    %c0_i32 = arith.constant 0 : i32
    return %arg0, %arg1 : i32, i32
  }
}

module attributes {stable_mosaic.version = 11 : i64} {
  func.func @_mm_kernel(%arg0: i32, %arg1: i32, %arg2: i32, %arg3: memref<16x32xf32, #tpu.memory_space<vmem>>, %arg4: memref<32x64xbf16, #tpu.memory_space<vmem>>, %arg5: memref<1x64xf32, #tpu.memory_space<vmem>>, %arg6: memref<1x32xf32, #tpu.memory_space<vmem>>, %arg7: memref<1x32xf32, #tpu.memory_space<vmem>>, %arg8: memref<16x64xf32, #tpu.memory_space<vmem>>, %arg9: memref<16x64xf32, #tpu.memory_space<vmem>>, %arg10: memref<16x32xbf16, #tpu.memory_space<vmem>>) attributes {dimension_semantics = [#tpu.dimension_semantics<parallel>, #tpu.dimension_semantics<arbitrary>, #tpu.dimension_semantics<arbitrary>], iteration_bounds = array<i64: 1, 1, 1>, scalar_prefetch = 0 : i64, scratch_operands = 2 : i64, tpu.core_type = #tpu.core_type<tc>, window_params = [{transform_indices = @transform_0, window_bounds = array<i64: 16, 32>}, {transform_indices = @transform_1, window_bounds = array<i64: 32, 64>}, {transform_indices = @transform_2, window_bounds = array<i64: 1, 64>}, {transform_indices = @transform_3, window_bounds = array<i64: 1, 32>}, {transform_indices = @transform_4, window_bounds = array<i64: 1, 32>}, {transform_indices = @transform_5, window_bounds = array<i64: 16, 64>}]} {
    %c0_i32 = arith.constant 0 : i32
    %0 = arith.cmpi eq, %arg2, %c0_i32 : i32
    %1 = arith.extui %0 : i1 to i32
    %c0_i32_0 = arith.constant 0 : i32
    %2 = arith.cmpi ne, %1, %c0_i32_0 : i32
    scf.if %2 {
      %cst_12 = arith.constant 0.000000e+00 : f32
      %15 = vector.broadcast %cst_12 : f32 to vector<16x64xf32>
      %c0_13 = arith.constant 0 : index
      %c0_14 = arith.constant 0 : index
      %16 = vector.load %arg9[%c0_13, %c0_14] : memref<16x64xf32, #tpu.memory_space<vmem>>, vector<16x64xf32>
      tpu.vector_store %arg9[%c0_13, %c0_14], %15 {strides = array<i32>} : memref<16x64xf32, #tpu.memory_space<vmem>>, vector<16x64xf32>,
    } else {
    }
    %c0_i32_1 = arith.constant 0 : i32
    %3 = arith.cmpi eq, %arg1, %c0_i32_1 : i32
    %4 = arith.extui %3 : i1 to i32
    %c0_i32_2 = arith.constant 0 : i32
    %5 = arith.cmpi ne, %4, %c0_i32_2 : i32
    scf.if %5 {
      %c0_12 = arith.constant 0 : index
      %c0_13 = arith.constant 0 : index
      %15 = vector.load %arg3[%c0_12, %c0_13] : memref<16x32xf32, #tpu.memory_space<vmem>>, vector<16x32xf32>
      %cst_14 = arith.constant dense<0.000000e+00> : vector<16xf32>
      %16 = vector.multi_reduction <add>, %15, %cst_14 [1] : vector<16x32xf32> to vector<16xf32>
      %17 = vector.shape_cast %16 : vector<16xf32> to vector<16x1xf32>
      %cst_15 = arith.constant 3.200000e+01 : f32
      %18 = vector.broadcast %cst_15 : f32 to vector<16x1xf32>
      %19 = arith.divf %17, %18 : vector<16x1xf32>
      %20 = vector.broadcast %19 : vector<16x1xf32> to vector<16x32xf32>
      %21 = arith.subf %15, %20 : vector<16x32xf32>
      %22 = arith.mulf %21, %21 : vector<16x32xf32>
      %cst_16 = arith.constant dense<0.000000e+00> : vector<16xf32>
      %23 = vector.multi_reduction <add>, %22, %cst_16 [1] : vector<16x32xf32> to vector<16xf32>
      %24 = vector.shape_cast %23 : vector<16xf32> to vector<16x1xf32>
      %cst_17 = arith.constant 3.100000e+01 : f32
      %25 = vector.broadcast %cst_17 : f32 to vector<16x1xf32>
      %26 = arith.divf %24, %25 : vector<16x1xf32>
      %27 = math.sqrt %26 : vector<16x1xf32>
      %cst_18 = arith.constant 9.99999997E-7 : f32
      %28 = vector.broadcast %cst_18 : f32 to vector<16x1xf32>
      %29 = arith.addf %27, %28 : vector<16x1xf32>
      %30 = tpu.reciprocal %29 {approx = true} : vector<16x1xf32> -> vector<16x1xf32>
      %c0_19 = arith.constant 0 : index
      %c0_20 = arith.constant 0 : index
      %31 = vector.load %arg6[%c0_19, %c0_20] : memref<1x32xf32, #tpu.memory_space<vmem>>, vector<1x32xf32>
      %32 = vector.broadcast %19 : vector<16x1xf32> to vector<16x32xf32>
      %33 = arith.subf %15, %32 : vector<16x32xf32>
      %34 = vector.broadcast %31 : vector<1x32xf32> to vector<16x32xf32>
      %35 = arith.mulf %34, %33 : vector<16x32xf32>
      %36 = vector.broadcast %30 : vector<16x1xf32> to vector<16x32xf32>
      %37 = arith.mulf %35, %36 : vector<16x32xf32>
      %c0_21 = arith.constant 0 : index
      %c0_22 = arith.constant 0 : index
      %38 = vector.load %arg7[%c0_21, %c0_22] : memref<1x32xf32, #tpu.memory_space<vmem>>, vector<1x32xf32>
      %39 = vector.broadcast %38 : vector<1x32xf32> to vector<16x32xf32>
      %40 = arith.addf %37, %39 : vector<16x32xf32>
      %41 = arith.truncf %40 : vector<16x32xf32> to vector<16x32xbf16>
      %c0_23 = arith.constant 0 : index
      %c0_24 = arith.constant 0 : index
      %42 = vector.load %arg10[%c0_23, %c0_24] : memref<16x32xbf16, #tpu.memory_space<vmem>>, vector<16x32xbf16>
      tpu.vector_store %arg10[%c0_23, %c0_24], %41 {strides = array<i32>} : memref<16x32xbf16, #tpu.memory_space<vmem>>, vector<16x32xbf16>,
    } else {
    }
    %c0 = arith.constant 0 : index
    %c0_3 = arith.constant 0 : index
    %6 = vector.load %arg10[%c0, %c0_3] : memref<16x32xbf16, #tpu.memory_space<vmem>>, vector<16x32xbf16>
    %c0_4 = arith.constant 0 : index
    %c0_5 = arith.constant 0 : index
    %7 = vector.load %arg9[%c0_4, %c0_5] : memref<16x64xf32, #tpu.memory_space<vmem>>, vector<16x64xf32>
    %c0_6 = arith.constant 0 : index
    %c0_7 = arith.constant 0 : index
    %8 = vector.load %arg4[%c0_6, %c0_7] : memref<32x64xbf16, #tpu.memory_space<vmem>>, vector<32x64xbf16>
    %cst = arith.constant dense<0.000000e+00> : vector<16x64xf32>
    %9 = tpu.matmul %6, %8, %cst {dimension_numbers = #tpu.dot_dimension_numbers<[1], [0], [0], [1], [0, 0, 1, 1], [], []>} : vector<16x32xbf16>, vector<32x64xbf16>, vector<16x64xf32> -> vector<16x64xf32>
    %10 = arith.addf %7, %9 : vector<16x64xf32>
    %c0_8 = arith.constant 0 : index
    %c0_9 = arith.constant 0 : index
    %11 = vector.load %arg9[%c0_8, %c0_9] : memref<16x64xf32, #tpu.memory_space<vmem>>, vector<16x64xf32>
    tpu.vector_store %arg9[%c0_8, %c0_9], %10 {strides = array<i32>} : memref<16x64xf32, #tpu.memory_space<vmem>>, vector<16x64xf32>,
    %c0_i32_10 = arith.constant 0 : i32
    %12 = arith.cmpi eq, %arg2, %c0_i32_10 : i32
    %13 = arith.extui %12 : i1 to i32
    %c0_i32_11 = arith.constant 0 : i32
    %14 = arith.cmpi ne, %13, %c0_i32_11 : i32
    scf.if %14 {
      %c0_12 = arith.constant 0 : index
      %c0_13 = arith.constant 0 : index
      %15 = vector.load %arg9[%c0_12, %c0_13] : memref<16x64xf32, #tpu.memory_space<vmem>>, vector<16x64xf32>
      %c0_14 = arith.constant 0 : index
      %c0_15 = arith.constant 0 : index
      %16 = vector.load %arg5[%c0_14, %c0_15] : memref<1x64xf32, #tpu.memory_space<vmem>>, vector<1x64xf32>
      %17 = vector.broadcast %16 : vector<1x64xf32> to vector<16x64xf32>
      %18 = arith.addf %15, %17 : vector<16x64xf32>
      %cst_16 = arith.constant 0.000000e+00 : f32
      %19 = vector.broadcast %cst_16 : f32 to vector<16x64xf32>
      %20 = arith.maximumf %18, %19 : vector<16x64xf32>
      %c0_17 = arith.constant 0 : index
      %c0_18 = arith.constant 0 : index
      %21 = vector.load %arg8[%c0_17, %c0_18] : memref<16x64xf32, #tpu.memory_space<vmem>>, vector<16x64xf32>
      tpu.vector_store %arg8[%c0_17, %c0_18], %20 {strides = array<i32>} : memref<16x64xf32, #tpu.memory_space<vmem>>, vector<16x64xf32>,
    } else {
    }
    return
  }
  func.func @transform_0(%arg0: i32, %arg1: i32, %arg2: i32) -> (i32, i32) {
    %c0_i32 = arith.constant 0 : i32
    return %arg0, %arg2 : i32, i32
  }
  func.func @transform_1(%arg0: i32, %arg1: i32, %arg2: i32) -> (i32, i32) {
    %c0_i32 = arith.constant 0 : i32
    return %arg2, %arg1 : i32, i32
  }
  func.func @transform_2(%arg0: i32, %arg1: i32, %arg2: i32) -> (i32, i32) {
    %c0_i32 = arith.constant 0 : i32
    %c0_i32_0 = arith.constant 0 : i32
    return %c0_i32, %arg1 : i32, i32
  }
  func.func @transform_3(%arg0: i32, %arg1: i32, %arg2: i32) -> (i32, i32) {
    %c0_i32 = arith.constant 0 : i32
    %c0_i32_0 = arith.constant 0 : i32
    return %c0_i32, %arg2 : i32, i32
  }
  func.func @transform_4(%arg0: i32, %arg1: i32, %arg2: i32) -> (i32, i32) {
    %c0_i32 = arith.constant 0 : i32
    %c0_i32_0 = arith.constant 0 : i32
    return %c0_i32, %arg2 : i32, i32
  }
  func.func @transform_5(%arg0: i32, %arg1: i32, %arg2: i32) -> (i32, i32) {
    %c0_i32 = arith.constant 0 : i32
    return %arg0, %arg1 : i32, i32
  }
}

module attributes {stable_mosaic.version = 11 : i64} {
  func.func @_cross_attn_kernel(%arg0: i32, %arg1: i32, %arg2: memref<1x8x32xf32, #tpu.memory_space<vmem>>, %arg3: memref<1x8x64xf32, #tpu.memory_space<vmem>>, %arg4: memref<1x8x8xi8, #tpu.memory_space<vmem>>, %arg5: memref<32x32xbf16, #tpu.memory_space<vmem>>, %arg6: memref<1x32xf32, #tpu.memory_space<vmem>>, %arg7: memref<1x8x32xf32, #tpu.memory_space<vmem>>, %arg8: memref<1x8x32xf32, #tpu.memory_space<vmem>>, %arg9: memref<8x32xbf16, #tpu.memory_space<vmem>>) attributes {dimension_semantics = [#tpu.dimension_semantics<parallel>, #tpu.dimension_semantics<parallel>], iteration_bounds = array<i64: 2, 1>, scalar_prefetch = 0 : i64, scratch_operands = 1 : i64, tpu.core_type = #tpu.core_type<tc>, window_params = [{transform_indices = @transform_0, window_bounds = array<i64: 1, 8, 32>}, {transform_indices = @transform_1, window_bounds = array<i64: 1, 8, 64>}, {transform_indices = @transform_2, window_bounds = array<i64: 1, 8, 8>}, {pipeline_mode = #tpu.pipeline_mode<synchronous>, transform_indices = @transform_3, window_bounds = array<i64: 32, 32>}, {pipeline_mode = #tpu.pipeline_mode<synchronous>, transform_indices = @transform_4, window_bounds = array<i64: 1, 32>}, {transform_indices = @transform_5, window_bounds = array<i64: 1, 8, 32>}, {transform_indices = @transform_6, window_bounds = array<i64: 1, 8, 32>}]} {
    %c0 = arith.constant 0 : index
    %c0_0 = arith.constant 0 : index
    %c0_1 = arith.constant 0 : index
    %0 = vector.load %arg3[%c0, %c0_0, %c0_1] : memref<1x8x64xf32, #tpu.memory_space<vmem>>, vector<1x8x64xf32>
    %1 = vector.shape_cast %0 : vector<1x8x64xf32> to vector<8x64xf32>
    %c0_2 = arith.constant 0 : index
    %c0_3 = arith.constant 0 : index
    %c0_4 = arith.constant 0 : index
    %2 = vector.load %arg4[%c0_2, %c0_3, %c0_4] : memref<1x8x8xi8, #tpu.memory_space<vmem>>, vector<1x8x8xi8>
    %3 = vector.shape_cast %2 : vector<1x8x8xi8> to vector<8x8xi8>
    %4 = arith.extsi %3 : vector<8x8xi8> to vector<8x8xi32>
    %c0_i32 = arith.constant 0 : i32
    %5 = vector.broadcast %c0_i32 : i32 to vector<8x8xi32>
    %6 = arith.cmpi ne, %4, %5 : vector<8x8xi32>
    %c0_5 = arith.constant 0 : index
    %c0_6 = arith.constant 0 : index
    %c0_7 = arith.constant 0 : index
    %7 = vector.load %arg2[%c0_5, %c0_6, %c0_7] : memref<1x8x32xf32, #tpu.memory_space<vmem>>, vector<1x8x32xf32>
    %8 = vector.shape_cast %7 : vector<1x8x32xf32> to vector<8x32xf32>
    %cst = arith.constant 0.353553385 : f32
    %9 = vector.broadcast %cst : f32 to vector<8x32xf32>
    %10 = arith.mulf %8, %9 : vector<8x32xf32>
    %11 = arith.truncf %10 : vector<8x32xf32> to vector<8x32xbf16>
    %12 = vector.extract_strided_slice %1 {offsets = [0, 0], sizes = [8, 32], strides = [1, 1]} : vector<8x64xf32> to vector<8x32xf32>
    %13 = arith.truncf %12 : vector<8x32xf32> to vector<8x32xbf16>
    %14 = vector.extract_strided_slice %1 {offsets = [0, 32], sizes = [8, 32], strides = [1, 1]} : vector<8x64xf32> to vector<8x32xf32>
    %15 = arith.truncf %14 : vector<8x32xf32> to vector<8x32xbf16>
    %16 = vector.extract_strided_slice %11 {offsets = [0, 0], sizes = [8, 8], strides = [1, 1]} : vector<8x32xbf16> to vector<8x8xbf16>
    %17 = vector.extract_strided_slice %13 {offsets = [0, 0], sizes = [8, 8], strides = [1, 1]} : vector<8x32xbf16> to vector<8x8xbf16>
    %cst_8 = arith.constant dense<0.000000e+00> : vector<8x8xf32>
    %18 = tpu.matmul %16, %17, %cst_8 {dimension_numbers = #tpu.dot_dimension_numbers<[1], [1], [0], [0], [0, 0, 1, 0], [], []>} : vector<8x8xbf16>, vector<8x8xbf16>, vector<8x8xf32> -> vector<8x8xf32>
    %cst_9 = arith.constant -1.000000e+09 : f32
    %19 = vector.broadcast %cst_9 : f32 to vector<8x8xf32>
    %20 = arith.select %6, %18, %19 : vector<8x8xi1>, vector<8x8xf32>
    %cst_10 = arith.constant dense<0xFF800000> : vector<8xf32>
    %21 = vector.multi_reduction <maximumf>, %20, %cst_10 [1] : vector<8x8xf32> to vector<8xf32>
    %22 = vector.shape_cast %21 : vector<8xf32> to vector<8x1xf32>
    %23 = vector.broadcast %22 : vector<8x1xf32> to vector<8x8xf32>
    %24 = arith.subf %20, %23 : vector<8x8xf32>
    %25 = math.exp %24 : vector<8x8xf32>
    %cst_11 = arith.constant dense<0.000000e+00> : vector<8xf32>
    %26 = vector.multi_reduction <add>, %25, %cst_11 [1] : vector<8x8xf32> to vector<8xf32>
    %27 = vector.shape_cast %26 : vector<8xf32> to vector<8x1xf32>
    %28 = tpu.reciprocal %27 {approx = true} : vector<8x1xf32> -> vector<8x1xf32>
    %29 = vector.broadcast %28 : vector<8x1xf32> to vector<8x8xf32>
    %30 = arith.mulf %25, %29 : vector<8x8xf32>
    %31 = arith.truncf %30 : vector<8x8xf32> to vector<8x8xbf16>
    %32 = vector.extract_strided_slice %15 {offsets = [0, 0], sizes = [8, 8], strides = [1, 1]} : vector<8x32xbf16> to vector<8x8xbf16>
    %cst_12 = arith.constant dense<0.000000e+00> : vector<8x8xf32>
    %33 = tpu.matmul %31, %32, %cst_12 {dimension_numbers = #tpu.dot_dimension_numbers<[1], [0], [0], [1], [0, 0, 1, 1], [], []>} : vector<8x8xbf16>, vector<8x8xbf16>, vector<8x8xf32> -> vector<8x8xf32>
    %34 = arith.truncf %33 : vector<8x8xf32> to vector<8x8xbf16>
    %c0_13 = arith.constant 0 : index
    %c0_14 = arith.constant 0 : index
    %35 = vector.load %arg9[%c0_13, %c0_14] : memref<8x32xbf16, #tpu.memory_space<vmem>>, vector<8x8xbf16>
    tpu.vector_store %arg9[%c0_13, %c0_14], %34 {strides = array<i32>} : memref<8x32xbf16, #tpu.memory_space<vmem>>, vector<8x8xbf16>,
    %36 = vector.extract_strided_slice %11 {offsets = [0, 8], sizes = [8, 8], strides = [1, 1]} : vector<8x32xbf16> to vector<8x8xbf16>
    %37 = vector.extract_strided_slice %13 {offsets = [0, 8], sizes = [8, 8], strides = [1, 1]} : vector<8x32xbf16> to vector<8x8xbf16>
    %cst_15 = arith.constant dense<0.000000e+00> : vector<8x8xf32>
    %38 = tpu.matmul %36, %37, %cst_15 {dimension_numbers = #tpu.dot_dimension_numbers<[1], [1], [0], [0], [0, 0, 1, 0], [], []>} : vector<8x8xbf16>, vector<8x8xbf16>, vector<8x8xf32> -> vector<8x8xf32>
    %cst_16 = arith.constant -1.000000e+09 : f32
    %39 = vector.broadcast %cst_16 : f32 to vector<8x8xf32>
    %40 = arith.select %6, %38, %39 : vector<8x8xi1>, vector<8x8xf32>
    %cst_17 = arith.constant dense<0xFF800000> : vector<8xf32>
    %41 = vector.multi_reduction <maximumf>, %40, %cst_17 [1] : vector<8x8xf32> to vector<8xf32>
    %42 = vector.shape_cast %41 : vector<8xf32> to vector<8x1xf32>
    %43 = vector.broadcast %42 : vector<8x1xf32> to vector<8x8xf32>
    %44 = arith.subf %40, %43 : vector<8x8xf32>
    %45 = math.exp %44 : vector<8x8xf32>
    %cst_18 = arith.constant dense<0.000000e+00> : vector<8xf32>
    %46 = vector.multi_reduction <add>, %45, %cst_18 [1] : vector<8x8xf32> to vector<8xf32>
    %47 = vector.shape_cast %46 : vector<8xf32> to vector<8x1xf32>
    %48 = tpu.reciprocal %47 {approx = true} : vector<8x1xf32> -> vector<8x1xf32>
    %49 = vector.broadcast %48 : vector<8x1xf32> to vector<8x8xf32>
    %50 = arith.mulf %45, %49 : vector<8x8xf32>
    %51 = arith.truncf %50 : vector<8x8xf32> to vector<8x8xbf16>
    %52 = vector.extract_strided_slice %15 {offsets = [0, 8], sizes = [8, 8], strides = [1, 1]} : vector<8x32xbf16> to vector<8x8xbf16>
    %cst_19 = arith.constant dense<0.000000e+00> : vector<8x8xf32>
    %53 = tpu.matmul %51, %52, %cst_19 {dimension_numbers = #tpu.dot_dimension_numbers<[1], [0], [0], [1], [0, 0, 1, 1], [], []>} : vector<8x8xbf16>, vector<8x8xbf16>, vector<8x8xf32> -> vector<8x8xf32>
    %54 = arith.truncf %53 : vector<8x8xf32> to vector<8x8xbf16>
    %c0_20 = arith.constant 0 : index
    %c8 = arith.constant 8 : index
    %55 = vector.load %arg9[%c0_20, %c8] : memref<8x32xbf16, #tpu.memory_space<vmem>>, vector<8x8xbf16>
    tpu.vector_store %arg9[%c0_20, %c8], %54 {strides = array<i32>} : memref<8x32xbf16, #tpu.memory_space<vmem>>, vector<8x8xbf16>,
    %56 = vector.extract_strided_slice %11 {offsets = [0, 16], sizes = [8, 8], strides = [1, 1]} : vector<8x32xbf16> to vector<8x8xbf16>
    %57 = vector.extract_strided_slice %13 {offsets = [0, 16], sizes = [8, 8], strides = [1, 1]} : vector<8x32xbf16> to vector<8x8xbf16>
    %cst_21 = arith.constant dense<0.000000e+00> : vector<8x8xf32>
    %58 = tpu.matmul %56, %57, %cst_21 {dimension_numbers = #tpu.dot_dimension_numbers<[1], [1], [0], [0], [0, 0, 1, 0], [], []>} : vector<8x8xbf16>, vector<8x8xbf16>, vector<8x8xf32> -> vector<8x8xf32>
    %cst_22 = arith.constant -1.000000e+09 : f32
    %59 = vector.broadcast %cst_22 : f32 to vector<8x8xf32>
    %60 = arith.select %6, %58, %59 : vector<8x8xi1>, vector<8x8xf32>
    %cst_23 = arith.constant dense<0xFF800000> : vector<8xf32>
    %61 = vector.multi_reduction <maximumf>, %60, %cst_23 [1] : vector<8x8xf32> to vector<8xf32>
    %62 = vector.shape_cast %61 : vector<8xf32> to vector<8x1xf32>
    %63 = vector.broadcast %62 : vector<8x1xf32> to vector<8x8xf32>
    %64 = arith.subf %60, %63 : vector<8x8xf32>
    %65 = math.exp %64 : vector<8x8xf32>
    %cst_24 = arith.constant dense<0.000000e+00> : vector<8xf32>
    %66 = vector.multi_reduction <add>, %65, %cst_24 [1] : vector<8x8xf32> to vector<8xf32>
    %67 = vector.shape_cast %66 : vector<8xf32> to vector<8x1xf32>
    %68 = tpu.reciprocal %67 {approx = true} : vector<8x1xf32> -> vector<8x1xf32>
    %69 = vector.broadcast %68 : vector<8x1xf32> to vector<8x8xf32>
    %70 = arith.mulf %65, %69 : vector<8x8xf32>
    %71 = arith.truncf %70 : vector<8x8xf32> to vector<8x8xbf16>
    %72 = vector.extract_strided_slice %15 {offsets = [0, 16], sizes = [8, 8], strides = [1, 1]} : vector<8x32xbf16> to vector<8x8xbf16>
    %cst_25 = arith.constant dense<0.000000e+00> : vector<8x8xf32>
    %73 = tpu.matmul %71, %72, %cst_25 {dimension_numbers = #tpu.dot_dimension_numbers<[1], [0], [0], [1], [0, 0, 1, 1], [], []>} : vector<8x8xbf16>, vector<8x8xbf16>, vector<8x8xf32> -> vector<8x8xf32>
    %74 = arith.truncf %73 : vector<8x8xf32> to vector<8x8xbf16>
    %c0_26 = arith.constant 0 : index
    %c16 = arith.constant 16 : index
    %75 = vector.load %arg9[%c0_26, %c16] : memref<8x32xbf16, #tpu.memory_space<vmem>>, vector<8x8xbf16>
    tpu.vector_store %arg9[%c0_26, %c16], %74 {strides = array<i32>} : memref<8x32xbf16, #tpu.memory_space<vmem>>, vector<8x8xbf16>,
    %76 = vector.extract_strided_slice %11 {offsets = [0, 24], sizes = [8, 8], strides = [1, 1]} : vector<8x32xbf16> to vector<8x8xbf16>
    %77 = vector.extract_strided_slice %13 {offsets = [0, 24], sizes = [8, 8], strides = [1, 1]} : vector<8x32xbf16> to vector<8x8xbf16>
    %cst_27 = arith.constant dense<0.000000e+00> : vector<8x8xf32>
    %78 = tpu.matmul %76, %77, %cst_27 {dimension_numbers = #tpu.dot_dimension_numbers<[1], [1], [0], [0], [0, 0, 1, 0], [], []>} : vector<8x8xbf16>, vector<8x8xbf16>, vector<8x8xf32> -> vector<8x8xf32>
    %cst_28 = arith.constant -1.000000e+09 : f32
    %79 = vector.broadcast %cst_28 : f32 to vector<8x8xf32>
    %80 = arith.select %6, %78, %79 : vector<8x8xi1>, vector<8x8xf32>
    %cst_29 = arith.constant dense<0xFF800000> : vector<8xf32>
    %81 = vector.multi_reduction <maximumf>, %80, %cst_29 [1] : vector<8x8xf32> to vector<8xf32>
    %82 = vector.shape_cast %81 : vector<8xf32> to vector<8x1xf32>
    %83 = vector.broadcast %82 : vector<8x1xf32> to vector<8x8xf32>
    %84 = arith.subf %80, %83 : vector<8x8xf32>
    %85 = math.exp %84 : vector<8x8xf32>
    %cst_30 = arith.constant dense<0.000000e+00> : vector<8xf32>
    %86 = vector.multi_reduction <add>, %85, %cst_30 [1] : vector<8x8xf32> to vector<8xf32>
    %87 = vector.shape_cast %86 : vector<8xf32> to vector<8x1xf32>
    %88 = tpu.reciprocal %87 {approx = true} : vector<8x1xf32> -> vector<8x1xf32>
    %89 = vector.broadcast %88 : vector<8x1xf32> to vector<8x8xf32>
    %90 = arith.mulf %85, %89 : vector<8x8xf32>
    %91 = arith.truncf %90 : vector<8x8xf32> to vector<8x8xbf16>
    %92 = vector.extract_strided_slice %15 {offsets = [0, 24], sizes = [8, 8], strides = [1, 1]} : vector<8x32xbf16> to vector<8x8xbf16>
    %cst_31 = arith.constant dense<0.000000e+00> : vector<8x8xf32>
    %93 = tpu.matmul %91, %92, %cst_31 {dimension_numbers = #tpu.dot_dimension_numbers<[1], [0], [0], [1], [0, 0, 1, 1], [], []>} : vector<8x8xbf16>, vector<8x8xbf16>, vector<8x8xf32> -> vector<8x8xf32>
    %94 = arith.truncf %93 : vector<8x8xf32> to vector<8x8xbf16>
    %c0_32 = arith.constant 0 : index
    %c24 = arith.constant 24 : index
    %95 = vector.load %arg9[%c0_32, %c24] : memref<8x32xbf16, #tpu.memory_space<vmem>>, vector<8x8xbf16>
    tpu.vector_store %arg9[%c0_32, %c24], %94 {strides = array<i32>} : memref<8x32xbf16, #tpu.memory_space<vmem>>, vector<8x8xbf16>,
    %c0_33 = arith.constant 0 : index
    %c0_34 = arith.constant 0 : index
    %c0_35 = arith.constant 0 : index
    %96 = vector.load %arg7[%c0_33, %c0_34, %c0_35] : memref<1x8x32xf32, #tpu.memory_space<vmem>>, vector<1x8x32xf32>
    %97 = vector.shape_cast %96 : vector<1x8x32xf32> to vector<8x32xf32>
    %c0_36 = arith.constant 0 : index
    %c0_37 = arith.constant 0 : index
    %98 = vector.load %arg9[%c0_36, %c0_37] : memref<8x32xbf16, #tpu.memory_space<vmem>>, vector<8x32xbf16>
    %c0_38 = arith.constant 0 : index
    %c0_39 = arith.constant 0 : index
    %99 = vector.load %arg5[%c0_38, %c0_39] : memref<32x32xbf16, #tpu.memory_space<vmem>>, vector<32x32xbf16>
    %cst_40 = arith.constant dense<0.000000e+00> : vector<8x32xf32>
    %100 = tpu.matmul %98, %99, %cst_40 {dimension_numbers = #tpu.dot_dimension_numbers<[1], [0], [0], [1], [0, 0, 1, 1], [], []>} : vector<8x32xbf16>, vector<32x32xbf16>, vector<8x32xf32> -> vector<8x32xf32>
    %c0_41 = arith.constant 0 : index
    %c0_42 = arith.constant 0 : index
    %101 = vector.load %arg6[%c0_41, %c0_42] : memref<1x32xf32, #tpu.memory_space<vmem>>, vector<1x32xf32>
    %102 = vector.broadcast %101 : vector<1x32xf32> to vector<8x32xf32>
    %103 = arith.addf %100, %102 : vector<8x32xf32>
    %104 = arith.addf %103, %97 : vector<8x32xf32>
    %c0_43 = arith.constant 0 : index
    %c0_44 = arith.constant 0 : index
    %c0_45 = arith.constant 0 : index
    %105 = vector.load %arg8[%c0_43, %c0_44, %c0_45] : memref<1x8x32xf32, #tpu.memory_space<vmem>>, vector<1x8x32xf32>
    %106 = vector.shape_cast %105 : vector<1x8x32xf32> to vector<8x32xf32>
    %107 = vector.shape_cast %104 : vector<8x32xf32> to vector<1x8x32xf32>
    tpu.vector_store %arg8[%c0_43, %c0_44, %c0_45], %107 {strides = array<i32>} : memref<1x8x32xf32, #tpu.memory_space<vmem>>, vector<1x8x32xf32>,
    return
  }
  func.func @transform_0(%arg0: i32, %arg1: i32) -> (i32, i32, i32) {
    %c0_i32 = arith.constant 0 : i32
    %c0_i32_0 = arith.constant 0 : i32
    return %arg0, %arg1, %c0_i32 : i32, i32, i32
  }
  func.func @transform_1(%arg0: i32, %arg1: i32) -> (i32, i32, i32) {
    %c0_i32 = arith.constant 0 : i32
    %c0_i32_0 = arith.constant 0 : i32
    %c0_i32_1 = arith.constant 0 : i32
    return %arg0, %c0_i32, %c0_i32_0 : i32, i32, i32
  }
  func.func @transform_2(%arg0: i32, %arg1: i32) -> (i32, i32, i32) {
    %c0_i32 = arith.constant 0 : i32
    %c0_i32_0 = arith.constant 0 : i32
    return %arg0, %arg1, %c0_i32 : i32, i32, i32
  }
  func.func @transform_3(%arg0: i32, %arg1: i32) -> (i32, i32) {
    %c0_i32 = arith.constant 0 : i32
    %c0_i32_0 = arith.constant 0 : i32
    %c0_i32_1 = arith.constant 0 : i32
    return %c0_i32, %c0_i32_0 : i32, i32
  }
  func.func @transform_4(%arg0: i32, %arg1: i32) -> (i32, i32) {
    %c0_i32 = arith.constant 0 : i32
    %c0_i32_0 = arith.constant 0 : i32
    %c0_i32_1 = arith.constant 0 : i32
    return %c0_i32, %c0_i32_0 : i32, i32
  }
  func.func @transform_5(%arg0: i32, %arg1: i32) -> (i32, i32, i32) {
    %c0_i32 = arith.constant 0 : i32
    %c0_i32_0 = arith.constant 0 : i32
    return %arg0, %arg1, %c0_i32 : i32, i32, i32
  }
  func.func @transform_6(%arg0: i32, %arg1: i32) -> (i32, i32, i32) {
    %c0_i32 = arith.constant 0 : i32
    %c0_i32_0 = arith.constant 0 : i32
    return %arg0, %arg1, %c0_i32 : i32, i32, i32
  }
}

module attributes {stable_mosaic.version = 11 : i64} {
  func.func @_mm_kernel(%arg0: i32, %arg1: i32, %arg2: i32, %arg3: memref<16x64xf32, #tpu.memory_space<vmem>>, %arg4: memref<64x32xbf16, #tpu.memory_space<vmem>>, %arg5: memref<1x32xf32, #tpu.memory_space<vmem>>, %arg6: memref<16x32xf32, #tpu.memory_space<vmem>>, %arg7: memref<16x32xf32, #tpu.memory_space<vmem>>, %arg8: memref<16x32xf32, #tpu.memory_space<vmem>>) attributes {dimension_semantics = [#tpu.dimension_semantics<parallel>, #tpu.dimension_semantics<parallel>, #tpu.dimension_semantics<arbitrary>], iteration_bounds = array<i64: 1, 1, 1>, scalar_prefetch = 0 : i64, scratch_operands = 1 : i64, tpu.core_type = #tpu.core_type<tc>, window_params = [{transform_indices = @transform_0, window_bounds = array<i64: 16, 64>}, {transform_indices = @transform_1, window_bounds = array<i64: 64, 32>}, {transform_indices = @transform_2, window_bounds = array<i64: 1, 32>}, {transform_indices = @transform_3, window_bounds = array<i64: 16, 32>}, {transform_indices = @transform_4, window_bounds = array<i64: 16, 32>}]} {
    %c0_i32 = arith.constant 0 : i32
    %0 = arith.cmpi eq, %arg2, %c0_i32 : i32
    %1 = arith.extui %0 : i1 to i32
    %c0_i32_0 = arith.constant 0 : i32
    %2 = arith.cmpi ne, %1, %c0_i32_0 : i32
    scf.if %2 {
      %cst_10 = arith.constant 0.000000e+00 : f32
      %13 = vector.broadcast %cst_10 : f32 to vector<16x32xf32>
      %c0_11 = arith.constant 0 : index
      %c0_12 = arith.constant 0 : index
      %14 = vector.load %arg8[%c0_11, %c0_12] : memref<16x32xf32, #tpu.memory_space<vmem>>, vector<16x32xf32>
      tpu.vector_store %arg8[%c0_11, %c0_12], %13 {strides = array<i32>} : memref<16x32xf32, #tpu.memory_space<vmem>>, vector<16x32xf32>,
    } else {
    }
    %c0 = arith.constant 0 : index
    %c0_1 = arith.constant 0 : index
    %3 = vector.load %arg3[%c0, %c0_1] : memref<16x64xf32, #tpu.memory_space<vmem>>, vector<16x64xf32>
    %4 = arith.truncf %3 : vector<16x64xf32> to vector<16x64xbf16>
    %c0_2 = arith.constant 0 : index
    %c0_3 = arith.constant 0 : index
    %5 = vector.load %arg8[%c0_2, %c0_3] : memref<16x32xf32, #tpu.memory_space<vmem>>, vector<16x32xf32>
    %c0_4 = arith.constant 0 : index
    %c0_5 = arith.constant 0 : index
    %6 = vector.load %arg4[%c0_4, %c0_5] : memref<64x32xbf16, #tpu.memory_space<vmem>>, vector<64x32xbf16>
    %cst = arith.constant dense<0.000000e+00> : vector<16x32xf32>
    %7 = tpu.matmul %4, %6, %cst {dimension_numbers = #tpu.dot_dimension_numbers<[1], [0], [0], [1], [0, 0, 1, 1], [], []>} : vector<16x64xbf16>, vector<64x32xbf16>, vector<16x32xf32> -> vector<16x32xf32>
    %8 = arith.addf %5, %7 : vector<16x32xf32>
    %c0_6 = arith.constant 0 : index
    %c0_7 = arith.constant 0 : index
    %9 = vector.load %arg8[%c0_6, %c0_7] : memref<16x32xf32, #tpu.memory_space<vmem>>, vector<16x32xf32>
    tpu.vector_store %arg8[%c0_6, %c0_7], %8 {strides = array<i32>} : memref<16x32xf32, #tpu.memory_space<vmem>>, vector<16x32xf32>,
    %c0_i32_8 = arith.constant 0 : i32
    %10 = arith.cmpi eq, %arg2, %c0_i32_8 : i32
    %11 = arith.extui %10 : i1 to i32
    %c0_i32_9 = arith.constant 0 : i32
    %12 = arith.cmpi ne, %11, %c0_i32_9 : i32
    scf.if %12 {
      %c0_10 = arith.constant 0 : index
      %c0_11 = arith.constant 0 : index
      %13 = vector.load %arg8[%c0_10, %c0_11] : memref<16x32xf32, #tpu.memory_space<vmem>>, vector<16x32xf32>
      %c0_12 = arith.constant 0 : index
      %c0_13 = arith.constant 0 : index
      %14 = vector.load %arg5[%c0_12, %c0_13] : memref<1x32xf32, #tpu.memory_space<vmem>>, vector<1x32xf32>
      %15 = vector.broadcast %14 : vector<1x32xf32> to vector<16x32xf32>
      %16 = arith.addf %13, %15 : vector<16x32xf32>
      %c0_14 = arith.constant 0 : index
      %c0_15 = arith.constant 0 : index
      %17 = vector.load %arg6[%c0_14, %c0_15] : memref<16x32xf32, #tpu.memory_space<vmem>>, vector<16x32xf32>
      %18 = arith.addf %16, %17 : vector<16x32xf32>
      %c0_16 = arith.constant 0 : index
      %c0_17 = arith.constant 0 : index
      %19 = vector.load %arg7[%c0_16, %c0_17] : memref<16x32xf32, #tpu.memory_space<vmem>>, vector<16x32xf32>
      tpu.vector_store %arg7[%c0_16, %c0_17], %18 {strides = array<i32>} : memref<16x32xf32, #tpu.memory_space<vmem>>, vector<16x32xf32>,
    } else {
    }
    return
  }
  func.func @transform_0(%arg0: i32, %arg1: i32, %arg2: i32) -> (i32, i32) {
    %c0_i32 = arith.constant 0 : i32
    return %arg0, %arg2 : i32, i32
  }
  func.func @transform_1(%arg0: i32, %arg1: i32, %arg2: i32) -> (i32, i32) {
    %c0_i32 = arith.constant 0 : i32
    return %arg2, %arg1 : i32, i32
  }
  func.func @transform_2(%arg0: i32, %arg1: i32, %arg2: i32) -> (i32, i32) {
    %c0_i32 = arith.constant 0 : i32
    %c0_i32_0 = arith.constant 0 : i32
    return %c0_i32, %arg1 : i32, i32
  }
  func.func @transform_3(%arg0: i32, %arg1: i32, %arg2: i32) -> (i32, i32) {
    %c0_i32 = arith.constant 0 : i32
    return %arg0, %arg1 : i32, i32
  }
  func.func @transform_4(%arg0: i32, %arg1: i32, %arg2: i32) -> (i32, i32) {
    %c0_i32 = arith.constant 0 : i32
    return %arg0, %arg1 : i32, i32
  }
}

module attributes {stable_mosaic.version = 11 : i64} {
  func.func @_ln_kernel(%arg0: i32, %arg1: memref<16x32xf32, #tpu.memory_space<vmem>>, %arg2: memref<1x32xf32, #tpu.memory_space<vmem>>, %arg3: memref<1x32xf32, #tpu.memory_space<vmem>>, %arg4: memref<16x32xf32, #tpu.memory_space<vmem>>) attributes {dimension_semantics = [#tpu.dimension_semantics<parallel>], iteration_bounds = array<i64: 1>, scalar_prefetch = 0 : i64, scratch_operands = 0 : i64, tpu.core_type = #tpu.core_type<tc>, window_params = [{transform_indices = @transform_0, window_bounds = array<i64: 16, 32>}, {pipeline_mode = #tpu.pipeline_mode<synchronous>, transform_indices = @transform_1, window_bounds = array<i64: 1, 32>}, {pipeline_mode = #tpu.pipeline_mode<synchronous>, transform_indices = @transform_2, window_bounds = array<i64: 1, 32>}, {transform_indices = @transform_3, window_bounds = array<i64: 16, 32>}]} {
    %c0 = arith.constant 0 : index
    %c0_0 = arith.constant 0 : index
    %0 = vector.load %arg1[%c0, %c0_0] : memref<16x32xf32, #tpu.memory_space<vmem>>, vector<16x32xf32>
    %cst = arith.constant dense<0.000000e+00> : vector<16xf32>
    %1 = vector.multi_reduction <add>, %0, %cst [1] : vector<16x32xf32> to vector<16xf32>
    %2 = vector.shape_cast %1 : vector<16xf32> to vector<16x1xf32>
    %cst_1 = arith.constant 3.200000e+01 : f32
    %3 = vector.broadcast %cst_1 : f32 to vector<16x1xf32>
    %4 = arith.divf %2, %3 : vector<16x1xf32>
    %5 = vector.broadcast %4 : vector<16x1xf32> to vector<16x32xf32>
    %6 = arith.subf %0, %5 : vector<16x32xf32>
    %7 = arith.mulf %6, %6 : vector<16x32xf32>
    %cst_2 = arith.constant dense<0.000000e+00> : vector<16xf32>
    %8 = vector.multi_reduction <add>, %7, %cst_2 [1] : vector<16x32xf32> to vector<16xf32>
    %9 = vector.shape_cast %8 : vector<16xf32> to vector<16x1xf32>
    %cst_3 = arith.constant 3.100000e+01 : f32
    %10 = vector.broadcast %cst_3 : f32 to vector<16x1xf32>
    %11 = arith.divf %9, %10 : vector<16x1xf32>
    %12 = math.sqrt %11 : vector<16x1xf32>
    %cst_4 = arith.constant 9.99999997E-7 : f32
    %13 = vector.broadcast %cst_4 : f32 to vector<16x1xf32>
    %14 = arith.addf %12, %13 : vector<16x1xf32>
    %15 = tpu.reciprocal %14 {approx = true} : vector<16x1xf32> -> vector<16x1xf32>
    %c0_5 = arith.constant 0 : index
    %c0_6 = arith.constant 0 : index
    %16 = vector.load %arg2[%c0_5, %c0_6] : memref<1x32xf32, #tpu.memory_space<vmem>>, vector<1x32xf32>
    %17 = vector.broadcast %4 : vector<16x1xf32> to vector<16x32xf32>
    %18 = arith.subf %0, %17 : vector<16x32xf32>
    %19 = vector.broadcast %16 : vector<1x32xf32> to vector<16x32xf32>
    %20 = arith.mulf %19, %18 : vector<16x32xf32>
    %21 = vector.broadcast %15 : vector<16x1xf32> to vector<16x32xf32>
    %22 = arith.mulf %20, %21 : vector<16x32xf32>
    %c0_7 = arith.constant 0 : index
    %c0_8 = arith.constant 0 : index
    %23 = vector.load %arg3[%c0_7, %c0_8] : memref<1x32xf32, #tpu.memory_space<vmem>>, vector<1x32xf32>
    %24 = vector.broadcast %23 : vector<1x32xf32> to vector<16x32xf32>
    %25 = arith.addf %22, %24 : vector<16x32xf32>
    %c0_9 = arith.constant 0 : index
    %c0_10 = arith.constant 0 : index
    %26 = vector.load %arg4[%c0_9, %c0_10] : memref<16x32xf32, #tpu.memory_space<vmem>>, vector<16x32xf32>
    tpu.vector_store %arg4[%c0_9, %c0_10], %25 {strides = array<i32>} : memref<16x32xf32, #tpu.memory_space<vmem>>, vector<16x32xf32>,
    return
  }
  func.func @transform_0(%arg0: i32) -> (i32, i32) {
    %c0_i32 = arith.constant 0 : i32
    %c0_i32_0 = arith.constant 0 : i32
    return %arg0, %c0_i32 : i32, i32
  }
  func.func @transform_1(%arg0: i32) -> (i32, i32) {
    %c0_i32 = arith.constant 0 : i32
    %c0_i32_0 = arith.constant 0 : i32
    %c0_i32_1 = arith.constant 0 : i32
    return %c0_i32, %c0_i32_0 : i32, i32
  }
  func.func @transform_2(%arg0: i32) -> (i32, i32) {
    %c0_i32 = arith.constant 0 : i32
    %c0_i32_0 = arith.constant 0 : i32
    %c0_i32_1 = arith.constant 0 : i32
    return %c0_i32, %c0_i32_0 : i32, i32
  }
  func.func @transform_3(%arg0: i32) -> (i32, i32) {
    %c0_i32 = arith.constant 0 : i32
    %c0_i32_0 = arith.constant 0 : i32
    return %arg0, %c0_i32 : i32, i32
  }
}

</mosaic_0001>

<llo_original>
// kernel: decoder_forward.17
$region0: #{decoder_forward.17}
  #allocation0 [shape = 'u32[]', space=smem, size = 0x4, offset = 0x4, fixed_abs, tag = 'smem constant byte address 0x4 - core index']
  #allocation1 [shape = 'u32[144,128]{1,0:T(1,128)}', space=vmem, size = 0x12000, scoped, tag = 'internal scratch']
  #allocation2 [shape = 'f32[16,32]{1,0:T(8,128)}', space=vmem, size = 0x2000, scoped, tag = 'scratch operand']
  #allocation3 [shape = 'bf16[16,32]{1,0:T(16,128)(2,1)}', space=vmem, size = 0x1000, scoped, tag = 'scratch operand']
  %s0 = inlined_call_operand.vmem [shape: f32[16,32], index: 0, kind: input, shape index: {}]
  %s1 = inlined_call_operand.vmem [shape: bf16[32,32], index: 1, kind: input, shape index: {}]
  %s2 = inlined_call_operand.vmem [shape: f32[1,32], index: 2, kind: input, shape index: {}]
  %s3 = inlined_call_operand.vmem [shape: f32[1,32], index: 3, kind: input, shape index: {}]
  %s4 = inlined_call_operand.vmem [shape: f32[1,32], index: 4, kind: input, shape index: {}]
  %s5 = inlined_call_operand.vmem [shape: f32[16,32], index: 5, kind: output, shape index: {}]
  %s6 = sld [smem:[#allocation0]]
  $region42: #{decoder_forward.17} parent=0
    _
  %s8 = ssub.s32 1, %s6
  %s9 = scalar_select 0, %s8, %s6
  // Predicated region
  $region2: #{decoder_forward.17} parent=0 // pred_check
    _
  $region3: #{decoder_forward.17} parent=0 // pred_check_branch
    %11 = sbr.rel (0) target = $region5
  $region4: #{decoder_forward.17} parent=0 // pred_region
    _
  $region5: #{decoder_forward.17} parent=0 // pred_fallthru
    _
  // Predicated region
  $region6: #{decoder_forward.17} parent=0 // pred_check
    _
  $region7: #{decoder_forward.17} parent=0 // pred_check_branch
    %13 = sbr.rel (0) target = $region9
  $region8: #{decoder_forward.17} parent=0 // pred_region
    _
  $region9: #{decoder_forward.17} parent=0 // pred_fallthru
    _
  // Predicated region
  $region10: #{decoder_forward.17} parent=0 // pred_check
    _
  $region11: #{decoder_forward.17} parent=0 // pred_check_branch
    %15 = sbr.rel (0) target = $region13
  $region12: #{decoder_forward.17} parent=0 // pred_region
    _
  $region13: #{decoder_forward.17} parent=0 // pred_fallthru
    _
  // Predicated region
  $region14: #{decoder_forward.17} parent=0 // pred_check
    _
  $region15: #{decoder_forward.17} parent=0 // pred_check_branch
    %17 = sbr.rel (0) target = $region17
  $region16: #{decoder_forward.17} parent=0 // pred_region
    _
  $region17: #{decoder_forward.17} parent=0 // pred_fallthru
    _
  // Predicated region
  $region18: #{decoder_forward.17} parent=0 // pred_check
    _
  $region19: #{decoder_forward.17} parent=0 // pred_check_branch
    %19 = sbr.rel (0) target = $region21
  $region20: #{decoder_forward.17} parent=0 // pred_region
    _
  $region21: #{decoder_forward.17} parent=0 // pred_fallthru
    _
  %p21 = scmp.eq.s32.totalorder 0, 0
  // Predicated region
  $region22: #{decoder_forward.17} parent=0 // pred_check
    %p22 = pneg %p21
  $region23: #{decoder_forward.17} parent=0 // pred_check_branch
    %24 = sbr.rel (%p22) target = $region25
  $region24: #{decoder_forward.17} parent=0 // pred_region
    %vm25 = vcmask 261120
    %26 = vst.msk [vmem:[#allocation2] sm:$0xff] %vm25, 0.0
    %27 = vst.msk [vmem:[#allocation2 + $0x8] sm:$0xff] %vm25, 0.0
  $region25: #{decoder_forward.17} parent=0 // pred_fallthru
    _
  %p28 = scmp.eq.s32.totalorder 0, 0
  // Predicated region
  $region26: #{decoder_forward.17} parent=0 // pred_check
    %p29 = pneg %p28
  $region27: #{decoder_forward.17} parent=0 // pred_check_branch
    %31 = sbr.rel (%p29) target = $region29
  $region28: #{decoder_forward.17} parent=0 // pred_region
    %v32 = vld [vmem:[%s0] sm:$0xff]
    %v33 = vld [vmem:[%s0 + $0x8] sm:$0xff]
    %vm34 = vcmask 261120
    %v35 = vsel %vm34, %v32, 0.0
    %36 = vadd.xlane.f32.xlu0 %v35
    %v37 = vpop.xlane.xlu0 %36
    %v38 = vsel %vm34, %v33, 0.0
    %39 = vadd.xlane.f32.xlu0 %v38
    %v40 = vpop.xlane.xlu0 %39
    %v41 = vrcp.pop 32.0
    %v42 = vmul.f32 %v37, %v41
    %v43 = vmul.f32 %v40, %v41
    %v44 = vsub.f32 %v32, %v42
    %v45 = vsub.f32 %v33, %v43
    %v46 = vmul.f32 %v44, %v44
    %v47 = vmul.f32 %v45, %v45
    %v48 = vsel %vm34, %v46, 0.0
    %49 = vadd.xlane.f32.xlu0 %v48
    %v50 = vpop.xlane.xlu0 %49
    %v51 = vsel %vm34, %v47, 0.0
    %52 = vadd.xlane.f32.xlu0 %v51
    %v53 = vpop.xlane.xlu0 %52
    %v54 = vrcp.pop 31.0
    %v55 = vmul.f32 %v50, %v54
    %v56 = vmul.f32 %v53, %v54
    %v57 = vrsqrt.pop %v55
    %v58 = vmul.f32 %v55, %v57
    %vm59 = vcmp.eq.f32.partialorder %v55, inf
    %v60 = vsel %vm59, %v55, %v58
    %vm61 = vcmp.eq.f32.partialorder %v55, 0.0
    %v62 = vand.u32 %v55, 2147483648
    %v63 = vsel %vm61, %v62, %v60
    %v64 = vrsqrt.pop %v56
    %v65 = vmul.f32 %v56, %v64
    %vm66 = vcmp.eq.f32.partialorder %v56, inf
    %v67 = vsel %vm66, %v56, %v65
    %vm68 = vcmp.eq.f32.partialorder %v56, 0.0
    %v69 = vand.u32 %v56, 2147483648
    %v70 = vsel %vm68, %v69, %v67
    %v71 = vadd.f32 %v63, 1e-06
    %v72 = vadd.f32 %v70, 1e-06
    %v73 = vrcp.pop %v71
    %v74 = vrcp.pop %v72
    %v75 = vld [vmem:[%s3] sm:$0x1]
    %v77 = vlaneseq
    %v78 = vshrl.u32 %v77, 7
    %v79 = vsub.s32 0, %v78
    %v80 = vrot.slane %v75, %v79
    %v82 = vmul.f32 %v80, %v44
    %v83 = vmul.f32 %v80, %v45
    %v84 = vmul.f32 %v82, %v73
    %v85 = vmul.f32 %v83, %v74
    %v86 = vld [vmem:[%s4] sm:$0x1]
    %v88 = vlaneseq
    %v89 = vshrl.u32 %v88, 7
    %v90 = vsub.s32 0, %v89
    %v91 = vrot.slane %v86, %v90
    %v93 = vadd.f32 %v84, %v91
    %v94 = vadd.f32 %v85, %v91
    %v95 = vpack.c.bf16 %v94, %v93
    %96 = vst.msk [vmem:[#allocation3] sm:$0xff] %vm34, %v95
  $region29: #{decoder_forward.17} parent=0 // pred_fallthru
    _
  %v97 = vld [vmem:[#allocation3] sm:$0xff]
  %v98 = vld [vmem:[#allocation2] sm:$0xff]
  %v99 = vld [vmem:[#allocation2 + $0x8] sm:$0xff]
  %v100 = vld [vmem:[%s1] sm:$0xf]
  %v101 = vld [vmem:[%s1 + $0x4] sm:$0xf]
  %v102 = vld [vmem:[%s1 + $0x8] sm:$0xf]
  %v103 = vld [vmem:[%s1 + $0xc] sm:$0xf]
  %v108 = vunpack.c.l.b16 %v100
  %v109 = vunpack.c.l.b16 %v101
  %v110 = vunpack.c.l.b16 %v102
  %v111 = vunpack.c.l.b16 %v103
  %v112 = vpack.c.b16 %v109, %v108
  %v113 = vpack.c.b16 %v111, %v110
  %vm116 = vcmask 261120
  %v118 = vsel %vm116, %v97, 0
  %120 = vmatprep.subr.bf16.mxu0 0
  %121 = vmatpush1.bf16.msra.mxu0 %v112
  %122 = vmatprep.subr.bf16.mxu0 0
  %123 = vmatpush1.bf16.msra.mxu0 %v113
  %124 = vmatprep.subr.bf16.mxu0 0
  %125 = vmatpush1.bf16.msra.mxu0 0
  %126 = vmatprep.subr.bf16.mxu0 0
  %127 = vmatpush1.bf16.msra.mxu0 0
  %128 = vmatprep.subr.bf16.mxu0 0
  %129 = vmatpush1.bf16.msra.mxu0 0
  %130 = vmatprep.subr.bf16.mxu0 0
  %131 = vmatpush1.bf16.msra.mxu0 0
  %132 = vmatprep.subr.bf16.mxu0 0
  %133 = vmatpush1.bf16.msra.mxu0 0
  %134 = vmatprep.subr.bf16.mxu0 0
  %135 = vmatpush1.bf16.msra.mxu0 0
  %136 = vmatprep.subr.bf16.mxu0 0
  %137 = vmatpush1.bf16.msra.mxu0 0
  %138 = vmatprep.subr.bf16.mxu0 0
  %139 = vmatpush1.bf16.msra.mxu0 0
  %140 = vmatprep.subr.bf16.mxu0 0
  %141 = vmatpush1.bf16.msra.mxu0 0
  %142 = vmatprep.subr.bf16.mxu0 0
  %143 = vmatpush1.bf16.msra.mxu0 0
  %144 = vmatprep.subr.bf16.mxu0 0
  %145 = vmatpush1.bf16.msra.mxu0 0
  %146 = vmatprep.subr.bf16.mxu0 0
  %147 = vmatpush1.bf16.msra.mxu0 0
  %148 = vmatprep.subr.bf16.mxu0 0
  %149 = vmatpush1.bf16.msra.mxu0 0
  %150 = vmatprep.subr.bf16.mxu0 0
  %151 = vmatpush1.bf16.msra.mxu0 0
  %152 = vmatprep.mubr.bf16.mxu0 0
  %153 = vmatmul.mubr.bf16.gmra.mrb[0].mxu0 %v118
  %v154 = vpop.f32.mrb[0].mxu0
  %v155 = vadd.f32 0.0, %v154
  %v156 = vpop.f32.mrb[0].mxu0
  %v157 = vpop.f32.mrb[0].mxu0
  %v158 = vadd.f32 0.0, %v157
  %v159 = vpop.f32.mrb[0].mxu0
  %160 = vdwg.mxu0
  %v161 = vadd.f32 %v98, %v155
  %v162 = vadd.f32 %v99, %v158
  %163 = vst.msk [vmem:[#allocation2] sm:$0xff] %vm116, %v161
  %164 = vst.msk [vmem:[#allocation2 + $0x8] sm:$0xff] %vm116, %v162
  // Predicated region
  $region30: #{decoder_forward.17} parent=0 // pred_check
    %p165 = pneg %p21
  $region31: #{decoder_forward.17} parent=0 // pred_check_branch
    %167 = sbr.rel (%p165) target = $region33
  $region32: #{decoder_forward.17} parent=0 // pred_region
    %v168 = vld [vmem:[#allocation2] sm:$0xff]
    %v169 = vld [vmem:[#allocation2 + $0x8] sm:$0xff]
    %v170 = vld [vmem:[%s2] sm:$0x1]
    %v172 = vlaneseq
    %v173 = vshrl.u32 %v172, 7
    %v174 = vsub.s32 0, %v173
    %v175 = vrot.slane %v170, %v174
    %v177 = vadd.f32 %v168, %v175
    %v178 = vadd.f32 %v169, %v175
    %179 = vst.msk [vmem:[%s5] sm:$0xff] %vm116, %v177
    %180 = vst.msk [vmem:[%s5 + $0x8] sm:$0xff] %vm116, %v178
  $region33: #{decoder_forward.17} parent=0 // pred_fallthru
    _
  // Predicated region
  $region34: #{decoder_forward.17} parent=0 // pred_check
    _
  $region35: #{decoder_forward.17} parent=0 // pred_check_branch
    %182 = sbr.rel (0) target = $region37
  $region36: #{decoder_forward.17} parent=0 // pred_region
    _
  $region37: #{decoder_forward.17} parent=0 // pred_fallthru
    _
  // Predicated region
  $region38: #{decoder_forward.17} parent=0 // pred_check
    _
  $region39: #{decoder_forward.17} parent=0 // pred_check_branch
    %184 = sbr.rel (0) target = $region41
  $region40: #{decoder_forward.17} parent=0 // pred_region
    _
  $region41: #{decoder_forward.17} parent=0 // pred_fallthru
    _

// kernel: decoder_forward.15
$region0: #{decoder_forward.15}
  #allocation0 [shape = 'u32[]', space=smem, size = 0x4, offset = 0x4, fixed_abs, tag = 'smem constant byte address 0x4 - core index']
  #allocation1 [shape = 'u32[144,128]{1,0:T(1,128)}', space=vmem, size = 0x12000, scoped, tag = 'internal scratch']
  #allocation2 [shape = 'f32[16,96]{1,0:T(8,128)}', space=vmem, size = 0x2000, scoped, tag = 'scratch operand']
  #allocation3 [shape = 'bf16[16,32]{1,0:T(16,128)(2,1)}', space=vmem, size = 0x1000, scoped, tag = 'scratch operand']
  %s0 = inlined_call_operand.vmem [shape: f32[16,32], index: 0, kind: input, shape index: {}]
  %s1 = inlined_call_operand.vmem [shape: bf16[32,96], index: 1, kind: input, shape index: {}]
  %s2 = inlined_call_operand.vmem [shape: f32[1,96], index: 2, kind: input, shape index: {}]
  %s3 = inlined_call_operand.vmem [shape: f32[1,32], index: 3, kind: input, shape index: {}]
  %s4 = inlined_call_operand.vmem [shape: f32[1,32], index: 4, kind: input, shape index: {}]
  %s5 = inlined_call_operand.vmem [shape: f32[16,96], index: 5, kind: output, shape index: {}]
  %s6 = sld [smem:[#allocation0]]
  $region42: #{decoder_forward.15} parent=0
    _
  %s8 = ssub.s32 1, %s6
  %s9 = scalar_select 0, %s8, %s6
  // Predicated region
  $region2: #{decoder_forward.15} parent=0 // pred_check
    _
  $region3: #{decoder_forward.15} parent=0 // pred_check_branch
    %11 = sbr.rel (0) target = $region5
  $region4: #{decoder_forward.15} parent=0 // pred_region
    _
  $region5: #{decoder_forward.15} parent=0 // pred_fallthru
    _
  // Predicated region
  $region6: #{decoder_forward.15} parent=0 // pred_check
    _
  $region7: #{decoder_forward.15} parent=0 // pred_check_branch
    %13 = sbr.rel (0) target = $region9
  $region8: #{decoder_forward.15} parent=0 // pred_region
    _
  $region9: #{decoder_forward.15} parent=0 // pred_fallthru
    _
  // Predicated region
  $region10: #{decoder_forward.15} parent=0 // pred_check
    _
  $region11: #{decoder_forward.15} parent=0 // pred_check_branch
    %15 = sbr.rel (0) target = $region13
  $region12: #{decoder_forward.15} parent=0 // pred_region
    _
  $region13: #{decoder_forward.15} parent=0 // pred_fallthru
    _
  // Predicated region
  $region14: #{decoder_forward.15} parent=0 // pred_check
    _
  $region15: #{decoder_forward.15} parent=0 // pred_check_branch
    %17 = sbr.rel (0) target = $region17
  $region16: #{decoder_forward.15} parent=0 // pred_region
    _
  $region17: #{decoder_forward.15} parent=0 // pred_fallthru
    _
  // Predicated region
  $region18: #{decoder_forward.15} parent=0 // pred_check
    _
  $region19: #{decoder_forward.15} parent=0 // pred_check_branch
    %19 = sbr.rel (0) target = $region21
  $region20: #{decoder_forward.15} parent=0 // pred_region
    _
  $region21: #{decoder_forward.15} parent=0 // pred_fallthru
    _
  %p21 = scmp.eq.s32.totalorder 0, 0
  // Predicated region
  $region22: #{decoder_forward.15} parent=0 // pred_check
    %p22 = pneg %p21
  $region23: #{decoder_forward.15} parent=0 // pred_check_branch
    %24 = sbr.rel (%p22) target = $region25
  $region24: #{decoder_forward.15} parent=0 // pred_region
    %vm25 = vcmask 785408
    %26 = vst.msk [vmem:[#allocation2] sm:$0xff] %vm25, 0.0
    %27 = vst.msk [vmem:[#allocation2 + $0x8] sm:$0xff] %vm25, 0.0
  $region25: #{decoder_forward.15} parent=0 // pred_fallthru
    _
  %p28 = scmp.eq.s32.totalorder 0, 0
  // Predicated region
  $region26: #{decoder_forward.15} parent=0 // pred_check
    %p29 = pneg %p28
  $region27: #{decoder_forward.15} parent=0 // pred_check_branch
    %31 = sbr.rel (%p29) target = $region29
  $region28: #{decoder_forward.15} parent=0 // pred_region
    %v32 = vld [vmem:[%s0] sm:$0xff]
    %v33 = vld [vmem:[%s0 + $0x8] sm:$0xff]
    %vm34 = vcmask 261120
    %v35 = vsel %vm34, %v32, 0.0
    %36 = vadd.xlane.f32.xlu0 %v35
    %v37 = vpop.xlane.xlu0 %36
    %v38 = vsel %vm34, %v33, 0.0
    %39 = vadd.xlane.f32.xlu0 %v38
    %v40 = vpop.xlane.xlu0 %39
    %v41 = vrcp.pop 32.0
    %v42 = vmul.f32 %v37, %v41
    %v43 = vmul.f32 %v40, %v41
    %v44 = vsub.f32 %v32, %v42
    %v45 = vsub.f32 %v33, %v43
    %v46 = vmul.f32 %v44, %v44
    %v47 = vmul.f32 %v45, %v45
    %v48 = vsel %vm34, %v46, 0.0
    %49 = vadd.xlane.f32.xlu0 %v48
    %v50 = vpop.xlane.xlu0 %49
    %v51 = vsel %vm34, %v47, 0.0
    %52 = vadd.xlane.f32.xlu0 %v51
    %v53 = vpop.xlane.xlu0 %52
    %v54 = vrcp.pop 31.0
    %v55 = vmul.f32 %v50, %v54
    %v56 = vmul.f32 %v53, %v54
    %v57 = vrsqrt.pop %v55
    %v58 = vmul.f32 %v55, %v57
    %vm59 = vcmp.eq.f32.partialorder %v55, inf
    %v60 = vsel %vm59, %v55, %v58
    %vm61 = vcmp.eq.f32.partialorder %v55, 0.0
    %v62 = vand.u32 %v55, 2147483648
    %v63 = vsel %vm61, %v62, %v60
    %v64 = vrsqrt.pop %v56
    %v65 = vmul.f32 %v56, %v64
    %vm66 = vcmp.eq.f32.partialorder %v56, inf
    %v67 = vsel %vm66, %v56, %v65
    %vm68 = vcmp.eq.f32.partialorder %v56, 0.0
    %v69 = vand.u32 %v56, 2147483648
    %v70 = vsel %vm68, %v69, %v67
    %v71 = vadd.f32 %v63, 1e-06
    %v72 = vadd.f32 %v70, 1e-06
    %v73 = vrcp.pop %v71
    %v74 = vrcp.pop %v72
    %v75 = vld [vmem:[%s3] sm:$0x1]
    %v77 = vlaneseq
    %v78 = vshrl.u32 %v77, 7
    %v79 = vsub.s32 0, %v78
    %v80 = vrot.slane %v75, %v79
    %v82 = vmul.f32 %v80, %v44
    %v83 = vmul.f32 %v80, %v45
    %v84 = vmul.f32 %v82, %v73
    %v85 = vmul.f32 %v83, %v74
    %v86 = vld [vmem:[%s4] sm:$0x1]
    %v88 = vlaneseq
    %v89 = vshrl.u32 %v88, 7
    %v90 = vsub.s32 0, %v89
    %v91 = vrot.slane %v86, %v90
    %v93 = vadd.f32 %v84, %v91
    %v94 = vadd.f32 %v85, %v91
    %v95 = vpack.c.bf16 %v94, %v93
    %96 = vst.msk [vmem:[#allocation3] sm:$0xff] %vm34, %v95
  $region29: #{decoder_forward.15} parent=0 // pred_fallthru
    _
  %v97 = vld [vmem:[#allocation3] sm:$0xff]
  %v98 = vld [vmem:[#allocation2] sm:$0xff]
  %v99 = vld [vmem:[#allocation2 + $0x8] sm:$0xff]
  %v100 = vld [vmem:[%s1] sm:$0xf]
  %v101 = vld [vmem:[%s1 + $0x4] sm:$0xf]
  %v102 = vld [vmem:[%s1 + $0x8] sm:$0xf]
  %v103 = vld [vmem:[%s1 + $0xc] sm:$0xf]
  %v108 = vunpack.c.l.b16 %v100
  %v109 = vunpack.c.l.b16 %v101
  %v110 = vunpack.c.l.b16 %v102
  %v111 = vunpack.c.l.b16 %v103
  %v112 = vpack.c.b16 %v109, %v108
  %v113 = vpack.c.b16 %v111, %v110
  %vm116 = vcmask 261120
  %v118 = vsel %vm116, %v97, 0
  %120 = vmatprep.subr.bf16.mxu0 0
  %121 = vmatpush1.bf16.msra.mxu0 %v112
  %122 = vmatprep.subr.bf16.mxu0 0
  %123 = vmatpush1.bf16.msra.mxu0 %v113
  %124 = vmatprep.subr.bf16.mxu0 0
  %125 = vmatpush1.bf16.msra.mxu0 0
  %126 = vmatprep.subr.bf16.mxu0 0
  %127 = vmatpush1.bf16.msra.mxu0 0
  %128 = vmatprep.subr.bf16.mxu0 0
  %129 = vmatpush1.bf16.msra.mxu0 0
  %130 = vmatprep.subr.bf16.mxu0 0
  %131 = vmatpush1.bf16.msra.mxu0 0
  %132 = vmatprep.subr.bf16.mxu0 0
  %133 = vmatpush1.bf16.msra.mxu0 0
  %134 = vmatprep.subr.bf16.mxu0 0
  %135 = vmatpush1.bf16.msra.mxu0 0
  %136 = vmatprep.subr.bf16.mxu0 0
  %137 = vmatpush1.bf16.msra.mxu0 0
  %138 = vmatprep.subr.bf16.mxu0 0
  %139 = vmatpush1.bf16.msra.mxu0 0
  %140 = vmatprep.subr.bf16.mxu0 0
  %141 = vmatpush1.bf16.msra.mxu0 0
  %142 = vmatprep.subr.bf16.mxu0 0
  %143 = vmatpush1.bf16.msra.mxu0 0
  %144 = vmatprep.subr.bf16.mxu0 0
  %145 = vmatpush1.bf16.msra.mxu0 0
  %146 = vmatprep.subr.bf16.mxu0 0
  %147 = vmatpush1.bf16.msra.mxu0 0
  %148 = vmatprep.subr.bf16.mxu0 0
  %149 = vmatpush1.bf16.msra.mxu0 0
  %150 = vmatprep.subr.bf16.mxu0 0
  %151 = vmatpush1.bf16.msra.mxu0 0
  %152 = vmatprep.mubr.bf16.mxu0 0
  %153 = vmatmul.mubr.bf16.gmra.mrb[0].mxu0 %v118
  %v154 = vpop.f32.mrb[0].mxu0
  %v155 = vadd.f32 0.0, %v154
  %v156 = vpop.f32.mrb[0].mxu0
  %v157 = vpop.f32.mrb[0].mxu0
  %v158 = vadd.f32 0.0, %v157
  %v159 = vpop.f32.mrb[0].mxu0
  %160 = vdwg.mxu0
  %v161 = vadd.f32 %v98, %v155
  %v162 = vadd.f32 %v99, %v158
  %vm163 = vcmask 785408
  %164 = vst.msk [vmem:[#allocation2] sm:$0xff] %vm163, %v161
  %165 = vst.msk [vmem:[#allocation2 + $0x8] sm:$0xff] %vm163, %v162
  // Predicated region
  $region30: #{decoder_forward.15} parent=0 // pred_check
    %p166 = pneg %p21
  $region31: #{decoder_forward.15} parent=0 // pred_check_branch
    %168 = sbr.rel (%p166) target = $region33
  $region32: #{decoder_forward.15} parent=0 // pred_region
    %v169 = vld [vmem:[#allocation2] sm:$0xff]
    %v170 = vld [vmem:[#allocation2 + $0x8] sm:$0xff]
    %v171 = vld [vmem:[%s2] sm:$0x1]
    %v173 = vlaneseq
    %v174 = vshrl.u32 %v173, 7
    %v175 = vsub.s32 0, %v174
    %v176 = vrot.slane %v171, %v175
    %v178 = vadd.f32 %v169, %v176
    %v179 = vadd.f32 %v170, %v176
    %180 = vst.msk [vmem:[%s5] sm:$0xff] %vm163, %v178
    %181 = vst.msk [vmem:[%s5 + $0x8] sm:$0xff] %vm163, %v179
  $region33: #{decoder_forward.15} parent=0 // pred_fallthru
    _
  // Predicated region
  $region34: #{decoder_forward.15} parent=0 // pred_check
    _
  $region35: #{decoder_forward.15} parent=0 // pred_check_branch
    %183 = sbr.rel (0) target = $region37
  $region36: #{decoder_forward.15} parent=0 // pred_region
    _
  $region37: #{decoder_forward.15} parent=0 // pred_fallthru
    _
  // Predicated region
  $region38: #{decoder_forward.15} parent=0 // pred_check
    _
  $region39: #{decoder_forward.15} parent=0 // pred_check_branch
    %185 = sbr.rel (0) target = $region41
  $region40: #{decoder_forward.15} parent=0 // pred_region
    _
  $region41: #{decoder_forward.15} parent=0 // pred_fallthru
    _

// kernel: decoder_forward.16
$region0: #{decoder_forward.16}
  #allocation0 [shape = 'u32[]', space=smem, size = 0x4, offset = 0x4, fixed_abs, tag = 'smem constant byte address 0x4 - core index']
  #allocation1 [shape = 'u32[144,128]{1,0:T(1,128)}', space=vmem, size = 0x12000, scoped, tag = 'internal scratch']
  #allocation2 [shape = 'bf16[8,32]{1,0:T(8,128)(2,1)}', space=vmem, size = 0x800, scoped, tag = 'scratch operand']
  %s0 = inlined_call_operand.vmem [shape: f32[2,8,96], index: 0, kind: input, shape index: {}]
  %s1 = inlined_call_operand.vmem [shape: s8[2,8,8], index: 1, kind: input, shape index: {}]
  %s2 = inlined_call_operand.vmem [shape: bf16[32,32], index: 2, kind: input, shape index: {}]
  %s3 = inlined_call_operand.vmem [shape: f32[1,32], index: 3, kind: input, shape index: {}]
  %s4 = inlined_call_operand.vmem [shape: f32[2,8,32], index: 4, kind: input, shape index: {}]
  %s5 = inlined_call_operand.vmem [shape: f32[2,8,32], index: 5, kind: output, shape index: {}]
  %s6 = sld [smem:[#allocation0]]
  $region53: #{decoder_forward.16} parent=0
    _
  %s8 = ssub.s32 1, %s6
  %s9 = scalar_select 0, %s8, %s6
  loop: start=0, step=1, limit=4
  $region2: #{decoder_forward.16} parent=0 // loop_pre_header
    _
  $region3: #{decoder_forward.16} parent=0 // loop_header
    %s11 = sphi 0, %s15
    %p12 = scmp.ge.s32.totalorder %s11, 4
    %s18 = sphi 0, %s30
    %s19 = sphi 0, %s26
    %s20 = sphi 0, %s18
    %s21 = sphi 0, %s19
    %s22 = sphi 0, %s20
    %s23 = sphi 0, %s21
    %s33 = sphi 0, %s35
    %s36 = sphi 0, %s33
    %s37 = sphi 0, %s36
    %s53 = sphi 0, %s37
    %s61 = sphi 0, %s63
    %s64 = sphi 0, %s61
    %s65 = sphi 0, %s64
    %s81 = sphi 0, %s65
    %s85 = sphi 0, %s85
    %s87 = sphi 0, %s85
    %s88 = sphi 0, %s87
    %s102 = sphi 0, %s88
    %s106 = sphi 0, %s106
    %s108 = sphi 0, %s106
    %s109 = sphi 0, %s108
    %s123 = sphi 0, %s109
    %s131 = sphi 0, %s133
    %s134 = sphi 0, %s131
    %s135 = sphi 0, %s134
    %s151 = sphi 0, %s135
    %s159 = sphi 0, %s161
    %s162 = sphi 0, %s159
    %s163 = sphi 0, %s162
    %s179 = sphi 0, %s163
  $region4: #{decoder_forward.16} parent=0 // loop_header_branch
    %14 = sbr.rel (%p12) target = $region8
  $region5: #{decoder_forward.16} parent=0 // loop_body
    %s16 = ssub.s32 %s11, 1
    %s17 = ssub.s32 %s11, 2
    %s24 = sadd.s32 1, %s19
    %p25 = scmp.ge.s32.totalorder %s24, 1
    %s26 = scalar_select %p25, 0, %s24
    %s27 = sadd.s32 1, %s18
    %s28 = scalar_select %p25, %s27, %s18
    %p29 = scmp.ge.s32.totalorder %s28, 2
    %s30 = scalar_select %p29, 0, %s28
    %s31 = ssub.s32 %s18, %s30
    %p32 = scmp.eq.s32.totalorder %s31, 0
    %s34 = sadd.s32 %s33, 1
    %s35 = scalar_select %p32, %s33, %s34
    %p38 = pneg %p32
    %p39 = scmp.eq.s32.totalorder %s11, 1
    %p40 = por %p38, %p39
    %p41 = scmp.ne.s32.totalorder %s33, %s36
    %p42 = scmp.eq.s32.totalorder %s11, 0
    %p43 = por %p41, %p42
    %p44 = scmp.ne.s32.totalorder %s33, %s36
    %p45 = scmp.eq.s32.totalorder %s16, 1
    %p46 = por %p44, %p45
    %p47 = scmp.ne.s32.totalorder %s36, %s37
    %p48 = scmp.eq.s32.totalorder %s16, 0
    %p49 = por %p47, %p48
    %p50 = scmp.ne.s32.totalorder %s36, %s37
    %p51 = scmp.eq.s32.totalorder %s17, 1
    %p52 = por %p50, %p51
    %p54 = scmp.ne.s32.totalorder %s37, %s53
    %p55 = scmp.eq.s32.totalorder %s17, 0
    %p56 = por %p54, %p55
    %s57 = ssub.s32 %s18, %s30
    %s58 = ssub.s32 %s19, %s26
    %s59 = sor.u32 %s57, %s58
    %p60 = scmp.eq.s32.totalorder %s59, 0
    %s62 = sadd.s32 %s61, 1
    %s63 = scalar_select %p60, %s61, %s62
    %p66 = pneg %p60
    %p67 = scmp.eq.s32.totalorder %s11, 1
    %p68 = por %p66, %p67
    %p69 = scmp.ne.s32.totalorder %s61, %s64
    %p70 = scmp.eq.s32.totalorder %s11, 0
    %p71 = por %p69, %p70
    %p72 = scmp.ne.s32.totalorder %s61, %s64
    %p73 = scmp.eq.s32.totalorder %s16, 1
    %p74 = por %p72, %p73
    %p75 = scmp.ne.s32.totalorder %s64, %s65
    %p76 = scmp.eq.s32.totalorder %s16, 0
    %p77 = por %p75, %p76
    %p78 = scmp.ne.s32.totalorder %s64, %s65
    %p79 = scmp.eq.s32.totalorder %s17, 1
    %p80 = por %p78, %p79
    %p82 = scmp.ne.s32.totalorder %s65, %s81
    %p83 = scmp.eq.s32.totalorder %s17, 0
    %p84 = por %p82, %p83
    %s86 = sadd.s32 %s85, 1
    %p89 = scmp.eq.s32.totalorder %s11, 1
    %p90 = scmp.ne.s32.totalorder %s85, %s87
    %p91 = scmp.eq.s32.totalorder %s11, 0
    %p92 = por %p90, %p91
    %p93 = scmp.ne.s32.totalorder %s85, %s87
    %p94 = scmp.eq.s32.totalorder %s16, 1
    %p95 = por %p93, %p94
    %p96 = scmp.ne.s32.totalorder %s87, %s88
    %p97 = scmp.eq.s32.totalorder %s16, 0
    %p98 = por %p96, %p97
    %p99 = scmp.ne.s32.totalorder %s87, %s88
    %p100 = scmp.eq.s32.totalorder %s17, 1
    %p101 = por %p99, %p100
    %p103 = scmp.ne.s32.totalorder %s88, %s102
    %p104 = scmp.eq.s32.totalorder %s17, 0
    %p105 = por %p103, %p104
    %s107 = sadd.s32 %s106, 1
    %p110 = scmp.eq.s32.totalorder %s11, 1
    %p111 = scmp.ne.s32.totalorder %s106, %s108
    %p112 = scmp.eq.s32.totalorder %s11, 0
    %p113 = por %p111, %p112
    %p114 = scmp.ne.s32.totalorder %s106, %s108
    %p115 = scmp.eq.s32.totalorder %s16, 1
    %p116 = por %p114, %p115
    %p117 = scmp.ne.s32.totalorder %s108, %s109
    %p118 = scmp.eq.s32.totalorder %s16, 0
    %p119 = por %p117, %p118
    %p120 = scmp.ne.s32.totalorder %s108, %s109
    %p121 = scmp.eq.s32.totalorder %s17, 1
    %p122 = por %p120, %p121
    %p124 = scmp.ne.s32.totalorder %s109, %s123
    %p125 = scmp.eq.s32.totalorder %s17, 0
    %p126 = por %p124, %p125
    %s127 = ssub.s32 %s18, %s30
    %s128 = ssub.s32 %s19, %s26
    %s129 = sor.u32 %s127, %s128
    %p130 = scmp.eq.s32.totalorder %s129, 0
    %s132 = sadd.s32 %s131, 1
    %s133 = scalar_select %p130, %s131, %s132
    %p136 = pneg %p130
    %p137 = scmp.eq.s32.totalorder %s11, 1
    %p138 = por %p136, %p137
    %p139 = scmp.ne.s32.totalorder %s131, %s134
    %p140 = scmp.eq.s32.totalorder %s11, 0
    %p141 = por %p139, %p140
    %p142 = scmp.ne.s32.totalorder %s131, %s134
    %p143 = scmp.eq.s32.totalorder %s16, 1
    %p144 = por %p142, %p143
    %p145 = scmp.ne.s32.totalorder %s134, %s135
    %p146 = scmp.eq.s32.totalorder %s16, 0
    %p147 = por %p145, %p146
    %p148 = scmp.ne.s32.totalorder %s134, %s135
    %p149 = scmp.eq.s32.totalorder %s17, 1
    %p150 = por %p148, %p149
    %p152 = scmp.ne.s32.totalorder %s135, %s151
    %p153 = scmp.eq.s32.totalorder %s17, 0
    %p154 = por %p152, %p153
    %s155 = ssub.s32 %s18, %s30
    %s156 = ssub.s32 %s19, %s26
    %s157 = sor.u32 %s155, %s156
    %p158 = scmp.eq.s32.totalorder %s157, 0
    %s160 = sadd.s32 %s159, 1
    %s161 = scalar_select %p158, %s159, %s160
    %p164 = pneg %p158
    %p165 = scmp.eq.s32.totalorder %s11, 1
    %p166 = por %p164, %p165
    %p167 = scmp.ne.s32.totalorder %s159, %s162
    %p168 = scmp.eq.s32.totalorder %s11, 0
    %p169 = por %p167, %p168
    %p170 = scmp.ne.s32.totalorder %s159, %s162
    %p171 = scmp.eq.s32.totalorder %s16, 1
    %p172 = por %p170, %p171
    %p173 = scmp.ne.s32.totalorder %s162, %s163
    %p174 = scmp.eq.s32.totalorder %s16, 0
    %p175 = por %p173, %p174
    %p176 = scmp.ne.s32.totalorder %s162, %s163
    %p177 = scmp.eq.s32.totalorder %s17, 1
    %p178 = por %p176, %p177
    %p180 = scmp.ne.s32.totalorder %s163, %s179
    %p181 = scmp.eq.s32.totalorder %s17, 0
    %p182 = por %p180, %p181
    %p183 = scmp.le.s32.totalorder 1, %s11
    %p184 = scmp.lt.s32.totalorder %s11, 3
    %p185 = pnand %p183, %p184
    %p186 = pneg %p185
    // Predicated region
    $region9: #{decoder_forward.16} parent=5 // pred_check
      _
    $region10: #{decoder_forward.16} parent=5 // pred_check_branch
      %188 = sbr.rel (%p185) target = $region12
    $region11: #{decoder_forward.16} parent=5 // pred_region
      %s189 = ssub.s32 %s11, 1
      // Predicated region
      $region13: #{decoder_forward.16} parent=11 // pred_check
        %p190 = pneg %p98
      $region14: #{decoder_forward.16} parent=11 // pred_check_branch
        %192 = sbr.rel (%p190) target = $region16
      $region15: #{decoder_forward.16} parent=11 // pred_region
        _
      $region16: #{decoder_forward.16} parent=11 // pred_fallthru
        _
      // Predicated region
      $region17: #{decoder_forward.16} parent=11 // pred_check
        %p193 = pneg %p119
      $region18: #{decoder_forward.16} parent=11 // pred_check_branch
        %195 = sbr.rel (%p193) target = $region20
      $region19: #{decoder_forward.16} parent=11 // pred_region
        _
      $region20: #{decoder_forward.16} parent=11 // pred_fallthru
        _
    $region12: #{decoder_forward.16} parent=5 // pred_fallthru
      _
    %p196 = scmp.lt.s32.totalorder %s11, 2
    // Predicated region
    $region21: #{decoder_forward.16} parent=5 // pred_check
      %p197 = pneg %p196
    $region22: #{decoder_forward.16} parent=5 // pred_check_branch
      %199 = sbr.rel (%p197) target = $region24
    $region23: #{decoder_forward.16} parent=5 // pred_region
      // Predicated region
      $region25: #{decoder_forward.16} parent=23 // pred_check
        %p200 = pneg %p43
      $region26: #{decoder_forward.16} parent=23 // pred_check_branch
        %202 = sbr.rel (%p200) target = $region28
      $region27: #{decoder_forward.16} parent=23 // pred_region
        %p203 = scmp.lt.s32.totalorder %s18, 1
        %s204 = scalar_select %p203, %s18, 1
        %s205 = smul.addr %s204, 8
        %s206 = scalar_lea.vmem %s0, %s205
      $region28: #{decoder_forward.16} parent=23 // pred_fallthru
        _
      // Predicated region
      $region29: #{decoder_forward.16} parent=23 // pred_check
        %p207 = pneg %p71
      $region30: #{decoder_forward.16} parent=23 // pred_check_branch
        %209 = sbr.rel (%p207) target = $region32
      $region31: #{decoder_forward.16} parent=23 // pred_region
        %p210 = scmp.lt.s32.totalorder %s18, 1
        %s211 = scalar_select %p210, %s18, 1
        %p212 = scmp.lt.s32.totalorder %s19, 0
        %s213 = scalar_select %p212, %s19, 0
        %s214 = sadd.s32 %s213, %s211
        %s215 = smul.addr %s214, 2
        %s216 = scalar_lea.vmem %s1, %s215
      $region32: #{decoder_forward.16} parent=23 // pred_fallthru
        _
      // Predicated region
      $region33: #{decoder_forward.16} parent=23 // pred_check
        %p217 = pneg %p141
      $region34: #{decoder_forward.16} parent=23 // pred_check_branch
        %219 = sbr.rel (%p217) target = $region36
      $region35: #{decoder_forward.16} parent=23 // pred_region
        %p220 = scmp.lt.s32.totalorder %s18, 1
        %s221 = scalar_select %p220, %s18, 1
        %p222 = scmp.lt.s32.totalorder %s19, 0
        %s223 = scalar_select %p222, %s19, 0
        %s224 = sadd.s32 %s223, %s221
        %s225 = smul.addr %s224, 8
        %s226 = scalar_lea.vmem %s4, %s225
      $region36: #{decoder_forward.16} parent=23 // pred_fallthru
        _
    $region24: #{decoder_forward.16} parent=5 // pred_fallthru
      _
    %p227 = scmp.le.s32.totalorder 1, %s11
    %p228 = scmp.lt.s32.totalorder %s11, 3
    %p229 = pnand %p227, %p228
    %p230 = pneg %p229
    // Predicated region
    $region37: #{decoder_forward.16} parent=5 // pred_check
      _
    $region38: #{decoder_forward.16} parent=5 // pred_check_branch
      %232 = sbr.rel (%p229) target = $region40
    $region39: #{decoder_forward.16} parent=5 // pred_region
      %s233 = ssub.s32 %s11, 1
      %p234 = scmp.lt.s32.totalorder %s20, 1
      %s235 = scalar_select %p234, %s20, 1
      %s236 = smul.addr %s235, 8
      %s237 = scalar_lea.vmem %s0, %s236
      %p238 = pneg %p49
      %p239 = pneg %p46
      %p240 = scmp.lt.s32.totalorder %s20, 1
      %s241 = scalar_select %p240, %s20, 1
      %p242 = scmp.lt.s32.totalorder %s21, 0
      %s243 = scalar_select %p242, %s21, 0
      %s244 = sadd.s32 %s243, %s241
      %s245 = smul.addr %s244, 2
      %s246 = scalar_lea.vmem %s1, %s245
      %p247 = pneg %p77
      %p248 = pneg %p74
      %p249 = pneg %p98
      %p250 = pneg %p95
      %p251 = pneg %p119
      %p252 = pneg %p116
      %p253 = scmp.lt.s32.totalorder %s20, 1
      %s254 = scalar_select %p253, %s20, 1
      %p255 = scmp.lt.s32.totalorder %s21, 0
      %s256 = scalar_select %p255, %s21, 0
      %s257 = sadd.s32 %s256, %s254
      %s258 = smul.addr %s257, 8
      %s259 = scalar_lea.vmem %s4, %s258
      %p260 = pneg %p147
      %p261 = pneg %p144
      %p262 = pneg %p175
      %p263 = pneg %p172
      %p264 = scmp.lt.s32.totalorder %s20, 1
      %s265 = scalar_select %p264, %s20, 1
      %p266 = scmp.lt.s32.totalorder %s21, 0
      %s267 = scalar_select %p266, %s21, 0
      %s268 = sadd.s32 %s267, %s265
      %s269 = smul.addr %s268, 8
      %s270 = scalar_lea.vmem %s5, %s269
      %p271 = scmp.lt.s32.totalorder %s20, 1
      %s272 = scalar_select %p271, %s20, 1
      %s273 = smul.addr %s272, 8
      %s274 = scalar_lea.vmem %s0, %s273
      %p275 = scmp.lt.s32.totalorder %s20, 1
      %s276 = scalar_select %p275, %s20, 1
      %p277 = scmp.lt.s32.totalorder %s21, 0
      %s278 = scalar_select %p277, %s21, 0
      %s279 = sadd.s32 %s278, %s276
      %s280 = smul.addr %s279, 2
      %s281 = scalar_lea.vmem %s1, %s280
      %p282 = scmp.lt.s32.totalorder %s20, 1
      %s283 = scalar_select %p282, %s20, 1
      %p284 = scmp.lt.s32.totalorder %s21, 0
      %s285 = scalar_select %p284, %s21, 0
      %s286 = sadd.s32 %s285, %s283
      %s287 = smul.addr %s286, 8
      %s288 = scalar_lea.vmem %s4, %s287
      %p289 = scmp.lt.s32.totalorder %s20, 1
      %s290 = scalar_select %p289, %s20, 1
      %p291 = scmp.lt.s32.totalorder %s21, 0
      %s292 = scalar_select %p291, %s21, 0
      %s293 = sadd.s32 %s292, %s290
      %s294 = smul.addr %s293, 8
      %s295 = scalar_lea.vmem %s5, %s294
      %v297 = vld [vmem:[%s274] sm:$0xff]
      %v298 = vld [vmem:[%s281] sm:$0x3]
      %v299 = vunpack.c.0.s8 %v298
      %vm300 = vcmp.ne.s32.totalorder %v299, 0
      %v301 = vmul.f32 %v297, 0.35355338
      %v302 = vpack.c.bf16 %v301, %v301
      %v303 = vpack.c.bf16 %v297, %v297
      %305 = vrot.lane.b32.xlu0 %v303, 96
      %v306 = vpop.permute.xlu0 %305
      %vm307 = vcmask 64512
      %v309 = vsel %vm307, %v302, 0
      %v312 = vsel %vm307, %v306, 0
      %314 = vmatprep.subr.bf16.mxu0 0
      %315 = vmatpush1.bf16.xpose.msra.mxu0 %v312
      %316 = vmatprep.subr.bf16.mxu0 0
      %317 = vmatpush1.bf16.xpose.msra.mxu0 0
      %318 = vmatprep.subr.bf16.mxu0 0
      %319 = vmatpush1.bf16.xpose.msra.mxu0 0
      %320 = vmatprep.subr.bf16.mxu0 0
      %321 = vmatpush1.bf16.xpose.msra.mxu0 0
      %322 = vmatprep.subr.bf16.mxu0 0
      %323 = vmatpush1.bf16.xpose.msra.mxu0 0
      %324 = vmatprep.subr.bf16.mxu0 0
      %325 = vmatpush1.bf16.xpose.msra.mxu0 0
      %326 = vmatprep.subr.bf16.mxu0 0
      %327 = vmatpush1.bf16.xpose.msra.mxu0 0
      %328 = vmatprep.subr.bf16.mxu0 0
      %329 = vmatpush1.bf16.xpose.msra.mxu0 0
      %330 = vmatprep.subr.bf16.mxu0 0
      %331 = vmatpush1.bf16.xpose.msra.mxu0 0
      %332 = vmatprep.subr.bf16.mxu0 0
      %333 = vmatpush1.bf16.xpose.msra.mxu0 0
      %334 = vmatprep.subr.bf16.mxu0 0
      %335 = vmatpush1.bf16.xpose.msra.mxu0 0
      %336 = vmatprep.subr.bf16.mxu0 0
      %337 = vmatpush1.bf16.xpose.msra.mxu0 0
      %338 = vmatprep.subr.bf16.mxu0 0
      %339 = vmatpush1.bf16.xpose.msra.mxu0 0
      %340 = vmatprep.subr.bf16.mxu0 0
      %341 = vmatpush1.bf16.xpose.msra.mxu0 0
      %342 = vmatprep.subr.bf16.mxu0 0
      %343 = vmatpush1.bf16.xpose.msra.mxu0 0
      %344 = vmatprep.subr.bf16.mxu0 0
      %345 = vmatpush1.bf16.xpose.msra.mxu0 0
      %346 = vmatprep.mubr.bf16.mxu0 0
      %347 = vmatmul.mubr.bf16.gmra.mrb[0].mxu0 %v309
      %v348 = vpop.f32.mrb[0].mxu0
      %v349 = vadd.f32 0.0, %v348
      %v350 = vpop.f32.mrb[0].mxu0
      %v351 = vpop.f32.mrb[0].mxu0
      %v352 = vpop.f32.mrb[0].mxu0
      %353 = vdwg.mxu0
      %v354 = vsel %vm300, %v349, -1e+09
      %v355 = vsel %vm307, %v354, -inf
      %356 = vmax.xlane.f32.xlu0 %v355
      %v357 = vpop.xlane.xlu0 %356
      %v358 = vsub.f32 %v354, %v357
      %v359 = vmul.f32 %v358, 1.442695
      %v360 = vpow.pop %v359
      %v361 = vsel %vm307, %v360, 0.0
      %362 = vadd.xlane.f32.xlu0 %v361
      %v363 = vpop.xlane.xlu0 %362
      %v364 = vrcp.pop %v363
      %v365 = vmul.f32 %v360, %v364
      %v366 = vpack.c.bf16 %v365, %v365
      %367 = vrot.lane.b32.xlu0 %v303, 64
      %v368 = vpop.permute.xlu0 %367
      %v370 = vsel %vm307, %v366, 0
      %vm372 = vcmask 1043456
      %v374 = vsel %vm372, %v368, 0
      %376 = vmatprep.subr.bf16.mxu0 0
      %377 = vmatpush1.bf16.msra.mxu0 %v374
      %378 = vmatprep.subr.bf16.mxu0 0
      %379 = vmatpush1.bf16.msra.mxu0 0
      %380 = vmatprep.subr.bf16.mxu0 0
      %381 = vmatpush1.bf16.msra.mxu0 0
      %382 = vmatprep.subr.bf16.mxu0 0
      %383 = vmatpush1.bf16.msra.mxu0 0
      %384 = vmatprep.subr.bf16.mxu0 0
      %385 = vmatpush1.bf16.msra.mxu0 0
      %386 = vmatprep.subr.bf16.mxu0 0
      %387 = vmatpush1.bf16.msra.mxu0 0
      %388 = vmatprep.subr.bf16.mxu0 0
      %389 = vmatpush1.bf16.msra.mxu0 0
      %390 = vmatprep.subr.bf16.mxu0 0
      %391 = vmatpush1.bf16.msra.mxu0 0
      %392 = vmatprep.subr.bf16.mxu0 0
      %393 = vmatpush1.bf16.msra.mxu0 0
      %394 = vmatprep.subr.bf16.mxu0 0
      %395 = vmatpush1.bf16.msra.mxu0 0
      %396 = vmatprep.subr.bf16.mxu0 0
      %397 = vmatpush1.bf16.msra.mxu0 0
      %398 = vmatprep.subr.bf16.mxu0 0
      %399 = vmatpush1.bf16.msra.mxu0 0
      %400 = vmatprep.subr.bf16.mxu0 0
      %401 = vmatpush1.bf16.msra.mxu0 0
      %402 = vmatprep.subr.bf16.mxu0 0
      %403 = vmatpush1.bf16.msra.mxu0 0
      %404 = vmatprep.subr.bf16.mxu0 0
      %405 = vmatpush1.bf16.msra.mxu0 0
      %406 = vmatprep.subr.bf16.mxu0 0
      %407 = vmatpush1.bf16.msra.mxu0 0
      %408 = vmatprep.mubr.bf16.mxu0 0
      %409 = vmatmul.mubr.bf16.gmra.mrb[0].mxu0 %v370
      %v410 = vpop.f32.mrb[0].mxu0
      %v411 = vadd.f32 0.0, %v410
      %v412 = vpop.f32.mrb[0].mxu0
      %v413 = vpop.f32.mrb[0].mxu0
      %v414 = vpop.f32.mrb[0].mxu0
      %415 = vdwg.mxu0
      %v416 = vpack.c.bf16 %v411, %v411
      %vm417 = vcmask 60416
      %418 = vst.msk [vmem:[#allocation2] sm:$0xf] %vm417, %v416
      %420 = vrot.lane.b32.xlu0 %v302, 120
      %v421 = vpop.permute.xlu0 %420
      %422 = vrot.lane.b32.xlu0 %v303, 88
      %v423 = vpop.permute.xlu0 %422
      %v425 = vsel %vm307, %v421, 0
      %v428 = vsel %vm307, %v423, 0
      %430 = vmatprep.subr.bf16.mxu0 0
      %431 = vmatpush1.bf16.xpose.msra.mxu0 %v428
      %432 = vmatprep.subr.bf16.mxu0 0
      %433 = vmatpush1.bf16.xpose.msra.mxu0 0
      %434 = vmatprep.subr.bf16.mxu0 0
      %435 = vmatpush1.bf16.xpose.msra.mxu0 0
      %436 = vmatprep.subr.bf16.mxu0 0
      %437 = vmatpush1.bf16.xpose.msra.mxu0 0
      %438 = vmatprep.subr.bf16.mxu0 0
      %439 = vmatpush1.bf16.xpose.msra.mxu0 0
      %440 = vmatprep.subr.bf16.mxu0 0
      %441 = vmatpush1.bf16.xpose.msra.mxu0 0
      %442 = vmatprep.subr.bf16.mxu0 0
      %443 = vmatpush1.bf16.xpose.msra.mxu0 0
      %444 = vmatprep.subr.bf16.mxu0 0
      %445 = vmatpush1.bf16.xpose.msra.mxu0 0
      %446 = vmatprep.subr.bf16.mxu0 0
      %447 = vmatpush1.bf16.xpose.msra.mxu0 0
      %448 = vmatprep.subr.bf16.mxu0 0
      %449 = vmatpush1.bf16.xpose.msra.mxu0 0
      %450 = vmatprep.subr.bf16.mxu0 0
      %451 = vmatpush1.bf16.xpose.msra.mxu0 0
      %452 = vmatprep.subr.bf16.mxu0 0
      %453 = vmatpush1.bf16.xpose.msra.mxu0 0
      %454 = vmatprep.subr.bf16.mxu0 0
      %455 = vmatpush1.bf16.xpose.msra.mxu0 0
      %456 = vmatprep.subr.bf16.mxu0 0
      %457 = vmatpush1.bf16.xpose.msra.mxu0 0
      %458 = vmatprep.subr.bf16.mxu0 0
      %459 = vmatpush1.bf16.xpose.msra.mxu0 0
      %460 = vmatprep.subr.bf16.mxu0 0
      %461 = vmatpush1.bf16.xpose.msra.mxu0 0
      %462 = vmatprep.mubr.bf16.mxu0 0
      %463 = vmatmul.mubr.bf16.gmra.mrb[0].mxu0 %v425
      %v464 = vpop.f32.mrb[0].mxu0
      %v465 = vadd.f32 0.0, %v464
      %v466 = vpop.f32.mrb[0].mxu0
      %v467 = vpop.f32.mrb[0].mxu0
      %v468 = vpop.f32.mrb[0].mxu0
      %469 = vdwg.mxu0
      %v470 = vsel %vm300, %v465, -1e+09
      %v471 = vsel %vm307, %v470, -inf
      %472 = vmax.xlane.f32.xlu0 %v471
      %v473 = vpop.xlane.xlu0 %472
      %v474 = vsub.f32 %v470, %v473
      %v475 = vmul.f32 %v474, 1.442695
      %v476 = vpow.pop %v475
      %v477 = vsel %vm307, %v476, 0.0
      %478 = vadd.xlane.f32.xlu0 %v477
      %v479 = vpop.xlane.xlu0 %478
      %v480 = vrcp.pop %v479
      %v481 = vmul.f32 %v476, %v480
      %v482 = vpack.c.bf16 %v481, %v481
      %483 = vrot.lane.b32.xlu0 %v303, 56
      %v484 = vpop.permute.xlu0 %483
      %v486 = vsel %vm307, %v482, 0
      %v489 = vsel %vm372, %v484, 0
      %491 = vmatprep.subr.bf16.mxu0 0
      %492 = vmatpush1.bf16.msra.mxu0 %v489
      %493 = vmatprep.subr.bf16.mxu0 0
      %494 = vmatpush1.bf16.msra.mxu0 0
      %495 = vmatprep.subr.bf16.mxu0 0
      %496 = vmatpush1.bf16.msra.mxu0 0
      %497 = vmatprep.subr.bf16.mxu0 0
      %498 = vmatpush1.bf16.msra.mxu0 0
      %499 = vmatprep.subr.bf16.mxu0 0
      %500 = vmatpush1.bf16.msra.mxu0 0
      %501 = vmatprep.subr.bf16.mxu0 0
      %502 = vmatpush1.bf16.msra.mxu0 0
      %503 = vmatprep.subr.bf16.mxu0 0
      %504 = vmatpush1.bf16.msra.mxu0 0
      %505 = vmatprep.subr.bf16.mxu0 0
      %506 = vmatpush1.bf16.msra.mxu0 0
      %507 = vmatprep.subr.bf16.mxu0 0
      %508 = vmatpush1.bf16.msra.mxu0 0
      %509 = vmatprep.subr.bf16.mxu0 0
      %510 = vmatpush1.bf16.msra.mxu0 0
      %511 = vmatprep.subr.bf16.mxu0 0
      %512 = vmatpush1.bf16.msra.mxu0 0
      %513 = vmatprep.subr.bf16.mxu0 0
      %514 = vmatpush1.bf16.msra.mxu0 0
      %515 = vmatprep.subr.bf16.mxu0 0
      %516 = vmatpush1.bf16.msra.mxu0 0
      %517 = vmatprep.subr.bf16.mxu0 0
      %518 = vmatpush1.bf16.msra.mxu0 0
      %519 = vmatprep.subr.bf16.mxu0 0
      %520 = vmatpush1.bf16.msra.mxu0 0
      %521 = vmatprep.subr.bf16.mxu0 0
      %522 = vmatpush1.bf16.msra.mxu0 0
      %523 = vmatprep.mubr.bf16.mxu0 0
      %524 = vmatmul.mubr.bf16.gmra.mrb[0].mxu0 %v486
      %v525 = vpop.f32.mrb[0].mxu0
      %v526 = vadd.f32 0.0, %v525
      %v527 = vpop.f32.mrb[0].mxu0
      %v528 = vpop.f32.mrb[0].mxu0
      %v529 = vpop.f32.mrb[0].mxu0
      %530 = vdwg.mxu0
      %v531 = vpack.c.bf16 %v526, %v526
      %v533 = vunpack.c.l.b16 %v531
      %v534 = vpack.c.b16 %v533, %v533
      %535 = vrot.lane.b32.xlu0 %v534, 8
      %v536 = vpop.permute.xlu0 %535
      %vm538 = vcmask 126016
      %539 = vst.msk [vmem:[#allocation2] sm:$0xf] %vm538, %v536
      %540 = vrot.lane.b32.xlu0 %v302, 112
      %v541 = vpop.permute.xlu0 %540
      %542 = vrot.lane.b32.xlu0 %v303, 80
      %v543 = vpop.permute.xlu0 %542
      %v545 = vsel %vm307, %v541, 0
      %v548 = vsel %vm307, %v543, 0
      %550 = vmatprep.subr.bf16.mxu0 0
      %551 = vmatpush1.bf16.xpose.msra.mxu0 %v548
      %552 = vmatprep.subr.bf16.mxu0 0
      %553 = vmatpush1.bf16.xpose.msra.mxu0 0
      %554 = vmatprep.subr.bf16.mxu0 0
      %555 = vmatpush1.bf16.xpose.msra.mxu0 0
      %556 = vmatprep.subr.bf16.mxu0 0
      %557 = vmatpush1.bf16.xpose.msra.mxu0 0
      %558 = vmatprep.subr.bf16.mxu0 0
      %559 = vmatpush1.bf16.xpose.msra.mxu0 0
      %560 = vmatprep.subr.bf16.mxu0 0
      %561 = vmatpush1.bf16.xpose.msra.mxu0 0
      %562 = vmatprep.subr.bf16.mxu0 0
      %563 = vmatpush1.bf16.xpose.msra.mxu0 0
      %564 = vmatprep.subr.bf16.mxu0 0
      %565 = vmatpush1.bf16.xpose.msra.mxu0 0
      %566 = vmatprep.subr.bf16.mxu0 0
      %567 = vmatpush1.bf16.xpose.msra.mxu0 0
      %568 = vmatprep.subr.bf16.mxu0 0
      %569 = vmatpush1.bf16.xpose.msra.mxu0 0
      %570 = vmatprep.subr.bf16.mxu0 0
      %571 = vmatpush1.bf16.xpose.msra.mxu0 0
      %572 = vmatprep.subr.bf16.mxu0 0
      %573 = vmatpush1.bf16.xpose.msra.mxu0 0
      %574 = vmatprep.subr.bf16.mxu0 0
      %575 = vmatpush1.bf16.xpose.msra.mxu0 0
      %576 = vmatprep.subr.bf16.mxu0 0
      %577 = vmatpush1.bf16.xpose.msra.mxu0 0
      %578 = vmatprep.subr.bf16.mxu0 0
      %579 = vmatpush1.bf16.xpose.msra.mxu0 0
      %580 = vmatprep.subr.bf16.mxu0 0
      %581 = vmatpush1.bf16.xpose.msra.mxu0 0
      %582 = vmatprep.mubr.bf16.mxu0 0
      %583 = vmatmul.mubr.bf16.gmra.mrb[0].mxu0 %v545
      %v584 = vpop.f32.mrb[0].mxu0
      %v585 = vadd.f32 0.0, %v584
      %v586 = vpop.f32.mrb[0].mxu0
      %v587 = vpop.f32.mrb[0].mxu0
      %v588 = vpop.f32.mrb[0].mxu0
      %589 = vdwg.mxu0
      %v590 = vsel %vm300, %v585, -1e+09
      %v591 = vsel %vm307, %v590, -inf
      %592 = vmax.xlane.f32.xlu0 %v591
      %v593 = vpop.xlane.xlu0 %592
      %v594 = vsub.f32 %v590, %v593
      %v595 = vmul.f32 %v594, 1.442695
      %v596 = vpow.pop %v595
      %v597 = vsel %vm307, %v596, 0.0
      %598 = vadd.xlane.f32.xlu0 %v597
      %v599 = vpop.xlane.xlu0 %598
      %v600 = vrcp.pop %v599
      %v601 = vmul.f32 %v596, %v600
      %v602 = vpack.c.bf16 %v601, %v601
      %603 = vrot.lane.b32.xlu0 %v303, 48
      %v604 = vpop.permute.xlu0 %603
      %v606 = vsel %vm307, %v602, 0
      %v609 = vsel %vm372, %v604, 0
      %611 = vmatprep.subr.bf16.mxu0 0
      %612 = vmatpush1.bf16.msra.mxu0 %v609
      %613 = vmatprep.subr.bf16.mxu0 0
      %614 = vmatpush1.bf16.msra.mxu0 0
      %615 = vmatprep.subr.bf16.mxu0 0
      %616 = vmatpush1.bf16.msra.mxu0 0
      %617 = vmatprep.subr.bf16.mxu0 0
      %618 = vmatpush1.bf16.msra.mxu0 0
      %619 = vmatprep.subr.bf16.mxu0 0
      %620 = vmatpush1.bf16.msra.mxu0 0
      %621 = vmatprep.subr.bf16.mxu0 0
      %622 = vmatpush1.bf16.msra.mxu0 0
      %623 = vmatprep.subr.bf16.mxu0 0
      %624 = vmatpush1.bf16.msra.mxu0 0
      %625 = vmatprep.subr.bf16.mxu0 0
      %626 = vmatpush1.bf16.msra.mxu0 0
      %627 = vmatprep.subr.bf16.mxu0 0
      %628 = vmatpush1.bf16.msra.mxu0 0
      %629 = vmatprep.subr.bf16.mxu0 0
      %630 = vmatpush1.bf16.msra.mxu0 0
      %631 = vmatprep.subr.bf16.mxu0 0
      %632 = vmatpush1.bf16.msra.mxu0 0
      %633 = vmatprep.subr.bf16.mxu0 0
      %634 = vmatpush1.bf16.msra.mxu0 0
      %635 = vmatprep.subr.bf16.mxu0 0
      %636 = vmatpush1.bf16.msra.mxu0 0
      %637 = vmatprep.subr.bf16.mxu0 0
      %638 = vmatpush1.bf16.msra.mxu0 0
      %639 = vmatprep.subr.bf16.mxu0 0
      %640 = vmatpush1.bf16.msra.mxu0 0
      %641 = vmatprep.subr.bf16.mxu0 0
      %642 = vmatpush1.bf16.msra.mxu0 0
      %643 = vmatprep.mubr.bf16.mxu0 0
      %644 = vmatmul.mubr.bf16.gmra.mrb[0].mxu0 %v606
      %v645 = vpop.f32.mrb[0].mxu0
      %v646 = vadd.f32 0.0, %v645
      %v647 = vpop.f32.mrb[0].mxu0
      %v648 = vpop.f32.mrb[0].mxu0
      %v649 = vpop.f32.mrb[0].mxu0
      %650 = vdwg.mxu0
      %v651 = vpack.c.bf16 %v646, %v646
      %v653 = vunpack.c.l.b16 %v651
      %v654 = vpack.c.b16 %v653, %v653
      %655 = vrot.lane.b32.xlu0 %v654, 16
      %v656 = vpop.permute.xlu0 %655
      %vm658 = vcmask 191616
      %659 = vst.msk [vmem:[#allocation2] sm:$0xf] %vm658, %v656
      %660 = vrot.lane.b32.xlu0 %v302, 104
      %v661 = vpop.permute.xlu0 %660
      %662 = vrot.lane.b32.xlu0 %v303, 72
      %v663 = vpop.permute.xlu0 %662
      %v665 = vsel %vm307, %v661, 0
      %v668 = vsel %vm307, %v663, 0
      %670 = vmatprep.subr.bf16.mxu0 0
      %671 = vmatpush1.bf16.xpose.msra.mxu0 %v668
      %672 = vmatprep.subr.bf16.mxu0 0
      %673 = vmatpush1.bf16.xpose.msra.mxu0 0
      %674 = vmatprep.subr.bf16.mxu0 0
      %675 = vmatpush1.bf16.xpose.msra.mxu0 0
      %676 = vmatprep.subr.bf16.mxu0 0
      %677 = vmatpush1.bf16.xpose.msra.mxu0 0
      %678 = vmatprep.subr.bf16.mxu0 0
      %679 = vmatpush1.bf16.xpose.msra.mxu0 0
      %680 = vmatprep.subr.bf16.mxu0 0
      %681 = vmatpush1.bf16.xpose.msra.mxu0 0
      %682 = vmatprep.subr.bf16.mxu0 0
      %683 = vmatpush1.bf16.xpose.msra.mxu0 0
      %684 = vmatprep.subr.bf16.mxu0 0
      %685 = vmatpush1.bf16.xpose.msra.mxu0 0
      %686 = vmatprep.subr.bf16.mxu0 0
      %687 = vmatpush1.bf16.xpose.msra.mxu0 0
      %688 = vmatprep.subr.bf16.mxu0 0
      %689 = vmatpush1.bf16.xpose.msra.mxu0 0
      %690 = vmatprep.subr.bf16.mxu0 0
      %691 = vmatpush1.bf16.xpose.msra.mxu0 0
      %692 = vmatprep.subr.bf16.mxu0 0
      %693 = vmatpush1.bf16.xpose.msra.mxu0 0
      %694 = vmatprep.subr.bf16.mxu0 0
      %695 = vmatpush1.bf16.xpose.msra.mxu0 0
      %696 = vmatprep.subr.bf16.mxu0 0
      %697 = vmatpush1.bf16.xpose.msra.mxu0 0
      %698 = vmatprep.subr.bf16.mxu0 0
      %699 = vmatpush1.bf16.xpose.msra.mxu0 0
      %700 = vmatprep.subr.bf16.mxu0 0
      %701 = vmatpush1.bf16.xpose.msra.mxu0 0
      %702 = vmatprep.mubr.bf16.mxu0 0
      %703 = vmatmul.mubr.bf16.gmra.mrb[0].mxu0 %v665
      %v704 = vpop.f32.mrb[0].mxu0
      %v705 = vadd.f32 0.0, %v704
      %v706 = vpop.f32.mrb[0].mxu0
      %v707 = vpop.f32.mrb[0].mxu0
      %v708 = vpop.f32.mrb[0].mxu0
      %709 = vdwg.mxu0
      %v710 = vsel %vm300, %v705, -1e+09
      %v711 = vsel %vm307, %v710, -inf
      %712 = vmax.xlane.f32.xlu0 %v711
      %v713 = vpop.xlane.xlu0 %712
      %v714 = vsub.f32 %v710, %v713
      %v715 = vmul.f32 %v714, 1.442695
      %v716 = vpow.pop %v715
      %v717 = vsel %vm307, %v716, 0.0
      %718 = vadd.xlane.f32.xlu0 %v717
      %v719 = vpop.xlane.xlu0 %718
      %v720 = vrcp.pop %v719
      %v721 = vmul.f32 %v716, %v720
      %v722 = vpack.c.bf16 %v721, %v721
      %723 = vrot.lane.b32.xlu0 %v303, 40
      %v724 = vpop.permute.xlu0 %723
      %v726 = vsel %vm307, %v722, 0
      %v729 = vsel %vm372, %v724, 0
      %731 = vmatprep.subr.bf16.mxu0 0
      %732 = vmatpush1.bf16.msra.mxu0 %v729
      %733 = vmatprep.subr.bf16.mxu0 0
      %734 = vmatpush1.bf16.msra.mxu0 0
      %735 = vmatprep.subr.bf16.mxu0 0
      %736 = vmatpush1.bf16.msra.mxu0 0
      %737 = vmatprep.subr.bf16.mxu0 0
      %738 = vmatpush1.bf16.msra.mxu0 0
      %739 = vmatprep.subr.bf16.mxu0 0
      %740 = vmatpush1.bf16.msra.mxu0 0
      %741 = vmatprep.subr.bf16.mxu0 0
      %742 = vmatpush1.bf16.msra.mxu0 0
      %743 = vmatprep.subr.bf16.mxu0 0
      %744 = vmatpush1.bf16.msra.mxu0 0
      %745 = vmatprep.subr.bf16.mxu0 0
      %746 = vmatpush1.bf16.msra.mxu0 0
      %747 = vmatprep.subr.bf16.mxu0 0
      %748 = vmatpush1.bf16.msra.mxu0 0
      %749 = vmatprep.subr.bf16.mxu0 0
      %750 = vmatpush1.bf16.msra.mxu0 0
      %751 = vmatprep.subr.bf16.mxu0 0
      %752 = vmatpush1.bf16.msra.mxu0 0
      %753 = vmatprep.subr.bf16.mxu0 0
      %754 = vmatpush1.bf16.msra.mxu0 0
      %755 = vmatprep.subr.bf16.mxu0 0
      %756 = vmatpush1.bf16.msra.mxu0 0
      %757 = vmatprep.subr.bf16.mxu0 0
      %758 = vmatpush1.bf16.msra.mxu0 0
      %759 = vmatprep.subr.bf16.mxu0 0
      %760 = vmatpush1.bf16.msra.mxu0 0
      %761 = vmatprep.subr.bf16.mxu0 0
      %762 = vmatpush1.bf16.msra.mxu0 0
      %763 = vmatprep.mubr.bf16.mxu0 0
      %764 = vmatmul.mubr.bf16.gmra.mrb[0].mxu0 %v726
      %v765 = vpop.f32.mrb[0].mxu0
      %v766 = vadd.f32 0.0, %v765
      %v767 = vpop.f32.mrb[0].mxu0
      %v768 = vpop.f32.mrb[0].mxu0
      %v769 = vpop.f32.mrb[0].mxu0
      %770 = vdwg.mxu0
      %v771 = vpack.c.bf16 %v766, %v766
      %v773 = vunpack.c.l.b16 %v771
      %v774 = vpack.c.b16 %v773, %v773
      %775 = vrot.lane.b32.xlu0 %v774, 24
      %v776 = vpop.permute.xlu0 %775
      %vm778 = vcmask 257216
      %779 = vst.msk [vmem:[#allocation2] sm:$0xf] %vm778, %v776
      %v780 = vld [vmem:[%s288] sm:$0xff]
      %v781 = vld [vmem:[#allocation2] sm:$0xf]
      %v782 = vld [vmem:[%s2] sm:$0xf]
      %v783 = vld [vmem:[%s2 + $0x4] sm:$0xf]
      %v784 = vld [vmem:[%s2 + $0x8] sm:$0xf]
      %v785 = vld [vmem:[%s2 + $0xc] sm:$0xf]
      %v786 = vld [vmem:[%s3] sm:$0x1]
      %v788 = vlaneseq
      %v789 = vshrl.u32 %v788, 7
      %v790 = vsub.s32 0, %v789
      %v791 = vrot.slane %v786, %v790
      %v797 = vunpack.c.l.b16 %v782
      %v798 = vunpack.c.l.b16 %v783
      %v799 = vunpack.c.l.b16 %v784
      %v800 = vunpack.c.l.b16 %v785
      %v801 = vpack.c.b16 %v798, %v797
      %v802 = vpack.c.b16 %v800, %v799
      %vm805 = vcmask 261120
      %v807 = vsel %vm805, %v781, 0
      %809 = vmatprep.subr.bf16.mxu0 0
      %810 = vmatpush1.bf16.msra.mxu0 %v801
      %811 = vmatprep.subr.bf16.mxu0 0
      %812 = vmatpush1.bf16.msra.mxu0 %v802
      %813 = vmatprep.subr.bf16.mxu0 0
      %814 = vmatpush1.bf16.msra.mxu0 0
      %815 = vmatprep.subr.bf16.mxu0 0
      %816 = vmatpush1.bf16.msra.mxu0 0
      %817 = vmatprep.subr.bf16.mxu0 0
      %818 = vmatpush1.bf16.msra.mxu0 0
      %819 = vmatprep.subr.bf16.mxu0 0
      %820 = vmatpush1.bf16.msra.mxu0 0
      %821 = vmatprep.subr.bf16.mxu0 0
      %822 = vmatpush1.bf16.msra.mxu0 0
      %823 = vmatprep.subr.bf16.mxu0 0
      %824 = vmatpush1.bf16.msra.mxu0 0
      %825 = vmatprep.subr.bf16.mxu0 0
      %826 = vmatpush1.bf16.msra.mxu0 0
      %827 = vmatprep.subr.bf16.mxu0 0
      %828 = vmatpush1.bf16.msra.mxu0 0
      %829 = vmatprep.subr.bf16.mxu0 0
      %830 = vmatpush1.bf16.msra.mxu0 0
      %831 = vmatprep.subr.bf16.mxu0 0
      %832 = vmatpush1.bf16.msra.mxu0 0
      %833 = vmatprep.subr.bf16.mxu0 0
      %834 = vmatpush1.bf16.msra.mxu0 0
      %835 = vmatprep.subr.bf16.mxu0 0
      %836 = vmatpush1.bf16.msra.mxu0 0
      %837 = vmatprep.subr.bf16.mxu0 0
      %838 = vmatpush1.bf16.msra.mxu0 0
      %839 = vmatprep.subr.bf16.mxu0 0
      %840 = vmatpush1.bf16.msra.mxu0 0
      %841 = vmatprep.mubr.bf16.mxu0 0
      %842 = vmatmul.mubr.bf16.gmra.mrb[0].mxu0 %v807
      %v843 = vpop.f32.mrb[0].mxu0
      %v844 = vadd.f32 %v791, %v843
      %v845 = vpop.f32.mrb[0].mxu0
      %v846 = vpop.f32.mrb[0].mxu0
      %v847 = vpop.f32.mrb[0].mxu0
      %848 = vdwg.mxu0
      %v849 = vadd.f32 %v844, %v780
      %850 = vst.msk [vmem:[%s295] sm:$0xff] %vm805, %v849
      %p851 = scmp.lt.s32.totalorder %s20, 1
      %s852 = scalar_select %p851, %s20, 1
      %p853 = scmp.lt.s32.totalorder %s21, 0
      %s854 = scalar_select %p853, %s21, 0
      %s855 = sadd.s32 %s854, %s852
      %s856 = smul.addr %s855, 8
      %s857 = scalar_lea.vmem %s5, %s856
      // Predicated region
      $region41: #{decoder_forward.16} parent=39 // pred_check
        %p858 = pneg %p172
      $region42: #{decoder_forward.16} parent=39 // pred_check_branch
        %860 = sbr.rel (%p858) target = $region44
      $region43: #{decoder_forward.16} parent=39 // pred_region
        _
      $region44: #{decoder_forward.16} parent=39 // pred_fallthru
        _
    $region40: #{decoder_forward.16} parent=5 // pred_fallthru
      _
    %p861 = scmp.le.s32.totalorder 2, %s11
    // Predicated region
    $region45: #{decoder_forward.16} parent=5 // pred_check
      %p862 = pneg %p861
    $region46: #{decoder_forward.16} parent=5 // pred_check_branch
      %864 = sbr.rel (%p862) target = $region48
    $region47: #{decoder_forward.16} parent=5 // pred_region
      %s865 = ssub.s32 %s11, 2
      // Predicated region
      $region49: #{decoder_forward.16} parent=47 // pred_check
        %p866 = pneg %p178
      $region50: #{decoder_forward.16} parent=47 // pred_check_branch
        %868 = sbr.rel (%p866) target = $region52
      $region51: #{decoder_forward.16} parent=47 // pred_region
        %p869 = scmp.lt.s32.totalorder %s22, 1
        %s870 = scalar_select %p869, %s22, 1
        %p871 = scmp.lt.s32.totalorder %s23, 0
        %s872 = scalar_select %p871, %s23, 0
        %s873 = sadd.s32 %s872, %s870
        %s874 = smul.addr %s873, 8
        %s875 = scalar_lea.vmem %s5, %s874
      $region52: #{decoder_forward.16} parent=47 // pred_fallthru
        _
    $region48: #{decoder_forward.16} parent=5 // pred_fallthru
      _
  $region6: #{decoder_forward.16} parent=0 // loop_footer
    %s15 = sadd.s32 1, %s11
  $region7: #{decoder_forward.16} parent=0 // loop_footer_branch
    %10 = sbr.rel target = $region3
  $region8: #{decoder_forward.16} parent=0 // loop_exit
    _

// kernel: decoder_forward.18
$region0: #{decoder_forward.18}
  #allocation0 [shape = 'u32[]', space=smem, size = 0x4, offset = 0x4, fixed_abs, tag = 'smem constant byte address 0x4 - core index']
  #allocation1 [shape = 'u32[144,128]{1,0:T(1,128)}', space=vmem, size = 0x12000, scoped, tag = 'internal scratch']
  #allocation2 [shape = 'f32[16,64]{1,0:T(8,128)}', space=vmem, size = 0x2000, scoped, tag = 'scratch operand']
  %s0 = inlined_call_operand.vmem [shape: f32[16,32], index: 0, kind: input, shape index: {}]
  %s1 = inlined_call_operand.vmem [shape: bf16[32,64], index: 1, kind: input, shape index: {}]
  %s2 = inlined_call_operand.vmem [shape: f32[1,64], index: 2, kind: input, shape index: {}]
  %s3 = inlined_call_operand.vmem [shape: f32[16,64], index: 3, kind: output, shape index: {}]
  %s4 = sld [smem:[#allocation0]]
  $region30: #{decoder_forward.18} parent=0
    _
  %s6 = ssub.s32 1, %s4
  %s7 = scalar_select 0, %s6, %s4
  // Predicated region
  $region2: #{decoder_forward.18} parent=0 // pred_check
    _
  $region3: #{decoder_forward.18} parent=0 // pred_check_branch
    %9 = sbr.rel (0) target = $region5
  $region4: #{decoder_forward.18} parent=0 // pred_region
    _
  $region5: #{decoder_forward.18} parent=0 // pred_fallthru
    _
  // Predicated region
  $region6: #{decoder_forward.18} parent=0 // pred_check
    _
  $region7: #{decoder_forward.18} parent=0 // pred_check_branch
    %11 = sbr.rel (0) target = $region9
  $region8: #{decoder_forward.18} parent=0 // pred_region
    _
  $region9: #{decoder_forward.18} parent=0 // pred_fallthru
    _
  // Predicated region
  $region10: #{decoder_forward.18} parent=0 // pred_check
    _
  $region11: #{decoder_forward.18} parent=0 // pred_check_branch
    %13 = sbr.rel (0) target = $region13
  $region12: #{decoder_forward.18} parent=0 // pred_region
    _
  $region13: #{decoder_forward.18} parent=0 // pred_fallthru
    _
  %p15 = scmp.eq.s32.totalorder 0, 0
  // Predicated region
  $region14: #{decoder_forward.18} parent=0 // pred_check
    %p16 = pneg %p15
  $region15: #{decoder_forward.18} parent=0 // pred_check_branch
    %18 = sbr.rel (%p16) target = $region17
  $region16: #{decoder_forward.18} parent=0 // pred_region
    %vm19 = vcmask 523264
    %20 = vst.msk [vmem:[#allocation2] sm:$0xff] %vm19, 0.0
    %21 = vst.msk [vmem:[#allocation2 + $0x8] sm:$0xff] %vm19, 0.0
  $region17: #{decoder_forward.18} parent=0 // pred_fallthru
    _
  %v22 = vld [vmem:[%s0] sm:$0xff]
  %v23 = vld [vmem:[%s0 + $0x8] sm:$0xff]
  %v24 = vpack.c.bf16 %v23, %v22
  %v25 = vld [vmem:[#allocation2] sm:$0xff]
  %v26 = vld [vmem:[#allocation2 + $0x8] sm:$0xff]
  %v27 = vld [vmem:[%s1] sm:$0xf]
  %v28 = vld [vmem:[%s1 + $0x4] sm:$0xf]
  %v29 = vld [vmem:[%s1 + $0x8] sm:$0xf]
  %v30 = vld [vmem:[%s1 + $0xc] sm:$0xf]
  %v35 = vunpack.c.l.b16 %v27
  %v36 = vunpack.c.l.b16 %v28
  %v37 = vunpack.c.l.b16 %v29
  %v38 = vunpack.c.l.b16 %v30
  %v39 = vpack.c.b16 %v36, %v35
  %v40 = vpack.c.b16 %v38, %v37
  %vm43 = vcmask 261120
  %v45 = vsel %vm43, %v24, 0
  %47 = vmatprep.subr.bf16.mxu0 0
  %48 = vmatpush1.bf16.msra.mxu0 %v39
  %49 = vmatprep.subr.bf16.mxu0 0
  %50 = vmatpush1.bf16.msra.mxu0 %v40
  %51 = vmatprep.subr.bf16.mxu0 0
  %52 = vmatpush1.bf16.msra.mxu0 0
  %53 = vmatprep.subr.bf16.mxu0 0
  %54 = vmatpush1.bf16.msra.mxu0 0
  %55 = vmatprep.subr.bf16.mxu0 0
  %56 = vmatpush1.bf16.msra.mxu0 0
  %57 = vmatprep.subr.bf16.mxu0 0
  %58 = vmatpush1.bf16.msra.mxu0 0
  %59 = vmatprep.subr.bf16.mxu0 0
  %60 = vmatpush1.bf16.msra.mxu0 0
  %61 = vmatprep.subr.bf16.mxu0 0
  %62 = vmatpush1.bf16.msra.mxu0 0
  %63 = vmatprep.subr.bf16.mxu0 0
  %64 = vmatpush1.bf16.msra.mxu0 0
  %65 = vmatprep.subr.bf16.mxu0 0
  %66 = vmatpush1.bf16.msra.mxu0 0
  %67 = vmatprep.subr.bf16.mxu0 0
  %68 = vmatpush1.bf16.msra.mxu0 0
  %69 = vmatprep.subr.bf16.mxu0 0
  %70 = vmatpush1.bf16.msra.mxu0 0
  %71 = vmatprep.subr.bf16.mxu0 0
  %72 = vmatpush1.bf16.msra.mxu0 0
  %73 = vmatprep.subr.bf16.mxu0 0
  %74 = vmatpush1.bf16.msra.mxu0 0
  %75 = vmatprep.subr.bf16.mxu0 0
  %76 = vmatpush1.bf16.msra.mxu0 0
  %77 = vmatprep.subr.bf16.mxu0 0
  %78 = vmatpush1.bf16.msra.mxu0 0
  %79 = vmatprep.mubr.bf16.mxu0 0
  %80 = vmatmul.mubr.bf16.gmra.mrb[0].mxu0 %v45
  %v81 = vpop.f32.mrb[0].mxu0
  %v82 = vadd.f32 0.0, %v81
  %v83 = vpop.f32.mrb[0].mxu0
  %v84 = vpop.f32.mrb[0].mxu0
  %v85 = vadd.f32 0.0, %v84
  %v86 = vpop.f32.mrb[0].mxu0
  %87 = vdwg.mxu0
  %v88 = vadd.f32 %v25, %v82
  %v89 = vadd.f32 %v26, %v85
  %vm90 = vcmask 523264
  %91 = vst.msk [vmem:[#allocation2] sm:$0xff] %vm90, %v88
  %92 = vst.msk [vmem:[#allocation2 + $0x8] sm:$0xff] %vm90, %v89
  // Predicated region
  $region18: #{decoder_forward.18} parent=0 // pred_check
    %p93 = pneg %p15
  $region19: #{decoder_forward.18} parent=0 // pred_check_branch
    %95 = sbr.rel (%p93) target = $region21
  $region20: #{decoder_forward.18} parent=0 // pred_region
    %v96 = vld [vmem:[#allocation2] sm:$0xff]
    %v97 = vld [vmem:[#allocation2 + $0x8] sm:$0xff]
    %v98 = vld [vmem:[%s2] sm:$0x1]
    %v100 = vlaneseq
    %v101 = vshrl.u32 %v100, 7
    %v102 = vsub.s32 0, %v101
    %v103 = vrot.slane %v98, %v102
    %v105 = vadd.f32 %v96, %v103
    %v106 = vadd.f32 %v97, %v103
    %107 = vst.msk [vmem:[%s3] sm:$0xff] %vm90, %v105
    %108 = vst.msk [vmem:[%s3 + $0x8] sm:$0xff] %vm90, %v106
  $region21: #{decoder_forward.18} parent=0 // pred_fallthru
    _
  // Predicated region
  $region22: #{decoder_forward.18} parent=0 // pred_check
    _
  $region23: #{decoder_forward.18} parent=0 // pred_check_branch
    %110 = sbr.rel (0) target = $region25
  $region24: #{decoder_forward.18} parent=0 // pred_region
    _
  $region25: #{decoder_forward.18} parent=0 // pred_fallthru
    _
  // Predicated region
  $region26: #{decoder_forward.18} parent=0 // pred_check
    _
  $region27: #{decoder_forward.18} parent=0 // pred_check_branch
    %112 = sbr.rel (0) target = $region29
  $region28: #{decoder_forward.18} parent=0 // pred_region
    _
  $region29: #{decoder_forward.18} parent=0 // pred_fallthru
    _

// kernel: decoder_forward.20
$region0: #{decoder_forward.20}
  #allocation0 [shape = 'u32[]', space=smem, size = 0x4, offset = 0x4, fixed_abs, tag = 'smem constant byte address 0x4 - core index']
  #allocation1 [shape = 'u32[144,128]{1,0:T(1,128)}', space=vmem, size = 0x12000, scoped, tag = 'internal scratch']
  #allocation2 [shape = 'f32[16,64]{1,0:T(8,128)}', space=vmem, size = 0x2000, scoped, tag = 'scratch operand']
  #allocation3 [shape = 'bf16[16,32]{1,0:T(16,128)(2,1)}', space=vmem, size = 0x1000, scoped, tag = 'scratch operand']
  %s0 = inlined_call_operand.vmem [shape: f32[16,32], index: 0, kind: input, shape index: {}]
  %s1 = inlined_call_operand.vmem [shape: bf16[32,64], index: 1, kind: input, shape index: {}]
  %s2 = inlined_call_operand.vmem [shape: f32[1,64], index: 2, kind: input, shape index: {}]
  %s3 = inlined_call_operand.vmem [shape: f32[1,32], index: 3, kind: input, shape index: {}]
  %s4 = inlined_call_operand.vmem [shape: f32[1,32], index: 4, kind: input, shape index: {}]
  %s5 = inlined_call_operand.vmem [shape: f32[16,64], index: 5, kind: output, shape index: {}]
  %s6 = sld [smem:[#allocation0]]
  $region42: #{decoder_forward.20} parent=0
    _
  %s8 = ssub.s32 1, %s6
  %s9 = scalar_select 0, %s8, %s6
  // Predicated region
  $region2: #{decoder_forward.20} parent=0 // pred_check
    _
  $region3: #{decoder_forward.20} parent=0 // pred_check_branch
    %11 = sbr.rel (0) target = $region5
  $region4: #{decoder_forward.20} parent=0 // pred_region
    _
  $region5: #{decoder_forward.20} parent=0 // pred_fallthru
    _
  // Predicated region
  $region6: #{decoder_forward.20} parent=0 // pred_check
    _
  $region7: #{decoder_forward.20} parent=0 // pred_check_branch
    %13 = sbr.rel (0) target = $region9
  $region8: #{decoder_forward.20} parent=0 // pred_region
    _
  $region9: #{decoder_forward.20} parent=0 // pred_fallthru
    _
  // Predicated region
  $region10: #{decoder_forward.20} parent=0 // pred_check
    _
  $region11: #{decoder_forward.20} parent=0 // pred_check_branch
    %15 = sbr.rel (0) target = $region13
  $region12: #{decoder_forward.20} parent=0 // pred_region
    _
  $region13: #{decoder_forward.20} parent=0 // pred_fallthru
    _
  // Predicated region
  $region14: #{decoder_forward.20} parent=0 // pred_check
    _
  $region15: #{decoder_forward.20} parent=0 // pred_check_branch
    %17 = sbr.rel (0) target = $region17
  $region16: #{decoder_forward.20} parent=0 // pred_region
    _
  $region17: #{decoder_forward.20} parent=0 // pred_fallthru
    _
  // Predicated region
  $region18: #{decoder_forward.20} parent=0 // pred_check
    _
  $region19: #{decoder_forward.20} parent=0 // pred_check_branch
    %19 = sbr.rel (0) target = $region21
  $region20: #{decoder_forward.20} parent=0 // pred_region
    _
  $region21: #{decoder_forward.20} parent=0 // pred_fallthru
    _
  %p21 = scmp.eq.s32.totalorder 0, 0
  // Predicated region
  $region22: #{decoder_forward.20} parent=0 // pred_check
    %p22 = pneg %p21
  $region23: #{decoder_forward.20} parent=0 // pred_check_branch
    %24 = sbr.rel (%p22) target = $region25
  $region24: #{decoder_forward.20} parent=0 // pred_region
    %vm25 = vcmask 523264
    %26 = vst.msk [vmem:[#allocation2] sm:$0xff] %vm25, 0.0
    %27 = vst.msk [vmem:[#allocation2 + $0x8] sm:$0xff] %vm25, 0.0
  $region25: #{decoder_forward.20} parent=0 // pred_fallthru
    _
  %p28 = scmp.eq.s32.totalorder 0, 0
  // Predicated region
  $region26: #{decoder_forward.20} parent=0 // pred_check
    %p29 = pneg %p28
  $region27: #{decoder_forward.20} parent=0 // pred_check_branch
    %31 = sbr.rel (%p29) target = $region29
  $region28: #{decoder_forward.20} parent=0 // pred_region
    %v32 = vld [vmem:[%s0] sm:$0xff]
    %v33 = vld [vmem:[%s0 + $0x8] sm:$0xff]
    %vm34 = vcmask 261120
    %v35 = vsel %vm34, %v32, 0.0
    %36 = vadd.xlane.f32.xlu0 %v35
    %v37 = vpop.xlane.xlu0 %36
    %v38 = vsel %vm34, %v33, 0.0
    %39 = vadd.xlane.f32.xlu0 %v38
    %v40 = vpop.xlane.xlu0 %39
    %v41 = vrcp.pop 32.0
    %v42 = vmul.f32 %v37, %v41
    %v43 = vmul.f32 %v40, %v41
    %v44 = vsub.f32 %v32, %v42
    %v45 = vsub.f32 %v33, %v43
    %v46 = vmul.f32 %v44, %v44
    %v47 = vmul.f32 %v45, %v45
    %v48 = vsel %vm34, %v46, 0.0
    %49 = vadd.xlane.f32.xlu0 %v48
    %v50 = vpop.xlane.xlu0 %49
    %v51 = vsel %vm34, %v47, 0.0
    %52 = vadd.xlane.f32.xlu0 %v51
    %v53 = vpop.xlane.xlu0 %52
    %v54 = vrcp.pop 31.0
    %v55 = vmul.f32 %v50, %v54
    %v56 = vmul.f32 %v53, %v54
    %v57 = vrsqrt.pop %v55
    %v58 = vmul.f32 %v55, %v57
    %vm59 = vcmp.eq.f32.partialorder %v55, inf
    %v60 = vsel %vm59, %v55, %v58
    %vm61 = vcmp.eq.f32.partialorder %v55, 0.0
    %v62 = vand.u32 %v55, 2147483648
    %v63 = vsel %vm61, %v62, %v60
    %v64 = vrsqrt.pop %v56
    %v65 = vmul.f32 %v56, %v64
    %vm66 = vcmp.eq.f32.partialorder %v56, inf
    %v67 = vsel %vm66, %v56, %v65
    %vm68 = vcmp.eq.f32.partialorder %v56, 0.0
    %v69 = vand.u32 %v56, 2147483648
    %v70 = vsel %vm68, %v69, %v67
    %v71 = vadd.f32 %v63, 1e-06
    %v72 = vadd.f32 %v70, 1e-06
    %v73 = vrcp.pop %v71
    %v74 = vrcp.pop %v72
    %v75 = vld [vmem:[%s3] sm:$0x1]
    %v77 = vlaneseq
    %v78 = vshrl.u32 %v77, 7
    %v79 = vsub.s32 0, %v78
    %v80 = vrot.slane %v75, %v79
    %v82 = vmul.f32 %v80, %v44
    %v83 = vmul.f32 %v80, %v45
    %v84 = vmul.f32 %v82, %v73
    %v85 = vmul.f32 %v83, %v74
    %v86 = vld [vmem:[%s4] sm:$0x1]
    %v88 = vlaneseq
    %v89 = vshrl.u32 %v88, 7
    %v90 = vsub.s32 0, %v89
    %v91 = vrot.slane %v86, %v90
    %v93 = vadd.f32 %v84, %v91
    %v94 = vadd.f32 %v85, %v91
    %v95 = vpack.c.bf16 %v94, %v93
    %96 = vst.msk [vmem:[#allocation3] sm:$0xff] %vm34, %v95
  $region29: #{decoder_forward.20} parent=0 // pred_fallthru
    _
  %v97 = vld [vmem:[#allocation3] sm:$0xff]
  %v98 = vld [vmem:[#allocation2] sm:$0xff]
  %v99 = vld [vmem:[#allocation2 + $0x8] sm:$0xff]
  %v100 = vld [vmem:[%s1] sm:$0xf]
  %v101 = vld [vmem:[%s1 + $0x4] sm:$0xf]
  %v102 = vld [vmem:[%s1 + $0x8] sm:$0xf]
  %v103 = vld [vmem:[%s1 + $0xc] sm:$0xf]
  %v108 = vunpack.c.l.b16 %v100
  %v109 = vunpack.c.l.b16 %v101
  %v110 = vunpack.c.l.b16 %v102
  %v111 = vunpack.c.l.b16 %v103
  %v112 = vpack.c.b16 %v109, %v108
  %v113 = vpack.c.b16 %v111, %v110
  %vm116 = vcmask 261120
  %v118 = vsel %vm116, %v97, 0
  %120 = vmatprep.subr.bf16.mxu0 0
  %121 = vmatpush1.bf16.msra.mxu0 %v112
  %122 = vmatprep.subr.bf16.mxu0 0
  %123 = vmatpush1.bf16.msra.mxu0 %v113
  %124 = vmatprep.subr.bf16.mxu0 0
  %125 = vmatpush1.bf16.msra.mxu0 0
  %126 = vmatprep.subr.bf16.mxu0 0
  %127 = vmatpush1.bf16.msra.mxu0 0
  %128 = vmatprep.subr.bf16.mxu0 0
  %129 = vmatpush1.bf16.msra.mxu0 0
  %130 = vmatprep.subr.bf16.mxu0 0
  %131 = vmatpush1.bf16.msra.mxu0 0
  %132 = vmatprep.subr.bf16.mxu0 0
  %133 = vmatpush1.bf16.msra.mxu0 0
  %134 = vmatprep.subr.bf16.mxu0 0
  %135 = vmatpush1.bf16.msra.mxu0 0
  %136 = vmatprep.subr.bf16.mxu0 0
  %137 = vmatpush1.bf16.msra.mxu0 0
  %138 = vmatprep.subr.bf16.mxu0 0
  %139 = vmatpush1.bf16.msra.mxu0 0
  %140 = vmatprep.subr.bf16.mxu0 0
  %141 = vmatpush1.bf16.msra.mxu0 0
  %142 = vmatprep.subr.bf16.mxu0 0
  %143 = vmatpush1.bf16.msra.mxu0 0
  %144 = vmatprep.subr.bf16.mxu0 0
  %145 = vmatpush1.bf16.msra.mxu0 0
  %146 = vmatprep.subr.bf16.mxu0 0
  %147 = vmatpush1.bf16.msra.mxu0 0
  %148 = vmatprep.subr.bf16.mxu0 0
  %149 = vmatpush1.bf16.msra.mxu0 0
  %150 = vmatprep.subr.bf16.mxu0 0
  %151 = vmatpush1.bf16.msra.mxu0 0
  %152 = vmatprep.mubr.bf16.mxu0 0
  %153 = vmatmul.mubr.bf16.gmra.mrb[0].mxu0 %v118
  %v154 = vpop.f32.mrb[0].mxu0
  %v155 = vadd.f32 0.0, %v154
  %v156 = vpop.f32.mrb[0].mxu0
  %v157 = vpop.f32.mrb[0].mxu0
  %v158 = vadd.f32 0.0, %v157
  %v159 = vpop.f32.mrb[0].mxu0
  %160 = vdwg.mxu0
  %v161 = vadd.f32 %v98, %v155
  %v162 = vadd.f32 %v99, %v158
  %vm163 = vcmask 523264
  %164 = vst.msk [vmem:[#allocation2] sm:$0xff] %vm163, %v161
  %165 = vst.msk [vmem:[#allocation2 + $0x8] sm:$0xff] %vm163, %v162
  // Predicated region
  $region30: #{decoder_forward.20} parent=0 // pred_check
    %p166 = pneg %p21
  $region31: #{decoder_forward.20} parent=0 // pred_check_branch
    %168 = sbr.rel (%p166) target = $region33
  $region32: #{decoder_forward.20} parent=0 // pred_region
    %v169 = vld [vmem:[#allocation2] sm:$0xff]
    %v170 = vld [vmem:[#allocation2 + $0x8] sm:$0xff]
    %v171 = vld [vmem:[%s2] sm:$0x1]
    %v173 = vlaneseq
    %v174 = vshrl.u32 %v173, 7
    %v175 = vsub.s32 0, %v174
    %v176 = vrot.slane %v171, %v175
    %v178 = vadd.f32 %v169, %v176
    %v179 = vadd.f32 %v170, %v176
    %v180 = vmax.f32 %v178, 0.0
    %v181 = vmax.f32 %v179, 0.0
    %182 = vst.msk [vmem:[%s5] sm:$0xff] %vm163, %v180
    %183 = vst.msk [vmem:[%s5 + $0x8] sm:$0xff] %vm163, %v181
  $region33: #{decoder_forward.20} parent=0 // pred_fallthru
    _
  // Predicated region
  $region34: #{decoder_forward.20} parent=0 // pred_check
    _
  $region35: #{decoder_forward.20} parent=0 // pred_check_branch
    %185 = sbr.rel (0) target = $region37
  $region36: #{decoder_forward.20} parent=0 // pred_region
    _
  $region37: #{decoder_forward.20} parent=0 // pred_fallthru
    _
  // Predicated region
  $region38: #{decoder_forward.20} parent=0 // pred_check
    _
  $region39: #{decoder_forward.20} parent=0 // pred_check_branch
    %187 = sbr.rel (0) target = $region41
  $region40: #{decoder_forward.20} parent=0 // pred_region
    _
  $region41: #{decoder_forward.20} parent=0 // pred_fallthru
    _

// kernel: decoder_forward.29
$region0: #{decoder_forward.29}
  #allocation0 [shape = 'u32[]', space=smem, size = 0x4, offset = 0x4, fixed_abs, tag = 'smem constant byte address 0x4 - core index']
  #allocation1 [shape = 'u32[144,128]{1,0:T(1,128)}', space=vmem, size = 0x12000, scoped, tag = 'internal scratch']
  %s0 = inlined_call_operand.vmem [shape: f32[16,32], index: 0, kind: input, shape index: {}]
  %s1 = inlined_call_operand.vmem [shape: f32[1,32], index: 1, kind: input, shape index: {}]
  %s2 = inlined_call_operand.vmem [shape: f32[1,32], index: 2, kind: input, shape index: {}]
  %s3 = inlined_call_operand.hbm [shape: f32[16,32], index: 3, kind: output, shape index: {}]
  %s4 = sld [smem:[#allocation0]]
  $region22: #{decoder_forward.29} parent=0
    _
  %s6 = ssub.s32 1, %s4
  %s7 = scalar_select 0, %s6, %s4
  $region1: #{decoder_forward.29} parent=0
    #allocation2 [shape = 'u8[8192]{0}', space=vmem, size = 0x2000, scoped, tag = 'output window, operand 0, single buffered']
    #allocation3 [shape = 's32[1]{0}', space=sflag, size = 0x4, scoped, tag = 'scoped memory for decoder_forward.29']
    %8 = vsyncpa [#allocation3], 0
    // Predicated region
    $region2: #{decoder_forward.29} parent=1 // pred_check
      _
    $region3: #{decoder_forward.29} parent=1 // pred_check_branch
      %10 = sbr.rel (0) target = $region5
    $region4: #{decoder_forward.29} parent=1 // pred_region
      _
    $region5: #{decoder_forward.29} parent=1 // pred_fallthru
      _
    // Predicated region
    $region6: #{decoder_forward.29} parent=1 // pred_check
      _
    $region7: #{decoder_forward.29} parent=1 // pred_check_branch
      %12 = sbr.rel (0) target = $region9
    $region8: #{decoder_forward.29} parent=1 // pred_region
      _
    $region9: #{decoder_forward.29} parent=1 // pred_fallthru
      _
    // Predicated region
    $region10: #{decoder_forward.29} parent=1 // pred_check
      _
    $region11: #{decoder_forward.29} parent=1 // pred_check_branch
      %14 = sbr.rel (0) target = $region13
    $region12: #{decoder_forward.29} parent=1 // pred_region
      _
    $region13: #{decoder_forward.29} parent=1 // pred_fallthru
      _
    %v15 = vld [vmem:[%s0] sm:$0xff]
    %v16 = vld [vmem:[%s0 + $0x8] sm:$0xff]
    %vm17 = vcmask 261120
    %v18 = vsel %vm17, %v15, 0.0
    %19 = vadd.xlane.f32.xlu0 %v18
    %v20 = vpop.xlane.xlu0 %19
    %v21 = vsel %vm17, %v16, 0.0
    %22 = vadd.xlane.f32.xlu0 %v21
    %v23 = vpop.xlane.xlu0 %22
    %v24 = vrcp.pop 32.0
    %v25 = vmul.f32 %v20, %v24
    %v26 = vmul.f32 %v23, %v24
    %v27 = vsub.f32 %v15, %v25
    %v28 = vsub.f32 %v16, %v26
    %v29 = vmul.f32 %v27, %v27
    %v30 = vmul.f32 %v28, %v28
    %v31 = vsel %vm17, %v29, 0.0
    %32 = vadd.xlane.f32.xlu0 %v31
    %v33 = vpop.xlane.xlu0 %32
    %v34 = vsel %vm17, %v30, 0.0
    %35 = vadd.xlane.f32.xlu0 %v34
    %v36 = vpop.xlane.xlu0 %35
    %v37 = vrcp.pop 31.0
    %v38 = vmul.f32 %v33, %v37
    %v39 = vmul.f32 %v36, %v37
    %v40 = vrsqrt.pop %v38
    %v41 = vmul.f32 %v38, %v40
    %vm42 = vcmp.eq.f32.partialorder %v38, inf
    %v43 = vsel %vm42, %v38, %v41
    %vm44 = vcmp.eq.f32.partialorder %v38, 0.0
    %v45 = vand.u32 %v38, 2147483648
    %v46 = vsel %vm44, %v45, %v43
    %v47 = vrsqrt.pop %v39
    %v48 = vmul.f32 %v39, %v47
    %vm49 = vcmp.eq.f32.partialorder %v39, inf
    %v50 = vsel %vm49, %v39, %v48
    %vm51 = vcmp.eq.f32.partialorder %v39, 0.0
    %v52 = vand.u32 %v39, 2147483648
    %v53 = vsel %vm51, %v52, %v50
    %v54 = vadd.f32 %v46, 1e-06
    %v55 = vadd.f32 %v53, 1e-06
    %v56 = vrcp.pop %v54
    %v57 = vrcp.pop %v55
    %v58 = vld [vmem:[%s1] sm:$0x1]
    %v60 = vlaneseq
    %v61 = vshrl.u32 %v60, 7
    %v62 = vsub.s32 0, %v61
    %v63 = vrot.slane %v58, %v62
    %v65 = vmul.f32 %v63, %v27
    %v66 = vmul.f32 %v63, %v28
    %v67 = vmul.f32 %v65, %v56
    %v68 = vmul.f32 %v66, %v57
    %v69 = vld [vmem:[%s2] sm:$0x1]
    %v71 = vlaneseq
    %v72 = vshrl.u32 %v71, 7
    %v73 = vsub.s32 0, %v72
    %v74 = vrot.slane %v69, %v73
    %v76 = vadd.f32 %v67, %v74
    %v77 = vadd.f32 %v68, %v74
    %78 = vst.msk [vmem:[#allocation2] sm:$0xff] %vm17, %v76
    %79 = vst.msk [vmem:[#allocation2 + $0x8] sm:$0xff] %vm17, %v77
    // Predicated region
    $region14: #{decoder_forward.29} parent=1 // pred_check
      _
    $region15: #{decoder_forward.29} parent=1 // pred_check_branch
      %81 = sbr.rel (0) target = $region17
    $region16: #{decoder_forward.29} parent=1 // pred_region
      %s83 = ssub.s32 256, 256
      %84 = vsyncadd [#allocation3], %s83
      %s85 = sshll.u32 [#allocation2], 4
      %s86 = int_to_ptr.vmem [resolvable:$true] %s85
      %91 = dma.vmem_to_hbm [thread:$0]  %s86, 256, %s3, [#allocation3], 128, 128, 8
    $region17: #{decoder_forward.29} parent=1 // pred_fallthru
      _
    // Predicated region
    $region18: #{decoder_forward.29} parent=1 // pred_check
      _
    $region19: #{decoder_forward.29} parent=1 // pred_check_branch
      %93 = sbr.rel (0) target = $region21
    $region20: #{decoder_forward.29} parent=1 // pred_region
      %94 = dma.done [#allocation3], 256
    $region21: #{decoder_forward.29} parent=1 // pred_fallthru
      _
    %95 = vsyncpa [#allocation3], 1

// kernel: decoder_forward.21
$region0: #{decoder_forward.21}
  #allocation0 [shape = 'u32[]', space=smem, size = 0x4, offset = 0x4, fixed_abs, tag = 'smem constant byte address 0x4 - core index']
  #allocation1 [shape = 'u32[144,128]{1,0:T(1,128)}', space=vmem, size = 0x12000, scoped, tag = 'internal scratch']
  #allocation2 [shape = 'f32[16,32]{1,0:T(8,128)}', space=vmem, size = 0x2000, scoped, tag = 'scratch operand']
  %s0 = inlined_call_operand.vmem [shape: f32[16,64], index: 0, kind: input, shape index: {}]
  %s1 = inlined_call_operand.vmem [shape: bf16[64,32], index: 1, kind: input, shape index: {}]
  %s2 = inlined_call_operand.vmem [shape: f32[1,32], index: 2, kind: input, shape index: {}]
  %s3 = inlined_call_operand.vmem [shape: f32[16,32], index: 3, kind: input, shape index: {}]
  %s4 = inlined_call_operand.vmem [shape: f32[16,32], index: 4, kind: output, shape index: {}]
  %s5 = sld [smem:[#allocation0]]
  $region34: #{decoder_forward.21} parent=0
    _
  %s7 = ssub.s32 1, %s5
  %s8 = scalar_select 0, %s7, %s5
  // Predicated region
  $region2: #{decoder_forward.21} parent=0 // pred_check
    _
  $region3: #{decoder_forward.21} parent=0 // pred_check_branch
    %10 = sbr.rel (0) target = $region5
  $region4: #{decoder_forward.21} parent=0 // pred_region
    _
  $region5: #{decoder_forward.21} parent=0 // pred_fallthru
    _
  // Predicated region
  $region6: #{decoder_forward.21} parent=0 // pred_check
    _
  $region7: #{decoder_forward.21} parent=0 // pred_check_branch
    %12 = sbr.rel (0) target = $region9
  $region8: #{decoder_forward.21} parent=0 // pred_region
    _
  $region9: #{decoder_forward.21} parent=0 // pred_fallthru
    _
  // Predicated region
  $region10: #{decoder_forward.21} parent=0 // pred_check
    _
  $region11: #{decoder_forward.21} parent=0 // pred_check_branch
    %14 = sbr.rel (0) target = $region13
  $region12: #{decoder_forward.21} parent=0 // pred_region
    _
  $region13: #{decoder_forward.21} parent=0 // pred_fallthru
    _
  // Predicated region
  $region14: #{decoder_forward.21} parent=0 // pred_check
    _
  $region15: #{decoder_forward.21} parent=0 // pred_check_branch
    %16 = sbr.rel (0) target = $region17
  $region16: #{decoder_forward.21} parent=0 // pred_region
    _
  $region17: #{decoder_forward.21} parent=0 // pred_fallthru
    _
  %p18 = scmp.eq.s32.totalorder 0, 0
  // Predicated region
  $region18: #{decoder_forward.21} parent=0 // pred_check
    %p19 = pneg %p18
  $region19: #{decoder_forward.21} parent=0 // pred_check_branch
    %21 = sbr.rel (%p19) target = $region21
  $region20: #{decoder_forward.21} parent=0 // pred_region
    %vm22 = vcmask 261120
    %23 = vst.msk [vmem:[#allocation2] sm:$0xff] %vm22, 0.0
    %24 = vst.msk [vmem:[#allocation2 + $0x8] sm:$0xff] %vm22, 0.0
  $region21: #{decoder_forward.21} parent=0 // pred_fallthru
    _
  %v25 = vld [vmem:[%s0] sm:$0xff]
  %v26 = vld [vmem:[%s0 + $0x8] sm:$0xff]
  %v27 = vpack.c.bf16 %v26, %v25
  %v28 = vld [vmem:[#allocation2] sm:$0xff]
  %v29 = vld [vmem:[#allocation2 + $0x8] sm:$0xff]
  %v30 = vld [vmem:[%s1] sm:$0xf]
  %v31 = vld [vmem:[%s1 + $0x4] sm:$0xf]
  %v32 = vld [vmem:[%s1 + $0x8] sm:$0xf]
  %v33 = vld [vmem:[%s1 + $0xc] sm:$0xf]
  %v34 = vld [vmem:[%s1 + $0x10] sm:$0xf]
  %v35 = vld [vmem:[%s1 + $0x14] sm:$0xf]
  %v36 = vld [vmem:[%s1 + $0x18] sm:$0xf]
  %v37 = vld [vmem:[%s1 + $0x1c] sm:$0xf]
  %v46 = vunpack.c.l.b16 %v30
  %v47 = vunpack.c.l.b16 %v31
  %v48 = vunpack.c.l.b16 %v32
  %v49 = vunpack.c.l.b16 %v33
  %v50 = vunpack.c.l.b16 %v34
  %v51 = vunpack.c.l.b16 %v35
  %v52 = vunpack.c.l.b16 %v36
  %v53 = vunpack.c.l.b16 %v37
  %v54 = vpack.c.b16 %v47, %v46
  %v55 = vpack.c.b16 %v49, %v48
  %v56 = vpack.c.b16 %v51, %v50
  %v57 = vpack.c.b16 %v53, %v52
  %vm62 = vcmask 523264
  %v64 = vsel %vm62, %v27, 0
  %66 = vmatprep.subr.bf16.mxu0 0
  %67 = vmatpush1.bf16.msra.mxu0 %v54
  %68 = vmatprep.subr.bf16.mxu0 0
  %69 = vmatpush1.bf16.msra.mxu0 %v55
  %70 = vmatprep.subr.bf16.mxu0 0
  %71 = vmatpush1.bf16.msra.mxu0 %v56
  %72 = vmatprep.subr.bf16.mxu0 0
  %73 = vmatpush1.bf16.msra.mxu0 %v57
  %74 = vmatprep.subr.bf16.mxu0 0
  %75 = vmatpush1.bf16.msra.mxu0 0
  %76 = vmatprep.subr.bf16.mxu0 0
  %77 = vmatpush1.bf16.msra.mxu0 0
  %78 = vmatprep.subr.bf16.mxu0 0
  %79 = vmatpush1.bf16.msra.mxu0 0
  %80 = vmatprep.subr.bf16.mxu0 0
  %81 = vmatpush1.bf16.msra.mxu0 0
  %82 = vmatprep.subr.bf16.mxu0 0
  %83 = vmatpush1.bf16.msra.mxu0 0
  %84 = vmatprep.subr.bf16.mxu0 0
  %85 = vmatpush1.bf16.msra.mxu0 0
  %86 = vmatprep.subr.bf16.mxu0 0
  %87 = vmatpush1.bf16.msra.mxu0 0
  %88 = vmatprep.subr.bf16.mxu0 0
  %89 = vmatpush1.bf16.msra.mxu0 0
  %90 = vmatprep.subr.bf16.mxu0 0
  %91 = vmatpush1.bf16.msra.mxu0 0
  %92 = vmatprep.subr.bf16.mxu0 0
  %93 = vmatpush1.bf16.msra.mxu0 0
  %94 = vmatprep.subr.bf16.mxu0 0
  %95 = vmatpush1.bf16.msra.mxu0 0
  %96 = vmatprep.subr.bf16.mxu0 0
  %97 = vmatpush1.bf16.msra.mxu0 0
  %98 = vmatprep.mubr.bf16.mxu0 0
  %99 = vmatmul.mubr.bf16.gmra.mrb[0].mxu0 %v64
  %v100 = vpop.f32.mrb[0].mxu0
  %v101 = vadd.f32 0.0, %v100
  %v102 = vpop.f32.mrb[0].mxu0
  %v103 = vpop.f32.mrb[0].mxu0
  %v104 = vadd.f32 0.0, %v103
  %v105 = vpop.f32.mrb[0].mxu0
  %106 = vdwg.mxu0
  %v107 = vadd.f32 %v28, %v101
  %v108 = vadd.f32 %v29, %v104
  %vm109 = vcmask 261120
  %110 = vst.msk [vmem:[#allocation2] sm:$0xff] %vm109, %v107
  %111 = vst.msk [vmem:[#allocation2 + $0x8] sm:$0xff] %vm109, %v108
  // Predicated region
  $region22: #{decoder_forward.21} parent=0 // pred_check
    %p112 = pneg %p18
  $region23: #{decoder_forward.21} parent=0 // pred_check_branch
    %114 = sbr.rel (%p112) target = $region25
  $region24: #{decoder_forward.21} parent=0 // pred_region
    %v115 = vld [vmem:[#allocation2] sm:$0xff]
    %v116 = vld [vmem:[#allocation2 + $0x8] sm:$0xff]
    %v117 = vld [vmem:[%s2] sm:$0x1]
    %v119 = vlaneseq
    %v120 = vshrl.u32 %v119, 7
    %v121 = vsub.s32 0, %v120
    %v122 = vrot.slane %v117, %v121
    %v124 = vadd.f32 %v115, %v122
    %v125 = vadd.f32 %v116, %v122
    %v126 = vld [vmem:[%s3] sm:$0xff]
    %v127 = vld [vmem:[%s3 + $0x8] sm:$0xff]
    %v128 = vadd.f32 %v124, %v126
    %v129 = vadd.f32 %v125, %v127
    %130 = vst.msk [vmem:[%s4] sm:$0xff] %vm109, %v128
    %131 = vst.msk [vmem:[%s4 + $0x8] sm:$0xff] %vm109, %v129
  $region25: #{decoder_forward.21} parent=0 // pred_fallthru
    _
  // Predicated region
  $region26: #{decoder_forward.21} parent=0 // pred_check
    _
  $region27: #{decoder_forward.21} parent=0 // pred_check_branch
    %133 = sbr.rel (0) target = $region29
  $region28: #{decoder_forward.21} parent=0 // pred_region
    _
  $region29: #{decoder_forward.21} parent=0 // pred_fallthru
    _
  // Predicated region
  $region30: #{decoder_forward.21} parent=0 // pred_check
    _
  $region31: #{decoder_forward.21} parent=0 // pred_check_branch
    %135 = sbr.rel (0) target = $region33
  $region32: #{decoder_forward.21} parent=0 // pred_region
    _
  $region33: #{decoder_forward.21} parent=0 // pred_fallthru
    _

// kernel: decoder_forward.19
$region0: #{decoder_forward.19}
  #allocation0 [shape = 'u32[]', space=smem, size = 0x4, offset = 0x4, fixed_abs, tag = 'smem constant byte address 0x4 - core index']
  #allocation1 [shape = 'u32[144,128]{1,0:T(1,128)}', space=vmem, size = 0x12000, scoped, tag = 'internal scratch']
  #allocation2 [shape = 'bf16[8,32]{1,0:T(8,128)(2,1)}', space=vmem, size = 0x800, scoped, tag = 'scratch operand']
  %s0 = inlined_call_operand.vmem [shape: f32[2,8,32], index: 0, kind: input, shape index: {}]
  %s1 = inlined_call_operand.vmem [shape: f32[2,8,64], index: 1, kind: input, shape index: {}]
  %s2 = inlined_call_operand.vmem [shape: s8[2,8,8], index: 2, kind: input, shape index: {}]
  %s3 = inlined_call_operand.vmem [shape: bf16[32,32], index: 3, kind: input, shape index: {}]
  %s4 = inlined_call_operand.vmem [shape: f32[1,32], index: 4, kind: input, shape index: {}]
  %s5 = inlined_call_operand.vmem [shape: f32[2,8,32], index: 5, kind: input, shape index: {}]
  %s6 = inlined_call_operand.vmem [shape: f32[2,8,32], index: 6, kind: output, shape index: {}]
  %s7 = sld [smem:[#allocation0]]
  $region57: #{decoder_forward.19} parent=0
    _
  %s9 = ssub.s32 1, %s7
  %s10 = scalar_select 0, %s9, %s7
  loop: start=0, step=1, limit=4
  $region2: #{decoder_forward.19} parent=0 // loop_pre_header
    _
  $region3: #{decoder_forward.19} parent=0 // loop_header
    %s12 = sphi 0, %s16
    %p13 = scmp.ge.s32.totalorder %s12, 4
    %s19 = sphi 0, %s31
    %s20 = sphi 0, %s27
    %s21 = sphi 0, %s19
    %s22 = sphi 0, %s20
    %s23 = sphi 0, %s21
    %s24 = sphi 0, %s22
    %s36 = sphi 0, %s38
    %s39 = sphi 0, %s36
    %s40 = sphi 0, %s39
    %s56 = sphi 0, %s40
    %s62 = sphi 0, %s64
    %s65 = sphi 0, %s62
    %s66 = sphi 0, %s65
    %s82 = sphi 0, %s66
    %s90 = sphi 0, %s92
    %s93 = sphi 0, %s90
    %s94 = sphi 0, %s93
    %s110 = sphi 0, %s94
    %s114 = sphi 0, %s114
    %s116 = sphi 0, %s114
    %s117 = sphi 0, %s116
    %s131 = sphi 0, %s117
    %s135 = sphi 0, %s135
    %s137 = sphi 0, %s135
    %s138 = sphi 0, %s137
    %s152 = sphi 0, %s138
    %s160 = sphi 0, %s162
    %s163 = sphi 0, %s160
    %s164 = sphi 0, %s163
    %s180 = sphi 0, %s164
    %s188 = sphi 0, %s190
    %s191 = sphi 0, %s188
    %s192 = sphi 0, %s191
    %s208 = sphi 0, %s192
  $region4: #{decoder_forward.19} parent=0 // loop_header_branch
    %15 = sbr.rel (%p13) target = $region8
  $region5: #{decoder_forward.19} parent=0 // loop_body
    %s17 = ssub.s32 %s12, 1
    %s18 = ssub.s32 %s12, 2
    %s25 = sadd.s32 1, %s20
    %p26 = scmp.ge.s32.totalorder %s25, 1
    %s27 = scalar_select %p26, 0, %s25
    %s28 = sadd.s32 1, %s19
    %s29 = scalar_select %p26, %s28, %s19
    %p30 = scmp.ge.s32.totalorder %s29, 2
    %s31 = scalar_select %p30, 0, %s29
    %s32 = ssub.s32 %s19, %s31
    %s33 = ssub.s32 %s20, %s27
    %s34 = sor.u32 %s32, %s33
    %p35 = scmp.eq.s32.totalorder %s34, 0
    %s37 = sadd.s32 %s36, 1
    %s38 = scalar_select %p35, %s36, %s37
    %p41 = pneg %p35
    %p42 = scmp.eq.s32.totalorder %s12, 1
    %p43 = por %p41, %p42
    %p44 = scmp.ne.s32.totalorder %s36, %s39
    %p45 = scmp.eq.s32.totalorder %s12, 0
    %p46 = por %p44, %p45
    %p47 = scmp.ne.s32.totalorder %s36, %s39
    %p48 = scmp.eq.s32.totalorder %s17, 1
    %p49 = por %p47, %p48
    %p50 = scmp.ne.s32.totalorder %s39, %s40
    %p51 = scmp.eq.s32.totalorder %s17, 0
    %p52 = por %p50, %p51
    %p53 = scmp.ne.s32.totalorder %s39, %s40
    %p54 = scmp.eq.s32.totalorder %s18, 1
    %p55 = por %p53, %p54
    %p57 = scmp.ne.s32.totalorder %s40, %s56
    %p58 = scmp.eq.s32.totalorder %s18, 0
    %p59 = por %p57, %p58
    %s60 = ssub.s32 %s19, %s31
    %p61 = scmp.eq.s32.totalorder %s60, 0
    %s63 = sadd.s32 %s62, 1
    %s64 = scalar_select %p61, %s62, %s63
    %p67 = pneg %p61
    %p68 = scmp.eq.s32.totalorder %s12, 1
    %p69 = por %p67, %p68
    %p70 = scmp.ne.s32.totalorder %s62, %s65
    %p71 = scmp.eq.s32.totalorder %s12, 0
    %p72 = por %p70, %p71
    %p73 = scmp.ne.s32.totalorder %s62, %s65
    %p74 = scmp.eq.s32.totalorder %s17, 1
    %p75 = por %p73, %p74
    %p76 = scmp.ne.s32.totalorder %s65, %s66
    %p77 = scmp.eq.s32.totalorder %s17, 0
    %p78 = por %p76, %p77
    %p79 = scmp.ne.s32.totalorder %s65, %s66
    %p80 = scmp.eq.s32.totalorder %s18, 1
    %p81 = por %p79, %p80
    %p83 = scmp.ne.s32.totalorder %s66, %s82
    %p84 = scmp.eq.s32.totalorder %s18, 0
    %p85 = por %p83, %p84
    %s86 = ssub.s32 %s19, %s31
    %s87 = ssub.s32 %s20, %s27
    %s88 = sor.u32 %s86, %s87
    %p89 = scmp.eq.s32.totalorder %s88, 0
    %s91 = sadd.s32 %s90, 1
    %s92 = scalar_select %p89, %s90, %s91
    %p95 = pneg %p89
    %p96 = scmp.eq.s32.totalorder %s12, 1
    %p97 = por %p95, %p96
    %p98 = scmp.ne.s32.totalorder %s90, %s93
    %p99 = scmp.eq.s32.totalorder %s12, 0
    %p100 = por %p98, %p99
    %p101 = scmp.ne.s32.totalorder %s90, %s93
    %p102 = scmp.eq.s32.totalorder %s17, 1
    %p103 = por %p101, %p102
    %p104 = scmp.ne.s32.totalorder %s93, %s94
    %p105 = scmp.eq.s32.totalorder %s17, 0
    %p106 = por %p104, %p105
    %p107 = scmp.ne.s32.totalorder %s93, %s94
    %p108 = scmp.eq.s32.totalorder %s18, 1
    %p109 = por %p107, %p108
    %p111 = scmp.ne.s32.totalorder %s94, %s110
    %p112 = scmp.eq.s32.totalorder %s18, 0
    %p113 = por %p111, %p112
    %s115 = sadd.s32 %s114, 1
    %p118 = scmp.eq.s32.totalorder %s12, 1
    %p119 = scmp.ne.s32.totalorder %s114, %s116
    %p120 = scmp.eq.s32.totalorder %s12, 0
    %p121 = por %p119, %p120
    %p122 = scmp.ne.s32.totalorder %s114, %s116
    %p123 = scmp.eq.s32.totalorder %s17, 1
    %p124 = por %p122, %p123
    %p125 = scmp.ne.s32.totalorder %s116, %s117
    %p126 = scmp.eq.s32.totalorder %s17, 0
    %p127 = por %p125, %p126
    %p128 = scmp.ne.s32.totalorder %s116, %s117
    %p129 = scmp.eq.s32.totalorder %s18, 1
    %p130 = por %p128, %p129
    %p132 = scmp.ne.s32.totalorder %s117, %s131
    %p133 = scmp.eq.s32.totalorder %s18, 0
    %p134 = por %p132, %p133
    %s136 = sadd.s32 %s135, 1
    %p139 = scmp.eq.s32.totalorder %s12, 1
    %p140 = scmp.ne.s32.totalorder %s135, %s137
    %p141 = scmp.eq.s32.totalorder %s12, 0
    %p142 = por %p140, %p141
    %p143 = scmp.ne.s32.totalorder %s135, %s137
    %p144 = scmp.eq.s32.totalorder %s17, 1
    %p145 = por %p143, %p144
    %p146 = scmp.ne.s32.totalorder %s137, %s138
    %p147 = scmp.eq.s32.totalorder %s17, 0
    %p148 = por %p146, %p147
    %p149 = scmp.ne.s32.totalorder %s137, %s138
    %p150 = scmp.eq.s32.totalorder %s18, 1
    %p151 = por %p149, %p150
    %p153 = scmp.ne.s32.totalorder %s138, %s152
    %p154 = scmp.eq.s32.totalorder %s18, 0
    %p155 = por %p153, %p154
    %s156 = ssub.s32 %s19, %s31
    %s157 = ssub.s32 %s20, %s27
    %s158 = sor.u32 %s156, %s157
    %p159 = scmp.eq.s32.totalorder %s158, 0
    %s161 = sadd.s32 %s160, 1
    %s162 = scalar_select %p159, %s160, %s161
    %p165 = pneg %p159
    %p166 = scmp.eq.s32.totalorder %s12, 1
    %p167 = por %p165, %p166
    %p168 = scmp.ne.s32.totalorder %s160, %s163
    %p169 = scmp.eq.s32.totalorder %s12, 0
    %p170 = por %p168, %p169
    %p171 = scmp.ne.s32.totalorder %s160, %s163
    %p172 = scmp.eq.s32.totalorder %s17, 1
    %p173 = por %p171, %p172
    %p174 = scmp.ne.s32.totalorder %s163, %s164
    %p175 = scmp.eq.s32.totalorder %s17, 0
    %p176 = por %p174, %p175
    %p177 = scmp.ne.s32.totalorder %s163, %s164
    %p178 = scmp.eq.s32.totalorder %s18, 1
    %p179 = por %p177, %p178
    %p181 = scmp.ne.s32.totalorder %s164, %s180
    %p182 = scmp.eq.s32.totalorder %s18, 0
    %p183 = por %p181, %p182
    %s184 = ssub.s32 %s19, %s31
    %s185 = ssub.s32 %s20, %s27
    %s186 = sor.u32 %s184, %s185
    %p187 = scmp.eq.s32.totalorder %s186, 0
    %s189 = sadd.s32 %s188, 1
    %s190 = scalar_select %p187, %s188, %s189
    %p193 = pneg %p187
    %p194 = scmp.eq.s32.totalorder %s12, 1
    %p195 = por %p193, %p194
    %p196 = scmp.ne.s32.totalorder %s188, %s191
    %p197 = scmp.eq.s32.totalorder %s12, 0
    %p198 = por %p196, %p197
    %p199 = scmp.ne.s32.totalorder %s188, %s191
    %p200 = scmp.eq.s32.totalorder %s17, 1
    %p201 = por %p199, %p200
    %p202 = scmp.ne.s32.totalorder %s191, %s192
    %p203 = scmp.eq.s32.totalorder %s17, 0
    %p204 = por %p202, %p203
    %p205 = scmp.ne.s32.totalorder %s191, %s192
    %p206 = scmp.eq.s32.totalorder %s18, 1
    %p207 = por %p205, %p206
    %p209 = scmp.ne.s32.totalorder %s192, %s208
    %p210 = scmp.eq.s32.totalorder %s18, 0
    %p211 = por %p209, %p210
    %p212 = scmp.le.s32.totalorder 1, %s12
    %p213 = scmp.lt.s32.totalorder %s12, 3
    %p214 = pnand %p212, %p213
    %p215 = pneg %p214
    // Predicated region
    $region9: #{decoder_forward.19} parent=5 // pred_check
      _
    $region10: #{decoder_forward.19} parent=5 // pred_check_branch
      %217 = sbr.rel (%p214) target = $region12
    $region11: #{decoder_forward.19} parent=5 // pred_region
      %s218 = ssub.s32 %s12, 1
      // Predicated region
      $region13: #{decoder_forward.19} parent=11 // pred_check
        %p219 = pneg %p127
      $region14: #{decoder_forward.19} parent=11 // pred_check_branch
        %221 = sbr.rel (%p219) target = $region16
      $region15: #{decoder_forward.19} parent=11 // pred_region
        _
      $region16: #{decoder_forward.19} parent=11 // pred_fallthru
        _
      // Predicated region
      $region17: #{decoder_forward.19} parent=11 // pred_check
        %p222 = pneg %p148
      $region18: #{decoder_forward.19} parent=11 // pred_check_branch
        %224 = sbr.rel (%p222) target = $region20
      $region19: #{decoder_forward.19} parent=11 // pred_region
        _
      $region20: #{decoder_forward.19} parent=11 // pred_fallthru
        _
    $region12: #{decoder_forward.19} parent=5 // pred_fallthru
      _
    %p225 = scmp.lt.s32.totalorder %s12, 2
    // Predicated region
    $region21: #{decoder_forward.19} parent=5 // pred_check
      %p226 = pneg %p225
    $region22: #{decoder_forward.19} parent=5 // pred_check_branch
      %228 = sbr.rel (%p226) target = $region24
    $region23: #{decoder_forward.19} parent=5 // pred_region
      // Predicated region
      $region25: #{decoder_forward.19} parent=23 // pred_check
        %p229 = pneg %p46
      $region26: #{decoder_forward.19} parent=23 // pred_check_branch
        %231 = sbr.rel (%p229) target = $region28
      $region27: #{decoder_forward.19} parent=23 // pred_region
        %p232 = scmp.lt.s32.totalorder %s19, 1
        %s233 = scalar_select %p232, %s19, 1
        %p234 = scmp.lt.s32.totalorder %s20, 0
        %s235 = scalar_select %p234, %s20, 0
        %s236 = sadd.s32 %s235, %s233
        %s237 = smul.addr %s236, 8
        %s238 = scalar_lea.vmem %s0, %s237
      $region28: #{decoder_forward.19} parent=23 // pred_fallthru
        _
      // Predicated region
      $region29: #{decoder_forward.19} parent=23 // pred_check
        %p239 = pneg %p72
      $region30: #{decoder_forward.19} parent=23 // pred_check_branch
        %241 = sbr.rel (%p239) target = $region32
      $region31: #{decoder_forward.19} parent=23 // pred_region
        %p242 = scmp.lt.s32.totalorder %s19, 1
        %s243 = scalar_select %p242, %s19, 1
        %s244 = smul.addr %s243, 8
        %s245 = scalar_lea.vmem %s1, %s244
      $region32: #{decoder_forward.19} parent=23 // pred_fallthru
        _
      // Predicated region
      $region33: #{decoder_forward.19} parent=23 // pred_check
        %p246 = pneg %p100
      $region34: #{decoder_forward.19} parent=23 // pred_check_branch
        %248 = sbr.rel (%p246) target = $region36
      $region35: #{decoder_forward.19} parent=23 // pred_region
        %p249 = scmp.lt.s32.totalorder %s19, 1
        %s250 = scalar_select %p249, %s19, 1
        %p251 = scmp.lt.s32.totalorder %s20, 0
        %s252 = scalar_select %p251, %s20, 0
        %s253 = sadd.s32 %s252, %s250
        %s254 = smul.addr %s253, 2
        %s255 = scalar_lea.vmem %s2, %s254
      $region36: #{decoder_forward.19} parent=23 // pred_fallthru
        _
      // Predicated region
      $region37: #{decoder_forward.19} parent=23 // pred_check
        %p256 = pneg %p170
      $region38: #{decoder_forward.19} parent=23 // pred_check_branch
        %258 = sbr.rel (%p256) target = $region40
      $region39: #{decoder_forward.19} parent=23 // pred_region
        %p259 = scmp.lt.s32.totalorder %s19, 1
        %s260 = scalar_select %p259, %s19, 1
        %p261 = scmp.lt.s32.totalorder %s20, 0
        %s262 = scalar_select %p261, %s20, 0
        %s263 = sadd.s32 %s262, %s260
        %s264 = smul.addr %s263, 8
        %s265 = scalar_lea.vmem %s5, %s264
      $region40: #{decoder_forward.19} parent=23 // pred_fallthru
        _
    $region24: #{decoder_forward.19} parent=5 // pred_fallthru
      _
    %p266 = scmp.le.s32.totalorder 1, %s12
    %p267 = scmp.lt.s32.totalorder %s12, 3
    %p268 = pnand %p266, %p267
    %p269 = pneg %p268
    // Predicated region
    $region41: #{decoder_forward.19} parent=5 // pred_check
      _
    $region42: #{decoder_forward.19} parent=5 // pred_check_branch
      %271 = sbr.rel (%p268) target = $region44
    $region43: #{decoder_forward.19} parent=5 // pred_region
      %s272 = ssub.s32 %s12, 1
      %p273 = scmp.lt.s32.totalorder %s21, 1
      %s274 = scalar_select %p273, %s21, 1
      %p275 = scmp.lt.s32.totalorder %s22, 0
      %s276 = scalar_select %p275, %s22, 0
      %s277 = sadd.s32 %s276, %s274
      %s278 = smul.addr %s277, 8
      %s279 = scalar_lea.vmem %s0, %s278
      %p280 = pneg %p52
      %p281 = pneg %p49
      %p282 = scmp.lt.s32.totalorder %s21, 1
      %s283 = scalar_select %p282, %s21, 1
      %s284 = smul.addr %s283, 8
      %s285 = scalar_lea.vmem %s1, %s284
      %p286 = pneg %p78
      %p287 = pneg %p75
      %p288 = scmp.lt.s32.totalorder %s21, 1
      %s289 = scalar_select %p288, %s21, 1
      %p290 = scmp.lt.s32.totalorder %s22, 0
      %s291 = scalar_select %p290, %s22, 0
      %s292 = sadd.s32 %s291, %s289
      %s293 = smul.addr %s292, 2
      %s294 = scalar_lea.vmem %s2, %s293
      %p295 = pneg %p106
      %p296 = pneg %p103
      %p297 = pneg %p127
      %p298 = pneg %p124
      %p299 = pneg %p148
      %p300 = pneg %p145
      %p301 = scmp.lt.s32.totalorder %s21, 1
      %s302 = scalar_select %p301, %s21, 1
      %p303 = scmp.lt.s32.totalorder %s22, 0
      %s304 = scalar_select %p303, %s22, 0
      %s305 = sadd.s32 %s304, %s302
      %s306 = smul.addr %s305, 8
      %s307 = scalar_lea.vmem %s5, %s306
      %p308 = pneg %p176
      %p309 = pneg %p173
      %p310 = pneg %p204
      %p311 = pneg %p201
      %p312 = scmp.lt.s32.totalorder %s21, 1
      %s313 = scalar_select %p312, %s21, 1
      %p314 = scmp.lt.s32.totalorder %s22, 0
      %s315 = scalar_select %p314, %s22, 0
      %s316 = sadd.s32 %s315, %s313
      %s317 = smul.addr %s316, 8
      %s318 = scalar_lea.vmem %s6, %s317
      %p319 = scmp.lt.s32.totalorder %s21, 1
      %s320 = scalar_select %p319, %s21, 1
      %p321 = scmp.lt.s32.totalorder %s22, 0
      %s322 = scalar_select %p321, %s22, 0
      %s323 = sadd.s32 %s322, %s320
      %s324 = smul.addr %s323, 8
      %s325 = scalar_lea.vmem %s0, %s324
      %p326 = scmp.lt.s32.totalorder %s21, 1
      %s327 = scalar_select %p326, %s21, 1
      %s328 = smul.addr %s327, 8
      %s329 = scalar_lea.vmem %s1, %s328
      %p330 = scmp.lt.s32.totalorder %s21, 1
      %s331 = scalar_select %p330, %s21, 1
      %p332 = scmp.lt.s32.totalorder %s22, 0
      %s333 = scalar_select %p332, %s22, 0
      %s334 = sadd.s32 %s333, %s331
      %s335 = smul.addr %s334, 2
      %s336 = scalar_lea.vmem %s2, %s335
      %p337 = scmp.lt.s32.totalorder %s21, 1
      %s338 = scalar_select %p337, %s21, 1
      %p339 = scmp.lt.s32.totalorder %s22, 0
      %s340 = scalar_select %p339, %s22, 0
      %s341 = sadd.s32 %s340, %s338
      %s342 = smul.addr %s341, 8
      %s343 = scalar_lea.vmem %s5, %s342
      %p344 = scmp.lt.s32.totalorder %s21, 1
      %s345 = scalar_select %p344, %s21, 1
      %p346 = scmp.lt.s32.totalorder %s22, 0
      %s347 = scalar_select %p346, %s22, 0
      %s348 = sadd.s32 %s347, %s345
      %s349 = smul.addr %s348, 8
      %s350 = scalar_lea.vmem %s6, %s349
      %v352 = vld [vmem:[%s329] sm:$0xff]
      %v353 = vld [vmem:[%s336] sm:$0x3]
      %v354 = vunpack.c.0.s8 %v353
      %vm355 = vcmp.ne.s32.totalorder %v354, 0
      %v356 = vld [vmem:[%s325] sm:$0xff]
      %v357 = vmul.f32 %v356, 0.35355338
      %v358 = vpack.c.bf16 %v357, %v357
      %v359 = vpack.c.bf16 %v352, %v352
      %vm360 = vcmask 64512
      %v362 = vsel %vm360, %v358, 0
      %v365 = vsel %vm360, %v359, 0
      %367 = vmatprep.subr.bf16.mxu0 0
      %368 = vmatpush1.bf16.xpose.msra.mxu0 %v365
      %369 = vmatprep.subr.bf16.mxu0 0
      %370 = vmatpush1.bf16.xpose.msra.mxu0 0
      %371 = vmatprep.subr.bf16.mxu0 0
      %372 = vmatpush1.bf16.xpose.msra.mxu0 0
      %373 = vmatprep.subr.bf16.mxu0 0
      %374 = vmatpush1.bf16.xpose.msra.mxu0 0
      %375 = vmatprep.subr.bf16.mxu0 0
      %376 = vmatpush1.bf16.xpose.msra.mxu0 0
      %377 = vmatprep.subr.bf16.mxu0 0
      %378 = vmatpush1.bf16.xpose.msra.mxu0 0
      %379 = vmatprep.subr.bf16.mxu0 0
      %380 = vmatpush1.bf16.xpose.msra.mxu0 0
      %381 = vmatprep.subr.bf16.mxu0 0
      %382 = vmatpush1.bf16.xpose.msra.mxu0 0
      %383 = vmatprep.subr.bf16.mxu0 0
      %384 = vmatpush1.bf16.xpose.msra.mxu0 0
      %385 = vmatprep.subr.bf16.mxu0 0
      %386 = vmatpush1.bf16.xpose.msra.mxu0 0
      %387 = vmatprep.subr.bf16.mxu0 0
      %388 = vmatpush1.bf16.xpose.msra.mxu0 0
      %389 = vmatprep.subr.bf16.mxu0 0
      %390 = vmatpush1.bf16.xpose.msra.mxu0 0
      %391 = vmatprep.subr.bf16.mxu0 0
      %392 = vmatpush1.bf16.xpose.msra.mxu0 0
      %393 = vmatprep.subr.bf16.mxu0 0
      %394 = vmatpush1.bf16.xpose.msra.mxu0 0
      %395 = vmatprep.subr.bf16.mxu0 0
      %396 = vmatpush1.bf16.xpose.msra.mxu0 0
      %397 = vmatprep.subr.bf16.mxu0 0
      %398 = vmatpush1.bf16.xpose.msra.mxu0 0
      %399 = vmatprep.mubr.bf16.mxu0 0
      %400 = vmatmul.mubr.bf16.gmra.mrb[0].mxu0 %v362
      %v401 = vpop.f32.mrb[0].mxu0
      %v402 = vadd.f32 0.0, %v401
      %v403 = vpop.f32.mrb[0].mxu0
      %v404 = vpop.f32.mrb[0].mxu0
      %v405 = vpop.f32.mrb[0].mxu0
      %406 = vdwg.mxu0
      %v407 = vsel %vm355, %v402, -1e+09
      %v408 = vsel %vm360, %v407, -inf
      %409 = vmax.xlane.f32.xlu0 %v408
      %v410 = vpop.xlane.xlu0 %409
      %v411 = vsub.f32 %v407, %v410
      %v412 = vmul.f32 %v411, 1.442695
      %v413 = vpow.pop %v412
      %v414 = vsel %vm360, %v413, 0.0
      %415 = vadd.xlane.f32.xlu0 %v414
      %v416 = vpop.xlane.xlu0 %415
      %v417 = vrcp.pop %v416
      %v418 = vmul.f32 %v413, %v417
      %v419 = vpack.c.bf16 %v418, %v418
      %421 = vrot.lane.b32.xlu0 %v359, 96
      %v422 = vpop.permute.xlu0 %421
      %v424 = vsel %vm360, %v419, 0
      %vm426 = vcmask 1043456
      %v428 = vsel %vm426, %v422, 0
      %430 = vmatprep.subr.bf16.mxu0 0
      %431 = vmatpush1.bf16.msra.mxu0 %v428
      %432 = vmatprep.subr.bf16.mxu0 0
      %433 = vmatpush1.bf16.msra.mxu0 0
      %434 = vmatprep.subr.bf16.mxu0 0
      %435 = vmatpush1.bf16.msra.mxu0 0
      %436 = vmatprep.subr.bf16.mxu0 0
      %437 = vmatpush1.bf16.msra.mxu0 0
      %438 = vmatprep.subr.bf16.mxu0 0
      %439 = vmatpush1.bf16.msra.mxu0 0
      %440 = vmatprep.subr.bf16.mxu0 0
      %441 = vmatpush1.bf16.msra.mxu0 0
      %442 = vmatprep.subr.bf16.mxu0 0
      %443 = vmatpush1.bf16.msra.mxu0 0
      %444 = vmatprep.subr.bf16.mxu0 0
      %445 = vmatpush1.bf16.msra.mxu0 0
      %446 = vmatprep.subr.bf16.mxu0 0
      %447 = vmatpush1.bf16.msra.mxu0 0
      %448 = vmatprep.subr.bf16.mxu0 0
      %449 = vmatpush1.bf16.msra.mxu0 0
      %450 = vmatprep.subr.bf16.mxu0 0
      %451 = vmatpush1.bf16.msra.mxu0 0
      %452 = vmatprep.subr.bf16.mxu0 0
      %453 = vmatpush1.bf16.msra.mxu0 0
      %454 = vmatprep.subr.bf16.mxu0 0
      %455 = vmatpush1.bf16.msra.mxu0 0
      %456 = vmatprep.subr.bf16.mxu0 0
      %457 = vmatpush1.bf16.msra.mxu0 0
      %458 = vmatprep.subr.bf16.mxu0 0
      %459 = vmatpush1.bf16.msra.mxu0 0
      %460 = vmatprep.subr.bf16.mxu0 0
      %461 = vmatpush1.bf16.msra.mxu0 0
      %462 = vmatprep.mubr.bf16.mxu0 0
      %463 = vmatmul.mubr.bf16.gmra.mrb[0].mxu0 %v424
      %v464 = vpop.f32.mrb[0].mxu0
      %v465 = vadd.f32 0.0, %v464
      %v466 = vpop.f32.mrb[0].mxu0
      %v467 = vpop.f32.mrb[0].mxu0
      %v468 = vpop.f32.mrb[0].mxu0
      %469 = vdwg.mxu0
      %v470 = vpack.c.bf16 %v465, %v465
      %vm471 = vcmask 60416
      %472 = vst.msk [vmem:[#allocation2] sm:$0xf] %vm471, %v470
      %474 = vrot.lane.b32.xlu0 %v358, 120
      %v475 = vpop.permute.xlu0 %474
      %476 = vrot.lane.b32.xlu0 %v359, 120
      %v477 = vpop.permute.xlu0 %476
      %v479 = vsel %vm360, %v475, 0
      %v482 = vsel %vm360, %v477, 0
      %484 = vmatprep.subr.bf16.mxu0 0
      %485 = vmatpush1.bf16.xpose.msra.mxu0 %v482
      %486 = vmatprep.subr.bf16.mxu0 0
      %487 = vmatpush1.bf16.xpose.msra.mxu0 0
      %488 = vmatprep.subr.bf16.mxu0 0
      %489 = vmatpush1.bf16.xpose.msra.mxu0 0
      %490 = vmatprep.subr.bf16.mxu0 0
      %491 = vmatpush1.bf16.xpose.msra.mxu0 0
      %492 = vmatprep.subr.bf16.mxu0 0
      %493 = vmatpush1.bf16.xpose.msra.mxu0 0
      %494 = vmatprep.subr.bf16.mxu0 0
      %495 = vmatpush1.bf16.xpose.msra.mxu0 0
      %496 = vmatprep.subr.bf16.mxu0 0
      %497 = vmatpush1.bf16.xpose.msra.mxu0 0
      %498 = vmatprep.subr.bf16.mxu0 0
      %499 = vmatpush1.bf16.xpose.msra.mxu0 0
      %500 = vmatprep.subr.bf16.mxu0 0
      %501 = vmatpush1.bf16.xpose.msra.mxu0 0
      %502 = vmatprep.subr.bf16.mxu0 0
      %503 = vmatpush1.bf16.xpose.msra.mxu0 0
      %504 = vmatprep.subr.bf16.mxu0 0
      %505 = vmatpush1.bf16.xpose.msra.mxu0 0
      %506 = vmatprep.subr.bf16.mxu0 0
      %507 = vmatpush1.bf16.xpose.msra.mxu0 0
      %508 = vmatprep.subr.bf16.mxu0 0
      %509 = vmatpush1.bf16.xpose.msra.mxu0 0
      %510 = vmatprep.subr.bf16.mxu0 0
      %511 = vmatpush1.bf16.xpose.msra.mxu0 0
      %512 = vmatprep.subr.bf16.mxu0 0
      %513 = vmatpush1.bf16.xpose.msra.mxu0 0
      %514 = vmatprep.subr.bf16.mxu0 0
      %515 = vmatpush1.bf16.xpose.msra.mxu0 0
      %516 = vmatprep.mubr.bf16.mxu0 0
      %517 = vmatmul.mubr.bf16.gmra.mrb[0].mxu0 %v479
      %v518 = vpop.f32.mrb[0].mxu0
      %v519 = vadd.f32 0.0, %v518
      %v520 = vpop.f32.mrb[0].mxu0
      %v521 = vpop.f32.mrb[0].mxu0
      %v522 = vpop.f32.mrb[0].mxu0
      %523 = vdwg.mxu0
      %v524 = vsel %vm355, %v519, -1e+09
      %v525 = vsel %vm360, %v524, -inf
      %526 = vmax.xlane.f32.xlu0 %v525
      %v527 = vpop.xlane.xlu0 %526
      %v528 = vsub.f32 %v524, %v527
      %v529 = vmul.f32 %v528, 1.442695
      %v530 = vpow.pop %v529
      %v531 = vsel %vm360, %v530, 0.0
      %532 = vadd.xlane.f32.xlu0 %v531
      %v533 = vpop.xlane.xlu0 %532
      %v534 = vrcp.pop %v533
      %v535 = vmul.f32 %v530, %v534
      %v536 = vpack.c.bf16 %v535, %v535
      %537 = vrot.lane.b32.xlu0 %v359, 88
      %v538 = vpop.permute.xlu0 %537
      %v540 = vsel %vm360, %v536, 0
      %v543 = vsel %vm426, %v538, 0
      %545 = vmatprep.subr.bf16.mxu0 0
      %546 = vmatpush1.bf16.msra.mxu0 %v543
      %547 = vmatprep.subr.bf16.mxu0 0
      %548 = vmatpush1.bf16.msra.mxu0 0
      %549 = vmatprep.subr.bf16.mxu0 0
      %550 = vmatpush1.bf16.msra.mxu0 0
      %551 = vmatprep.subr.bf16.mxu0 0
      %552 = vmatpush1.bf16.msra.mxu0 0
      %553 = vmatprep.subr.bf16.mxu0 0
      %554 = vmatpush1.bf16.msra.mxu0 0
      %555 = vmatprep.subr.bf16.mxu0 0
      %556 = vmatpush1.bf16.msra.mxu0 0
      %557 = vmatprep.subr.bf16.mxu0 0
      %558 = vmatpush1.bf16.msra.mxu0 0
      %559 = vmatprep.subr.bf16.mxu0 0
      %560 = vmatpush1.bf16.msra.mxu0 0
      %561 = vmatprep.subr.bf16.mxu0 0
      %562 = vmatpush1.bf16.msra.mxu0 0
      %563 = vmatprep.subr.bf16.mxu0 0
      %564 = vmatpush1.bf16.msra.mxu0 0
      %565 = vmatprep.subr.bf16.mxu0 0
      %566 = vmatpush1.bf16.msra.mxu0 0
      %567 = vmatprep.subr.bf16.mxu0 0
      %568 = vmatpush1.bf16.msra.mxu0 0
      %569 = vmatprep.subr.bf16.mxu0 0
      %570 = vmatpush1.bf16.msra.mxu0 0
      %571 = vmatprep.subr.bf16.mxu0 0
      %572 = vmatpush1.bf16.msra.mxu0 0
      %573 = vmatprep.subr.bf16.mxu0 0
      %574 = vmatpush1.bf16.msra.mxu0 0
      %575 = vmatprep.subr.bf16.mxu0 0
      %576 = vmatpush1.bf16.msra.mxu0 0
      %577 = vmatprep.mubr.bf16.mxu0 0
      %578 = vmatmul.mubr.bf16.gmra.mrb[0].mxu0 %v540
      %v579 = vpop.f32.mrb[0].mxu0
      %v580 = vadd.f32 0.0, %v579
      %v581 = vpop.f32.mrb[0].mxu0
      %v582 = vpop.f32.mrb[0].mxu0
      %v583 = vpop.f32.mrb[0].mxu0
      %584 = vdwg.mxu0
      %v585 = vpack.c.bf16 %v580, %v580
      %v587 = vunpack.c.l.b16 %v585
      %v588 = vpack.c.b16 %v587, %v587
      %589 = vrot.lane.b32.xlu0 %v588, 8
      %v590 = vpop.permute.xlu0 %589
      %vm592 = vcmask 126016
      %593 = vst.msk [vmem:[#allocation2] sm:$0xf] %vm592, %v590
      %594 = vrot.lane.b32.xlu0 %v358, 112
      %v595 = vpop.permute.xlu0 %594
      %596 = vrot.lane.b32.xlu0 %v359, 112
      %v597 = vpop.permute.xlu0 %596
      %v599 = vsel %vm360, %v595, 0
      %v602 = vsel %vm360, %v597, 0
      %604 = vmatprep.subr.bf16.mxu0 0
      %605 = vmatpush1.bf16.xpose.msra.mxu0 %v602
      %606 = vmatprep.subr.bf16.mxu0 0
      %607 = vmatpush1.bf16.xpose.msra.mxu0 0
      %608 = vmatprep.subr.bf16.mxu0 0
      %609 = vmatpush1.bf16.xpose.msra.mxu0 0
      %610 = vmatprep.subr.bf16.mxu0 0
      %611 = vmatpush1.bf16.xpose.msra.mxu0 0
      %612 = vmatprep.subr.bf16.mxu0 0
      %613 = vmatpush1.bf16.xpose.msra.mxu0 0
      %614 = vmatprep.subr.bf16.mxu0 0
      %615 = vmatpush1.bf16.xpose.msra.mxu0 0
      %616 = vmatprep.subr.bf16.mxu0 0
      %617 = vmatpush1.bf16.xpose.msra.mxu0 0
      %618 = vmatprep.subr.bf16.mxu0 0
      %619 = vmatpush1.bf16.xpose.msra.mxu0 0
      %620 = vmatprep.subr.bf16.mxu0 0
      %621 = vmatpush1.bf16.xpose.msra.mxu0 0
      %622 = vmatprep.subr.bf16.mxu0 0
      %623 = vmatpush1.bf16.xpose.msra.mxu0 0
      %624 = vmatprep.subr.bf16.mxu0 0
      %625 = vmatpush1.bf16.xpose.msra.mxu0 0
      %626 = vmatprep.subr.bf16.mxu0 0
      %627 = vmatpush1.bf16.xpose.msra.mxu0 0
      %628 = vmatprep.subr.bf16.mxu0 0
      %629 = vmatpush1.bf16.xpose.msra.mxu0 0
      %630 = vmatprep.subr.bf16.mxu0 0
      %631 = vmatpush1.bf16.xpose.msra.mxu0 0
      %632 = vmatprep.subr.bf16.mxu0 0
      %633 = vmatpush1.bf16.xpose.msra.mxu0 0
      %634 = vmatprep.subr.bf16.mxu0 0
      %635 = vmatpush1.bf16.xpose.msra.mxu0 0
      %636 = vmatprep.mubr.bf16.mxu0 0
      %637 = vmatmul.mubr.bf16.gmra.mrb[0].mxu0 %v599
      %v638 = vpop.f32.mrb[0].mxu0
      %v639 = vadd.f32 0.0, %v638
      %v640 = vpop.f32.mrb[0].mxu0
      %v641 = vpop.f32.mrb[0].mxu0
      %v642 = vpop.f32.mrb[0].mxu0
      %643 = vdwg.mxu0
      %v644 = vsel %vm355, %v639, -1e+09
      %v645 = vsel %vm360, %v644, -inf
      %646 = vmax.xlane.f32.xlu0 %v645
      %v647 = vpop.xlane.xlu0 %646
      %v648 = vsub.f32 %v644, %v647
      %v649 = vmul.f32 %v648, 1.442695
      %v650 = vpow.pop %v649
      %v651 = vsel %vm360, %v650, 0.0
      %652 = vadd.xlane.f32.xlu0 %v651
      %v653 = vpop.xlane.xlu0 %652
      %v654 = vrcp.pop %v653
      %v655 = vmul.f32 %v650, %v654
      %v656 = vpack.c.bf16 %v655, %v655
      %657 = vrot.lane.b32.xlu0 %v359, 80
      %v658 = vpop.permute.xlu0 %657
      %v660 = vsel %vm360, %v656, 0
      %v663 = vsel %vm426, %v658, 0
      %665 = vmatprep.subr.bf16.mxu0 0
      %666 = vmatpush1.bf16.msra.mxu0 %v663
      %667 = vmatprep.subr.bf16.mxu0 0
      %668 = vmatpush1.bf16.msra.mxu0 0
      %669 = vmatprep.subr.bf16.mxu0 0
      %670 = vmatpush1.bf16.msra.mxu0 0
      %671 = vmatprep.subr.bf16.mxu0 0
      %672 = vmatpush1.bf16.msra.mxu0 0
      %673 = vmatprep.subr.bf16.mxu0 0
      %674 = vmatpush1.bf16.msra.mxu0 0
      %675 = vmatprep.subr.bf16.mxu0 0
      %676 = vmatpush1.bf16.msra.mxu0 0
      %677 = vmatprep.subr.bf16.mxu0 0
      %678 = vmatpush1.bf16.msra.mxu0 0
      %679 = vmatprep.subr.bf16.mxu0 0
      %680 = vmatpush1.bf16.msra.mxu0 0
      %681 = vmatprep.subr.bf16.mxu0 0
      %682 = vmatpush1.bf16.msra.mxu0 0
      %683 = vmatprep.subr.bf16.mxu0 0
      %684 = vmatpush1.bf16.msra.mxu0 0
      %685 = vmatprep.subr.bf16.mxu0 0
      %686 = vmatpush1.bf16.msra.mxu0 0
      %687 = vmatprep.subr.bf16.mxu0 0
      %688 = vmatpush1.bf16.msra.mxu0 0
      %689 = vmatprep.subr.bf16.mxu0 0
      %690 = vmatpush1.bf16.msra.mxu0 0
      %691 = vmatprep.subr.bf16.mxu0 0
      %692 = vmatpush1.bf16.msra.mxu0 0
      %693 = vmatprep.subr.bf16.mxu0 0
      %694 = vmatpush1.bf16.msra.mxu0 0
      %695 = vmatprep.subr.bf16.mxu0 0
      %696 = vmatpush1.bf16.msra.mxu0 0
      %697 = vmatprep.mubr.bf16.mxu0 0
      %698 = vmatmul.mubr.bf16.gmra.mrb[0].mxu0 %v660
      %v699 = vpop.f32.mrb[0].mxu0
      %v700 = vadd.f32 0.0, %v699
      %v701 = vpop.f32.mrb[0].mxu0
      %v702 = vpop.f32.mrb[0].mxu0
      %v703 = vpop.f32.mrb[0].mxu0
      %704 = vdwg.mxu0
      %v705 = vpack.c.bf16 %v700, %v700
      %v707 = vunpack.c.l.b16 %v705
      %v708 = vpack.c.b16 %v707, %v707
      %709 = vrot.lane.b32.xlu0 %v708, 16
      %v710 = vpop.permute.xlu0 %709
      %vm712 = vcmask 191616
      %713 = vst.msk [vmem:[#allocation2] sm:$0xf] %vm712, %v710
      %714 = vrot.lane.b32.xlu0 %v358, 104
      %v715 = vpop.permute.xlu0 %714
      %716 = vrot.lane.b32.xlu0 %v359, 104
      %v717 = vpop.permute.xlu0 %716
      %v719 = vsel %vm360, %v715, 0
      %v722 = vsel %vm360, %v717, 0
      %724 = vmatprep.subr.bf16.mxu0 0
      %725 = vmatpush1.bf16.xpose.msra.mxu0 %v722
      %726 = vmatprep.subr.bf16.mxu0 0
      %727 = vmatpush1.bf16.xpose.msra.mxu0 0
      %728 = vmatprep.subr.bf16.mxu0 0
      %729 = vmatpush1.bf16.xpose.msra.mxu0 0
      %730 = vmatprep.subr.bf16.mxu0 0
      %731 = vmatpush1.bf16.xpose.msra.mxu0 0
      %732 = vmatprep.subr.bf16.mxu0 0
      %733 = vmatpush1.bf16.xpose.msra.mxu0 0
      %734 = vmatprep.subr.bf16.mxu0 0
      %735 = vmatpush1.bf16.xpose.msra.mxu0 0
      %736 = vmatprep.subr.bf16.mxu0 0
      %737 = vmatpush1.bf16.xpose.msra.mxu0 0
      %738 = vmatprep.subr.bf16.mxu0 0
      %739 = vmatpush1.bf16.xpose.msra.mxu0 0
      %740 = vmatprep.subr.bf16.mxu0 0
      %741 = vmatpush1.bf16.xpose.msra.mxu0 0
      %742 = vmatprep.subr.bf16.mxu0 0
      %743 = vmatpush1.bf16.xpose.msra.mxu0 0
      %744 = vmatprep.subr.bf16.mxu0 0
      %745 = vmatpush1.bf16.xpose.msra.mxu0 0
      %746 = vmatprep.subr.bf16.mxu0 0
      %747 = vmatpush1.bf16.xpose.msra.mxu0 0
      %748 = vmatprep.subr.bf16.mxu0 0
      %749 = vmatpush1.bf16.xpose.msra.mxu0 0
      %750 = vmatprep.subr.bf16.mxu0 0
      %751 = vmatpush1.bf16.xpose.msra.mxu0 0
      %752 = vmatprep.subr.bf16.mxu0 0
      %753 = vmatpush1.bf16.xpose.msra.mxu0 0
      %754 = vmatprep.subr.bf16.mxu0 0
      %755 = vmatpush1.bf16.xpose.msra.mxu0 0
      %756 = vmatprep.mubr.bf16.mxu0 0
      %757 = vmatmul.mubr.bf16.gmra.mrb[0].mxu0 %v719
      %v758 = vpop.f32.mrb[0].mxu0
      %v759 = vadd.f32 0.0, %v758
      %v760 = vpop.f32.mrb[0].mxu0
      %v761 = vpop.f32.mrb[0].mxu0
      %v762 = vpop.f32.mrb[0].mxu0
      %763 = vdwg.mxu0
      %v764 = vsel %vm355, %v759, -1e+09
      %v765 = vsel %vm360, %v764, -inf
      %766 = vmax.xlane.f32.xlu0 %v765
      %v767 = vpop.xlane.xlu0 %766
      %v768 = vsub.f32 %v764, %v767
      %v769 = vmul.f32 %v768, 1.442695
      %v770 = vpow.pop %v769
      %v771 = vsel %vm360, %v770, 0.0
      %772 = vadd.xlane.f32.xlu0 %v771
      %v773 = vpop.xlane.xlu0 %772
      %v774 = vrcp.pop %v773
      %v775 = vmul.f32 %v770, %v774
      %v776 = vpack.c.bf16 %v775, %v775
      %777 = vrot.lane.b32.xlu0 %v359, 72
      %v778 = vpop.permute.xlu0 %777
      %v780 = vsel %vm360, %v776, 0
      %v783 = vsel %vm426, %v778, 0
      %785 = vmatprep.subr.bf16.mxu0 0
      %786 = vmatpush1.bf16.msra.mxu0 %v783
      %787 = vmatprep.subr.bf16.mxu0 0
      %788 = vmatpush1.bf16.msra.mxu0 0
      %789 = vmatprep.subr.bf16.mxu0 0
      %790 = vmatpush1.bf16.msra.mxu0 0
      %791 = vmatprep.subr.bf16.mxu0 0
      %792 = vmatpush1.bf16.msra.mxu0 0
      %793 = vmatprep.subr.bf16.mxu0 0
      %794 = vmatpush1.bf16.msra.mxu0 0
      %795 = vmatprep.subr.bf16.mxu0 0
      %796 = vmatpush1.bf16.msra.mxu0 0
      %797 = vmatprep.subr.bf16.mxu0 0
      %798 = vmatpush1.bf16.msra.mxu0 0
      %799 = vmatprep.subr.bf16.mxu0 0
      %800 = vmatpush1.bf16.msra.mxu0 0
      %801 = vmatprep.subr.bf16.mxu0 0
      %802 = vmatpush1.bf16.msra.mxu0 0
      %803 = vmatprep.subr.bf16.mxu0 0
      %804 = vmatpush1.bf16.msra.mxu0 0
      %805 = vmatprep.subr.bf16.mxu0 0
      %806 = vmatpush1.bf16.msra.mxu0 0
      %807 = vmatprep.subr.bf16.mxu0 0
      %808 = vmatpush1.bf16.msra.mxu0 0
      %809 = vmatprep.subr.bf16.mxu0 0
      %810 = vmatpush1.bf16.msra.mxu0 0
      %811 = vmatprep.subr.bf16.mxu0 0
      %812 = vmatpush1.bf16.msra.mxu0 0
      %813 = vmatprep.subr.bf16.mxu0 0
      %814 = vmatpush1.bf16.msra.mxu0 0
      %815 = vmatprep.subr.bf16.mxu0 0
      %816 = vmatpush1.bf16.msra.mxu0 0
      %817 = vmatprep.mubr.bf16.mxu0 0
      %818 = vmatmul.mubr.bf16.gmra.mrb[0].mxu0 %v780
      %v819 = vpop.f32.mrb[0].mxu0
      %v820 = vadd.f32 0.0, %v819
      %v821 = vpop.f32.mrb[0].mxu0
      %v822 = vpop.f32.mrb[0].mxu0
      %v823 = vpop.f32.mrb[0].mxu0
      %824 = vdwg.mxu0
      %v825 = vpack.c.bf16 %v820, %v820
      %v827 = vunpack.c.l.b16 %v825
      %v828 = vpack.c.b16 %v827, %v827
      %829 = vrot.lane.b32.xlu0 %v828, 24
      %v830 = vpop.permute.xlu0 %829
      %vm832 = vcmask 257216
      %833 = vst.msk [vmem:[#allocation2] sm:$0xf] %vm832, %v830
      %v834 = vld [vmem:[%s343] sm:$0xff]
      %v835 = vld [vmem:[#allocation2] sm:$0xf]
      %v836 = vld [vmem:[%s3] sm:$0xf]
      %v837 = vld [vmem:[%s3 + $0x4] sm:$0xf]
      %v838 = vld [vmem:[%s3 + $0x8] sm:$0xf]
      %v839 = vld [vmem:[%s3 + $0xc] sm:$0xf]
      %v840 = vld [vmem:[%s4] sm:$0x1]
      %v842 = vlaneseq
      %v843 = vshrl.u32 %v842, 7
      %v844 = vsub.s32 0, %v843
      %v845 = vrot.slane %v840, %v844
      %v851 = vunpack.c.l.b16 %v836
      %v852 = vunpack.c.l.b16 %v837
      %v853 = vunpack.c.l.b16 %v838
      %v854 = vunpack.c.l.b16 %v839
      %v855 = vpack.c.b16 %v852, %v851
      %v856 = vpack.c.b16 %v854, %v853
      %vm859 = vcmask 261120
      %v861 = vsel %vm859, %v835, 0
      %863 = vmatprep.subr.bf16.mxu0 0
      %864 = vmatpush1.bf16.msra.mxu0 %v855
      %865 = vmatprep.subr.bf16.mxu0 0
      %866 = vmatpush1.bf16.msra.mxu0 %v856
      %867 = vmatprep.subr.bf16.mxu0 0
      %868 = vmatpush1.bf16.msra.mxu0 0
      %869 = vmatprep.subr.bf16.mxu0 0
      %870 = vmatpush1.bf16.msra.mxu0 0
      %871 = vmatprep.subr.bf16.mxu0 0
      %872 = vmatpush1.bf16.msra.mxu0 0
      %873 = vmatprep.subr.bf16.mxu0 0
      %874 = vmatpush1.bf16.msra.mxu0 0
      %875 = vmatprep.subr.bf16.mxu0 0
      %876 = vmatpush1.bf16.msra.mxu0 0
      %877 = vmatprep.subr.bf16.mxu0 0
      %878 = vmatpush1.bf16.msra.mxu0 0
      %879 = vmatprep.subr.bf16.mxu0 0
      %880 = vmatpush1.bf16.msra.mxu0 0
      %881 = vmatprep.subr.bf16.mxu0 0
      %882 = vmatpush1.bf16.msra.mxu0 0
      %883 = vmatprep.subr.bf16.mxu0 0
      %884 = vmatpush1.bf16.msra.mxu0 0
      %885 = vmatprep.subr.bf16.mxu0 0
      %886 = vmatpush1.bf16.msra.mxu0 0
      %887 = vmatprep.subr.bf16.mxu0 0
      %888 = vmatpush1.bf16.msra.mxu0 0
      %889 = vmatprep.subr.bf16.mxu0 0
      %890 = vmatpush1.bf16.msra.mxu0 0
      %891 = vmatprep.subr.bf16.mxu0 0
      %892 = vmatpush1.bf16.msra.mxu0 0
      %893 = vmatprep.subr.bf16.mxu0 0
      %894 = vmatpush1.bf16.msra.mxu0 0
      %895 = vmatprep.mubr.bf16.mxu0 0
      %896 = vmatmul.mubr.bf16.gmra.mrb[0].mxu0 %v861
      %v897 = vpop.f32.mrb[0].mxu0
      %v898 = vadd.f32 %v845, %v897
      %v899 = vpop.f32.mrb[0].mxu0
      %v900 = vpop.f32.mrb[0].mxu0
      %v901 = vpop.f32.mrb[0].mxu0
      %902 = vdwg.mxu0
      %v903 = vadd.f32 %v898, %v834
      %904 = vst.msk [vmem:[%s350] sm:$0xff] %vm859, %v903
      %p905 = scmp.lt.s32.totalorder %s21, 1
      %s906 = scalar_select %p905, %s21, 1
      %p907 = scmp.lt.s32.totalorder %s22, 0
      %s908 = scalar_select %p907, %s22, 0
      %s909 = sadd.s32 %s908, %s906
      %s910 = smul.addr %s909, 8
      %s911 = scalar_lea.vmem %s6, %s910
      // Predicated region
      $region45: #{decoder_forward.19} parent=43 // pred_check
        %p912 = pneg %p201
      $region46: #{decoder_forward.19} parent=43 // pred_check_branch
        %914 = sbr.rel (%p912) target = $region48
      $region47: #{decoder_forward.19} parent=43 // pred_region
        _
      $region48: #{decoder_forward.19} parent=43 // pred_fallthru
        _
    $region44: #{decoder_forward.19} parent=5 // pred_fallthru
      _
    %p915 = scmp.le.s32.totalorder 2, %s12
    // Predicated region
    $region49: #{decoder_forward.19} parent=5 // pred_check
      %p916 = pneg %p915
    $region50: #{decoder_forward.19} parent=5 // pred_check_branch
      %918 = sbr.rel (%p916) target = $region52
    $region51: #{decoder_forward.19} parent=5 // pred_region
      %s919 = ssub.s32 %s12, 2
      // Predicated region
      $region53: #{decoder_forward.19} parent=51 // pred_check
        %p920 = pneg %p207
      $region54: #{decoder_forward.19} parent=51 // pred_check_branch
        %922 = sbr.rel (%p920) target = $region56
      $region55: #{decoder_forward.19} parent=51 // pred_region
        %p923 = scmp.lt.s32.totalorder %s23, 1
        %s924 = scalar_select %p923, %s23, 1
        %p925 = scmp.lt.s32.totalorder %s24, 0
        %s926 = scalar_select %p925, %s24, 0
        %s927 = sadd.s32 %s926, %s924
        %s928 = smul.addr %s927, 8
        %s929 = scalar_lea.vmem %s6, %s928
      $region56: #{decoder_forward.19} parent=51 // pred_fallthru
        _
    $region52: #{decoder_forward.19} parent=5 // pred_fallthru
      _
  $region6: #{decoder_forward.19} parent=0 // loop_footer
    %s16 = sadd.s32 1, %s12
  $region7: #{decoder_forward.19} parent=0 // loop_footer_branch
    %11 = sbr.rel target = $region3
  $region8: #{decoder_forward.19} parent=0 // loop_exit
    _

</llo_original>
